<compile_context>
chip_gen: v7x
topology: tpu7x:2x2x1
jax: 0.10.0
libtpu: 0.0.40
codegen_flags: <defaults>
</compile_context>

<pallas_src>
import jax
import jax.numpy as jnp
from jax import lax
from jax.experimental import pallas as pl
from jax.experimental.pallas import tpu as pltpu

# ---------------- small, module-consistent shapes ----------------
B = 2
DIM = 4                   # in channels
DIM_OUT = 8               # out channels (dim != dim_out -> res_conv is a 1x1 conv)
MULT = 2
DIM_MID = DIM_OUT * MULT  # 16
H = W = 16
HW = H * W                # 256 lanes (multiple of 128 -> full-width vregs/stores)
C_PAD = 8                 # input channels padded to one sublane tile
TIME_DIM = 8
COND_DIM = 8
EPS = 1e-5
HIGH = jax.lax.Precision.HIGHEST

assert W & (W - 1) == 0, "W must be a power of two for the lane-index bit trick"
assert DIM_OUT % 8 == 0 and DIM_MID % 8 == 0


def _erf(z):
    # TODO(synk): exact lax.erf may not have a Mosaic lowering; A&S 7.1.26
    # polynomial (|abs err| < 1.5e-7, i.e. f32-exact) keeps nn.GELU() semantics.
    a1, a2, a3, a4, a5 = 0.254829592, -0.284496736, 1.421413741, -1.453152027, 1.061405429
    p = 0.3275911
    s = jnp.where(z >= 0.0, 1.0, -1.0)
    az = jnp.abs(z)
    t = 1.0 / (1.0 + p * az)
    poly = ((((a5 * t + a4) * t + a3) * t + a2) * t + a1) * t
    return s * (1.0 - poly * jnp.exp(-az * az))


def _gelu(x):  # exact (erf-based) GELU, matching torch.nn.GELU() default
    return 0.5 * x * (1.0 + _erf(x * 0.7071067811865475))


def convnext_kernel(x_ref, cond_ref, dww_ref, pcol_ref, w1_ref, w2_ref, rw_ref, o_ref):
    x = x_ref[0]                                   # (C_PAD, HW); rows DIM.. are zero
    pc = pcol_ref[...]                             # (80, 1) packed per-channel params

    # lane index p -> spatial (row, col); row masks only need p itself because
    # rows are contiguous blocks of W lanes, col needs p % W (W is a power of 2).
    p_idx = lax.broadcasted_iota(jnp.int32, (1, HW), 1)
    col_idx = jnp.bitwise_and(p_idx, W - 1)

    def shift2d(slab, dy, dx):
        """out[:, y*W+x] = slab[:, (y+dy)*W + (x+dx)] inside the image, 0 outside."""
        s = dy * W + dx
        rolled = slab if s == 0 else pltpu.roll(slab, (-s) % HW, axis=1)
        conds = []
        if dy > 0:
            conds.append(p_idx < (H - dy) * W)
        if dy < 0:
            conds.append(p_idx >= (-dy) * W)
        if dx > 0:
            conds.append(col_idx < W - dx)
        if dx < 0:
            conds.append(col_idx >= -dx)
        if not conds:
            return rolled
        valid = conds[0]
        for c in conds[1:]:
            valid = valid & c
        return jnp.where(valid, rolled, 0.0)

    # ---- ds_conv: depthwise 7x7, padding=3 (49 lane rolls + per-channel FMA) ----
    dww = dww_ref[...]                             # (C_PAD, 49) per-channel tap weights
    h = jnp.zeros((C_PAD, HW), jnp.float32)
    for ky in range(7):
        for kx in range(7):
            t = ky * 7 + kx
            h = h + shift2d(x, ky - 3, kx - 3) * dww[:, t:t + 1]
    # fused bias: ds_conv bias + time-MLP + cond-MLP conditioning (precomputed outside)
    h = h + cond_ref[0]                            # (C_PAD, 1) broadcast over lanes

    # ---- residual 1x1 conv (done early so x's live range ends here) ----
    res = jnp.dot(rw_ref[...], x, preferred_element_type=jnp.float32) + pc[72:80]

    # ---- GroupNorm(1, DIM): single-pass sum / sum-of-squares (pad rows are zero) ----
    inv_n1 = 1.0 / float(DIM * HW)
    mu1 = jnp.sum(h, keepdims=True) * inv_n1
    var1 = jnp.sum(h * h, keepdims=True) * inv_n1 - mu1 * mu1
    hn = (h - mu1) * lax.rsqrt(var1 + EPS)
    hn = hn * pc[0:8] + pc[8:16]                   # affine; padded rows of w/b are 0

    # ---- Conv2d(DIM -> DIM_MID, 3x3, padding=1) as one im2col matmul + GELU ----
    patches1 = jnp.concatenate(
        [shift2d(hn, dy, dx) for dy in (-1, 0, 1) for dx in (-1, 0, 1)], axis=0)  # (72, HW)
    h2 = _gelu(jnp.dot(w1_ref[...], patches1, preferred_element_type=jnp.float32)
               + pc[16:32])                        # (DIM_MID, HW)

    # ---- GroupNorm(1, DIM_MID) ----
    inv_n2 = 1.0 / float(DIM_MID * HW)
    mu2 = jnp.sum(h2, keepdims=True) * inv_n2
    var2 = jnp.sum(h2 * h2, keepdims=True) * inv_n2 - mu2 * mu2
    h2n = (h2 - mu2) * lax.rsqrt(var2 + EPS) * pc[32:48] + pc[48:64]

    # ---- Conv2d(DIM_MID -> DIM_OUT, 3x3, padding=1) as one im2col matmul ----
    patches2 = jnp.concatenate(
        [shift2d(h2n, dy, dx) for dy in (-1, 0, 1) for dx in (-1, 0, 1)], axis=0)  # (144, HW)
    acc2 = jnp.dot(w2_ref[...], patches2, preferred_element_type=jnp.float32) + pc[64:72]

    # lane-dense store: (DIM_OUT, 256)
    o_ref[0] = acc2 + res


@jax.jit
def convnext_block(x_nchw, time_emb, cond_emb, p):
    """x_nchw: (B, DIM, H, W) float32 (PyTorch layout). Returns (B, DIM_OUT, H, W)."""
    f32 = jnp.float32
    gelu = lambda v: 0.5 * v * (1.0 + jax.scipy.special.erf(v * 0.7071067811865475))
    silu = lambda v: v * jax.nn.sigmoid(v)

    # ---- conditioning MLPs hoisted out of the kernel, folded into the dw-conv bias ----
    t_cond = jnp.dot(gelu(time_emb), p['mlp_w'], precision=HIGH) + p['mlp_b']
    c_cond = jnp.dot(silu(cond_emb), p['mlpc_w'], precision=HIGH) + p['mlpc_b']
    bias_eff = p['dw_b'] + t_cond + c_cond                              # (B, DIM)
    cond_slab = jnp.zeros((B, C_PAD, 1), f32).at[:, :DIM, 0].set(bias_eff)

    # ---- relayout activations & weights to lane-dense slabs (layout plumbing) ----
    x_slab = jnp.zeros((B, C_PAD, HW), f32).at[:, :DIM, :].set(x_nchw.reshape(B, DIM, HW))

    dww_slab = jnp.zeros((C_PAD, 49), f32).at[:DIM, :].set(p['dw_w'].reshape(49, DIM).T)

    w1p = jnp.zeros((3, 3, C_PAD, DIM_MID), f32).at[:, :, :DIM, :].set(p['conv1_w'])
    w1_mat = w1p.reshape(9 * C_PAD, DIM_MID).T                          # (DIM_MID, 72)
    w2_mat = p['conv2_w'].reshape(9 * DIM_MID, DIM_OUT).T               # (DIM_OUT, 144)
    rw_mat = jnp.zeros((DIM_OUT, C_PAD), f32).at[:, :DIM].set(p['res_w'].T)

    # ---- pack all per-channel vectors into one (80, 1) column slab (8-aligned rows) ----
    pcol = jnp.zeros((80, 1), f32)
    pcol = pcol.at[0:DIM, 0].set(p['gn1_w'].reshape(-1))      # rows  0..7  gn1 weight
    pcol = pcol.at[8:8 + DIM, 0].set(p['gn1_b'].reshape(-1))  # rows  8..15 gn1 bias
    pcol = pcol.at[16:32, 0].set(p['conv1_b'].reshape(-1))    # rows 16..31 conv1 bias
    pcol = pcol.at[32:48, 0].set(p['gn2_w'].reshape(-1))      # rows 32..47 gn2 weight
    pcol = pcol.at[48:64, 0].set(p['gn2_b'].reshape(-1))      # rows 48..63 gn2 bias
    pcol = pcol.at[64:72, 0].set(p['conv2_b'].reshape(-1))    # rows 64..71 conv2 bias
    pcol = pcol.at[72:80, 0].set(p['res_b'].reshape(-1))      # rows 72..79 res bias

    full = lambda shape: pl.BlockSpec(shape, lambda b, _s=shape: (0,) * len(_s))

    grid_spec = pltpu.PrefetchScalarGridSpec(
        num_scalar_prefetch=0,
        grid=(B,),
        in_specs=[
            pl.BlockSpec((1, C_PAD, HW), lambda b: (b, 0, 0)),  # x slab (per batch)
            pl.BlockSpec((1, C_PAD, 1), lambda b: (b, 0, 0)),   # fused bias (per batch)
            full((C_PAD, 49)),                                  # depthwise taps
            full((80, 1)),                                      # packed per-channel params
            full((DIM_MID, 9 * C_PAD)),                         # conv1 as (Cout, 9*Cin)
            full((DIM_OUT, 9 * DIM_MID)),                       # conv2 as (Cout, 9*Cin)
            full((DIM_OUT, C_PAD)),                             # res 1x1 as (Cout, Cin)
        ],
        out_specs=pl.BlockSpec((1, DIM_OUT, HW), lambda b: (b, 0, 0)),
    )

    out = pl.pallas_call(
        convnext_kernel,
        out_shape=jax.ShapeDtypeStruct((B, DIM_OUT, HW), jnp.float32),
        grid_spec=grid_spec,
        compiler_params=pltpu.CompilerParams(dimension_semantics=("parallel",)),
    )(x_slab, cond_slab, dww_slab, pcol, w1_mat, w2_mat, rw_mat)

    return out.reshape(B, DIM_OUT, H, W)            # lane-dense slab -> NCHW


# ---------------- plain-JAX reference (for verification), NHWC ----------------
def reference_forward(x, time_emb, cond_emb, p):
    erf = jax.scipy.special.erf
    gelu = lambda v: 0.5 * v * (1.0 + erf(v * 0.7071067811865475))
    silu = lambda v: v * jax.nn.sigmoid(v)

    def conv(v, w_hwio, b, groups=1, pad=1):
        out = lax.conv_general_dilated(
            v, w_hwio, (1, 1), [(pad, pad), (pad, pad)],
            dimension_numbers=('NHWC', 'HWIO', 'NHWC'),
            feature_group_count=groups, precision=HIGH)
        return out + b.reshape(1, 1, 1, -1)

    def groupnorm(v, wgt, bias):
        mu = jnp.mean(v, axis=(1, 2, 3), keepdims=True)
        var = jnp.mean((v - mu) ** 2, axis=(1, 2, 3), keepdims=True)
        return (v - mu) * lax.rsqrt(var + EPS) * wgt.reshape(1, 1, 1, -1) + bias.reshape(1, 1, 1, -1)

    h = conv(x, p['dw_w'].reshape(7, 7, 1, DIM), p['dw_b'], groups=DIM, pad=3)
    h = h + (jnp.dot(gelu(time_emb), p['mlp_w'], precision=HIGH) + p['mlp_b'])[:, None, None, :]
    h = h + (jnp.dot(silu(cond_emb), p['mlpc_w'], precision=HIGH) + p['mlpc_b'])[:, None, None, :]
    h = groupnorm(h, p['gn1_w'], p['gn1_b'])
    h = conv(h, p['conv1_w'], p['conv1_b'], pad=1)
    h = gelu(h)
    h = groupnorm(h, p['gn2_w'], p['gn2_b'])
    h = conv(h, p['conv2_w'], p['conv2_b'], pad=1)
    res = jnp.einsum('bhwc,co->bhwo', x, p['res_w'], precision=HIGH) + p['res_b'].reshape(1, 1, 1, -1)
    return h + res


def init_params(key):
    ks = jax.random.split(key, 16)
    s = 0.1
    f32 = jnp.float32
    return {
        'dw_w':    jax.random.normal(ks[0],  (7, 7, DIM), f32) * s,
        'dw_b':    jax.random.normal(ks[1],  (1, DIM), f32) * s,
        'mlp_w':   jax.random.normal(ks[2],  (TIME_DIM, DIM), f32) * s,
        'mlp_b':   jax.random.normal(ks[3],  (1, DIM), f32) * s,
        'mlpc_w':  jax.random.normal(ks[4],  (COND_DIM, DIM), f32) * s,
        'mlpc_b':  jax.random.normal(ks[5],  (1, DIM), f32) * s,
        'gn1_w':   1.0 + jax.random.normal(ks[6], (1, DIM), f32) * s,
        'gn1_b':   jax.random.normal(ks[7],  (1, DIM), f32) * s,
        'conv1_w': jax.random.normal(ks[8],  (3, 3, DIM, DIM_MID), f32) * s,
        'conv1_b': jax.random.normal(ks[9],  (1, DIM_MID), f32) * s,
        'gn2_w':   1.0 + jax.random.normal(ks[10], (1, DIM_MID), f32) * s,
        'gn2_b':   jax.random.normal(ks[11], (1, DIM_MID), f32) * s,
        'conv2_w': jax.random.normal(ks[12], (3, 3, DIM_MID, DIM_OUT), f32) * s,
        'conv2_b': jax.random.normal(ks[13], (1, DIM_OUT), f32) * s,
        'res_w':   jax.random.normal(ks[14], (DIM, DIM_OUT), f32) * s,
        'res_b':   jax.random.normal(ks[15], (1, DIM_OUT), f32) * s,
    }


if __name__ == "__main__":
    key = jax.random.PRNGKey(0)
    kx, kt, kc, kp = jax.random.split(key, 4)
    # x in PyTorch NCHW layout: (B, DIM, H, W) = (2, 4, 16, 16)
    x = jax.random.normal(kx, (B, DIM, H, W), jnp.float32)
    time_emb = jax.random.normal(kt, (B, TIME_DIM), jnp.float32)
    cond_emb = jax.random.normal(kc, (B, COND_DIM), jnp.float32)
    params = init_params(kp)

    out = convnext_block(x, time_emb, cond_emb, params)
    out = jax.block_until_ready(out)

    ref_nhwc = reference_forward(jnp.transpose(x, (0, 2, 3, 1)), time_emb, cond_emb, params)
    ref = jnp.transpose(ref_nhwc, (0, 3, 1, 2))
    err = float(jnp.max(jnp.abs(out - ref)))
    assert out.shape == (B, DIM_OUT, H, W), out.shape
    assert err < 2e-3, f"max abs err vs reference: {err}"
    print("KERNEL_OK")
</pallas_src>

<mosaic_0001>
module attributes {stable_mosaic.version = 11 : i64} {
  func.func @convnext_kernel(%arg0: i32, %arg1: memref<1x8x256xf32, #tpu.memory_space<vmem>>, %arg2: memref<1x8x1xf32, #tpu.memory_space<vmem>>, %arg3: memref<8x49xf32, #tpu.memory_space<vmem>>, %arg4: memref<80x1xf32, #tpu.memory_space<vmem>>, %arg5: memref<16x72xf32, #tpu.memory_space<vmem>>, %arg6: memref<8x144xf32, #tpu.memory_space<vmem>>, %arg7: memref<8x8xf32, #tpu.memory_space<vmem>>, %arg8: memref<1x8x256xf32, #tpu.memory_space<vmem>>) attributes {dimension_semantics = [#tpu.dimension_semantics<parallel>], iteration_bounds = array<i64: 2>, scalar_prefetch = 0 : i64, scratch_operands = 0 : i64, tpu.core_type = #tpu.core_type<tc>, window_params = [{transform_indices = @transform_0, window_bounds = array<i64: 1, 8, 256>}, {transform_indices = @transform_1, window_bounds = array<i64: 1, 8, 1>}, {pipeline_mode = #tpu.pipeline_mode<synchronous>, transform_indices = @transform_2, window_bounds = array<i64: 8, 49>}, {pipeline_mode = #tpu.pipeline_mode<synchronous>, transform_indices = @transform_3, window_bounds = array<i64: 80, 1>}, {pipeline_mode = #tpu.pipeline_mode<synchronous>, transform_indices = @transform_4, window_bounds = array<i64: 16, 72>}, {pipeline_mode = #tpu.pipeline_mode<synchronous>, transform_indices = @transform_5, window_bounds = array<i64: 8, 144>}, {pipeline_mode = #tpu.pipeline_mode<synchronous>, transform_indices = @transform_6, window_bounds = array<i64: 8, 8>}, {transform_indices = @transform_7, window_bounds = array<i64: 1, 8, 256>}]} {
    %c0 = arith.constant 0 : index
    %c0_0 = arith.constant 0 : index
    %c0_1 = arith.constant 0 : index
    %0 = vector.load %arg1[%c0, %c0_0, %c0_1] : memref<1x8x256xf32, #tpu.memory_space<vmem>>, vector<1x8x256xf32>
    %1 = vector.shape_cast %0 : vector<1x8x256xf32> to vector<8x256xf32>
    %c0_2 = arith.constant 0 : index
    %c0_3 = arith.constant 0 : index
    %2 = vector.load %arg4[%c0_2, %c0_3] : memref<80x1xf32, #tpu.memory_space<vmem>>, vector<80x1xf32>
    %3 = tpu.iota {dimensions = array<i32: 1>} : vector<1x256xi32>
    %c15_i32 = arith.constant 15 : i32
    %4 = vector.broadcast %c15_i32 : i32 to vector<1x256xi32>
    %5 = arith.andi %3, %4 : vector<1x256xi32>
    %c0_4 = arith.constant 0 : index
    %c0_5 = arith.constant 0 : index
    %6 = vector.load %arg3[%c0_4, %c0_5] : memref<8x49xf32, #tpu.memory_space<vmem>>, vector<8x49xf32>
    %cst = arith.constant 0.000000e+00 : f32
    %7 = vector.broadcast %cst : f32 to vector<8x256xf32>
    %c51_i32 = arith.constant 51 : i32
    %8 = tpu.dynamic_rotate %1 by %c51_i32 dim 1 : vector<8x256xf32>, i32 -> vector<8x256xf32>
    %c48_i32 = arith.constant 48 : i32
    %9 = vector.broadcast %c48_i32 : i32 to vector<1x256xi32>
    %10 = arith.cmpi sge, %3, %9 : vector<1x256xi32>
    %c3_i32 = arith.constant 3 : i32
    %11 = vector.broadcast %c3_i32 : i32 to vector<1x256xi32>
    %12 = arith.cmpi sge, %5, %11 : vector<1x256xi32>
    %13 = arith.andi %10, %12 : vector<1x256xi1>
    %cst_6 = arith.constant 0.000000e+00 : f32
    %14 = vector.shape_cast %13 : vector<1x256xi1> to vector<1x256xi1>
    %15 = vector.broadcast %14 : vector<1x256xi1> to vector<8x256xi1>
    %16 = vector.broadcast %cst_6 : f32 to vector<8x256xf32>
    %17 = arith.select %15, %8, %16 : vector<8x256xi1>, vector<8x256xf32>
    %18 = vector.extract_strided_slice %6 {offsets = [0, 0], sizes = [8, 1], strides = [1, 1]} : vector<8x49xf32> to vector<8x1xf32>
    %19 = vector.broadcast %18 : vector<8x1xf32> to vector<8x256xf32>
    %20 = arith.mulf %17, %19 : vector<8x256xf32>
    %21 = arith.addf %7, %20 : vector<8x256xf32>
    %c50_i32 = arith.constant 50 : i32
    %22 = tpu.dynamic_rotate %1 by %c50_i32 dim 1 : vector<8x256xf32>, i32 -> vector<8x256xf32>
    %c48_i32_7 = arith.constant 48 : i32
    %23 = vector.broadcast %c48_i32_7 : i32 to vector<1x256xi32>
    %24 = arith.cmpi sge, %3, %23 : vector<1x256xi32>
    %c2_i32 = arith.constant 2 : i32
    %25 = vector.broadcast %c2_i32 : i32 to vector<1x256xi32>
    %26 = arith.cmpi sge, %5, %25 : vector<1x256xi32>
    %27 = arith.andi %24, %26 : vector<1x256xi1>
    %cst_8 = arith.constant 0.000000e+00 : f32
    %28 = vector.shape_cast %27 : vector<1x256xi1> to vector<1x256xi1>
    %29 = vector.broadcast %28 : vector<1x256xi1> to vector<8x256xi1>
    %30 = vector.broadcast %cst_8 : f32 to vector<8x256xf32>
    %31 = arith.select %29, %22, %30 : vector<8x256xi1>, vector<8x256xf32>
    %32 = vector.extract_strided_slice %6 {offsets = [0, 1], sizes = [8, 1], strides = [1, 1]} : vector<8x49xf32> to vector<8x1xf32>
    %33 = vector.broadcast %32 : vector<8x1xf32> to vector<8x256xf32>
    %34 = arith.mulf %31, %33 : vector<8x256xf32>
    %35 = arith.addf %21, %34 : vector<8x256xf32>
    %c49_i32 = arith.constant 49 : i32
    %36 = tpu.dynamic_rotate %1 by %c49_i32 dim 1 : vector<8x256xf32>, i32 -> vector<8x256xf32>
    %c48_i32_9 = arith.constant 48 : i32
    %37 = vector.broadcast %c48_i32_9 : i32 to vector<1x256xi32>
    %38 = arith.cmpi sge, %3, %37 : vector<1x256xi32>
    %c1_i32 = arith.constant 1 : i32
    %39 = vector.broadcast %c1_i32 : i32 to vector<1x256xi32>
    %40 = arith.cmpi sge, %5, %39 : vector<1x256xi32>
    %41 = arith.andi %38, %40 : vector<1x256xi1>
    %cst_10 = arith.constant 0.000000e+00 : f32
    %42 = vector.shape_cast %41 : vector<1x256xi1> to vector<1x256xi1>
    %43 = vector.broadcast %42 : vector<1x256xi1> to vector<8x256xi1>
    %44 = vector.broadcast %cst_10 : f32 to vector<8x256xf32>
    %45 = arith.select %43, %36, %44 : vector<8x256xi1>, vector<8x256xf32>
    %46 = vector.extract_strided_slice %6 {offsets = [0, 2], sizes = [8, 1], strides = [1, 1]} : vector<8x49xf32> to vector<8x1xf32>
    %47 = vector.broadcast %46 : vector<8x1xf32> to vector<8x256xf32>
    %48 = arith.mulf %45, %47 : vector<8x256xf32>
    %49 = arith.addf %35, %48 : vector<8x256xf32>
    %c48_i32_11 = arith.constant 48 : i32
    %50 = tpu.dynamic_rotate %1 by %c48_i32_11 dim 1 : vector<8x256xf32>, i32 -> vector<8x256xf32>
    %c48_i32_12 = arith.constant 48 : i32
    %51 = vector.broadcast %c48_i32_12 : i32 to vector<1x256xi32>
    %52 = arith.cmpi sge, %3, %51 : vector<1x256xi32>
    %cst_13 = arith.constant 0.000000e+00 : f32
    %53 = vector.shape_cast %52 : vector<1x256xi1> to vector<1x256xi1>
    %54 = vector.broadcast %53 : vector<1x256xi1> to vector<8x256xi1>
    %55 = vector.broadcast %cst_13 : f32 to vector<8x256xf32>
    %56 = arith.select %54, %50, %55 : vector<8x256xi1>, vector<8x256xf32>
    %57 = vector.extract_strided_slice %6 {offsets = [0, 3], sizes = [8, 1], strides = [1, 1]} : vector<8x49xf32> to vector<8x1xf32>
    %58 = vector.broadcast %57 : vector<8x1xf32> to vector<8x256xf32>
    %59 = arith.mulf %56, %58 : vector<8x256xf32>
    %60 = arith.addf %49, %59 : vector<8x256xf32>
    %c47_i32 = arith.constant 47 : i32
    %61 = tpu.dynamic_rotate %1 by %c47_i32 dim 1 : vector<8x256xf32>, i32 -> vector<8x256xf32>
    %c48_i32_14 = arith.constant 48 : i32
    %62 = vector.broadcast %c48_i32_14 : i32 to vector<1x256xi32>
    %63 = arith.cmpi sge, %3, %62 : vector<1x256xi32>
    %c15_i32_15 = arith.constant 15 : i32
    %64 = vector.broadcast %c15_i32_15 : i32 to vector<1x256xi32>
    %65 = arith.cmpi slt, %5, %64 : vector<1x256xi32>
    %66 = arith.andi %63, %65 : vector<1x256xi1>
    %cst_16 = arith.constant 0.000000e+00 : f32
    %67 = vector.shape_cast %66 : vector<1x256xi1> to vector<1x256xi1>
    %68 = vector.broadcast %67 : vector<1x256xi1> to vector<8x256xi1>
    %69 = vector.broadcast %cst_16 : f32 to vector<8x256xf32>
    %70 = arith.select %68, %61, %69 : vector<8x256xi1>, vector<8x256xf32>
    %71 = vector.extract_strided_slice %6 {offsets = [0, 4], sizes = [8, 1], strides = [1, 1]} : vector<8x49xf32> to vector<8x1xf32>
    %72 = vector.broadcast %71 : vector<8x1xf32> to vector<8x256xf32>
    %73 = arith.mulf %70, %72 : vector<8x256xf32>
    %74 = arith.addf %60, %73 : vector<8x256xf32>
    %c46_i32 = arith.constant 46 : i32
    %75 = tpu.dynamic_rotate %1 by %c46_i32 dim 1 : vector<8x256xf32>, i32 -> vector<8x256xf32>
    %c48_i32_17 = arith.constant 48 : i32
    %76 = vector.broadcast %c48_i32_17 : i32 to vector<1x256xi32>
    %77 = arith.cmpi sge, %3, %76 : vector<1x256xi32>
    %c14_i32 = arith.constant 14 : i32
    %78 = vector.broadcast %c14_i32 : i32 to vector<1x256xi32>
    %79 = arith.cmpi slt, %5, %78 : vector<1x256xi32>
    %80 = arith.andi %77, %79 : vector<1x256xi1>
    %cst_18 = arith.constant 0.000000e+00 : f32
    %81 = vector.shape_cast %80 : vector<1x256xi1> to vector<1x256xi1>
    %82 = vector.broadcast %81 : vector<1x256xi1> to vector<8x256xi1>
    %83 = vector.broadcast %cst_18 : f32 to vector<8x256xf32>
    %84 = arith.select %82, %75, %83 : vector<8x256xi1>, vector<8x256xf32>
    %85 = vector.extract_strided_slice %6 {offsets = [0, 5], sizes = [8, 1], strides = [1, 1]} : vector<8x49xf32> to vector<8x1xf32>
    %86 = vector.broadcast %85 : vector<8x1xf32> to vector<8x256xf32>
    %87 = arith.mulf %84, %86 : vector<8x256xf32>
    %88 = arith.addf %74, %87 : vector<8x256xf32>
    %c45_i32 = arith.constant 45 : i32
    %89 = tpu.dynamic_rotate %1 by %c45_i32 dim 1 : vector<8x256xf32>, i32 -> vector<8x256xf32>
    %c48_i32_19 = arith.constant 48 : i32
    %90 = vector.broadcast %c48_i32_19 : i32 to vector<1x256xi32>
    %91 = arith.cmpi sge, %3, %90 : vector<1x256xi32>
    %c13_i32 = arith.constant 13 : i32
    %92 = vector.broadcast %c13_i32 : i32 to vector<1x256xi32>
    %93 = arith.cmpi slt, %5, %92 : vector<1x256xi32>
    %94 = arith.andi %91, %93 : vector<1x256xi1>
    %cst_20 = arith.constant 0.000000e+00 : f32
    %95 = vector.shape_cast %94 : vector<1x256xi1> to vector<1x256xi1>
    %96 = vector.broadcast %95 : vector<1x256xi1> to vector<8x256xi1>
    %97 = vector.broadcast %cst_20 : f32 to vector<8x256xf32>
    %98 = arith.select %96, %89, %97 : vector<8x256xi1>, vector<8x256xf32>
    %99 = vector.extract_strided_slice %6 {offsets = [0, 6], sizes = [8, 1], strides = [1, 1]} : vector<8x49xf32> to vector<8x1xf32>
    %100 = vector.broadcast %99 : vector<8x1xf32> to vector<8x256xf32>
    %101 = arith.mulf %98, %100 : vector<8x256xf32>
    %102 = arith.addf %88, %101 : vector<8x256xf32>
    %c35_i32 = arith.constant 35 : i32
    %103 = tpu.dynamic_rotate %1 by %c35_i32 dim 1 : vector<8x256xf32>, i32 -> vector<8x256xf32>
    %c32_i32 = arith.constant 32 : i32
    %104 = vector.broadcast %c32_i32 : i32 to vector<1x256xi32>
    %105 = arith.cmpi sge, %3, %104 : vector<1x256xi32>
    %c3_i32_21 = arith.constant 3 : i32
    %106 = vector.broadcast %c3_i32_21 : i32 to vector<1x256xi32>
    %107 = arith.cmpi sge, %5, %106 : vector<1x256xi32>
    %108 = arith.andi %105, %107 : vector<1x256xi1>
    %cst_22 = arith.constant 0.000000e+00 : f32
    %109 = vector.shape_cast %108 : vector<1x256xi1> to vector<1x256xi1>
    %110 = vector.broadcast %109 : vector<1x256xi1> to vector<8x256xi1>
    %111 = vector.broadcast %cst_22 : f32 to vector<8x256xf32>
    %112 = arith.select %110, %103, %111 : vector<8x256xi1>, vector<8x256xf32>
    %113 = vector.extract_strided_slice %6 {offsets = [0, 7], sizes = [8, 1], strides = [1, 1]} : vector<8x49xf32> to vector<8x1xf32>
    %114 = vector.broadcast %113 : vector<8x1xf32> to vector<8x256xf32>
    %115 = arith.mulf %112, %114 : vector<8x256xf32>
    %116 = arith.addf %102, %115 : vector<8x256xf32>
    %c34_i32 = arith.constant 34 : i32
    %117 = tpu.dynamic_rotate %1 by %c34_i32 dim 1 : vector<8x256xf32>, i32 -> vector<8x256xf32>
    %c32_i32_23 = arith.constant 32 : i32
    %118 = vector.broadcast %c32_i32_23 : i32 to vector<1x256xi32>
    %119 = arith.cmpi sge, %3, %118 : vector<1x256xi32>
    %c2_i32_24 = arith.constant 2 : i32
    %120 = vector.broadcast %c2_i32_24 : i32 to vector<1x256xi32>
    %121 = arith.cmpi sge, %5, %120 : vector<1x256xi32>
    %122 = arith.andi %119, %121 : vector<1x256xi1>
    %cst_25 = arith.constant 0.000000e+00 : f32
    %123 = vector.shape_cast %122 : vector<1x256xi1> to vector<1x256xi1>
    %124 = vector.broadcast %123 : vector<1x256xi1> to vector<8x256xi1>
    %125 = vector.broadcast %cst_25 : f32 to vector<8x256xf32>
    %126 = arith.select %124, %117, %125 : vector<8x256xi1>, vector<8x256xf32>
    %127 = vector.extract_strided_slice %6 {offsets = [0, 8], sizes = [8, 1], strides = [1, 1]} : vector<8x49xf32> to vector<8x1xf32>
    %128 = vector.broadcast %127 : vector<8x1xf32> to vector<8x256xf32>
    %129 = arith.mulf %126, %128 : vector<8x256xf32>
    %130 = arith.addf %116, %129 : vector<8x256xf32>
    %c33_i32 = arith.constant 33 : i32
    %131 = tpu.dynamic_rotate %1 by %c33_i32 dim 1 : vector<8x256xf32>, i32 -> vector<8x256xf32>
    %c32_i32_26 = arith.constant 32 : i32
    %132 = vector.broadcast %c32_i32_26 : i32 to vector<1x256xi32>
    %133 = arith.cmpi sge, %3, %132 : vector<1x256xi32>
    %c1_i32_27 = arith.constant 1 : i32
    %134 = vector.broadcast %c1_i32_27 : i32 to vector<1x256xi32>
    %135 = arith.cmpi sge, %5, %134 : vector<1x256xi32>
    %136 = arith.andi %133, %135 : vector<1x256xi1>
    %cst_28 = arith.constant 0.000000e+00 : f32
    %137 = vector.shape_cast %136 : vector<1x256xi1> to vector<1x256xi1>
    %138 = vector.broadcast %137 : vector<1x256xi1> to vector<8x256xi1>
    %139 = vector.broadcast %cst_28 : f32 to vector<8x256xf32>
    %140 = arith.select %138, %131, %139 : vector<8x256xi1>, vector<8x256xf32>
    %141 = vector.extract_strided_slice %6 {offsets = [0, 9], sizes = [8, 1], strides = [1, 1]} : vector<8x49xf32> to vector<8x1xf32>
    %142 = vector.broadcast %141 : vector<8x1xf32> to vector<8x256xf32>
    %143 = arith.mulf %140, %142 : vector<8x256xf32>
    %144 = arith.addf %130, %143 : vector<8x256xf32>
    %c32_i32_29 = arith.constant 32 : i32
    %145 = tpu.dynamic_rotate %1 by %c32_i32_29 dim 1 : vector<8x256xf32>, i32 -> vector<8x256xf32>
    %c32_i32_30 = arith.constant 32 : i32
    %146 = vector.broadcast %c32_i32_30 : i32 to vector<1x256xi32>
    %147 = arith.cmpi sge, %3, %146 : vector<1x256xi32>
    %cst_31 = arith.constant 0.000000e+00 : f32
    %148 = vector.shape_cast %147 : vector<1x256xi1> to vector<1x256xi1>
    %149 = vector.broadcast %148 : vector<1x256xi1> to vector<8x256xi1>
    %150 = vector.broadcast %cst_31 : f32 to vector<8x256xf32>
    %151 = arith.select %149, %145, %150 : vector<8x256xi1>, vector<8x256xf32>
    %152 = vector.extract_strided_slice %6 {offsets = [0, 10], sizes = [8, 1], strides = [1, 1]} : vector<8x49xf32> to vector<8x1xf32>
    %153 = vector.broadcast %152 : vector<8x1xf32> to vector<8x256xf32>
    %154 = arith.mulf %151, %153 : vector<8x256xf32>
    %155 = arith.addf %144, %154 : vector<8x256xf32>
    %c31_i32 = arith.constant 31 : i32
    %156 = tpu.dynamic_rotate %1 by %c31_i32 dim 1 : vector<8x256xf32>, i32 -> vector<8x256xf32>
    %c32_i32_32 = arith.constant 32 : i32
    %157 = vector.broadcast %c32_i32_32 : i32 to vector<1x256xi32>
    %158 = arith.cmpi sge, %3, %157 : vector<1x256xi32>
    %c15_i32_33 = arith.constant 15 : i32
    %159 = vector.broadcast %c15_i32_33 : i32 to vector<1x256xi32>
    %160 = arith.cmpi slt, %5, %159 : vector<1x256xi32>
    %161 = arith.andi %158, %160 : vector<1x256xi1>
    %cst_34 = arith.constant 0.000000e+00 : f32
    %162 = vector.shape_cast %161 : vector<1x256xi1> to vector<1x256xi1>
    %163 = vector.broadcast %162 : vector<1x256xi1> to vector<8x256xi1>
    %164 = vector.broadcast %cst_34 : f32 to vector<8x256xf32>
    %165 = arith.select %163, %156, %164 : vector<8x256xi1>, vector<8x256xf32>
    %166 = vector.extract_strided_slice %6 {offsets = [0, 11], sizes = [8, 1], strides = [1, 1]} : vector<8x49xf32> to vector<8x1xf32>
    %167 = vector.broadcast %166 : vector<8x1xf32> to vector<8x256xf32>
    %168 = arith.mulf %165, %167 : vector<8x256xf32>
    %169 = arith.addf %155, %168 : vector<8x256xf32>
    %c30_i32 = arith.constant 30 : i32
    %170 = tpu.dynamic_rotate %1 by %c30_i32 dim 1 : vector<8x256xf32>, i32 -> vector<8x256xf32>
    %c32_i32_35 = arith.constant 32 : i32
    %171 = vector.broadcast %c32_i32_35 : i32 to vector<1x256xi32>
    %172 = arith.cmpi sge, %3, %171 : vector<1x256xi32>
    %c14_i32_36 = arith.constant 14 : i32
    %173 = vector.broadcast %c14_i32_36 : i32 to vector<1x256xi32>
    %174 = arith.cmpi slt, %5, %173 : vector<1x256xi32>
    %175 = arith.andi %172, %174 : vector<1x256xi1>
    %cst_37 = arith.constant 0.000000e+00 : f32
    %176 = vector.shape_cast %175 : vector<1x256xi1> to vector<1x256xi1>
    %177 = vector.broadcast %176 : vector<1x256xi1> to vector<8x256xi1>
    %178 = vector.broadcast %cst_37 : f32 to vector<8x256xf32>
    %179 = arith.select %177, %170, %178 : vector<8x256xi1>, vector<8x256xf32>
    %180 = vector.extract_strided_slice %6 {offsets = [0, 12], sizes = [8, 1], strides = [1, 1]} : vector<8x49xf32> to vector<8x1xf32>
    %181 = vector.broadcast %180 : vector<8x1xf32> to vector<8x256xf32>
    %182 = arith.mulf %179, %181 : vector<8x256xf32>
    %183 = arith.addf %169, %182 : vector<8x256xf32>
    %c29_i32 = arith.constant 29 : i32
    %184 = tpu.dynamic_rotate %1 by %c29_i32 dim 1 : vector<8x256xf32>, i32 -> vector<8x256xf32>
    %c32_i32_38 = arith.constant 32 : i32
    %185 = vector.broadcast %c32_i32_38 : i32 to vector<1x256xi32>
    %186 = arith.cmpi sge, %3, %185 : vector<1x256xi32>
    %c13_i32_39 = arith.constant 13 : i32
    %187 = vector.broadcast %c13_i32_39 : i32 to vector<1x256xi32>
    %188 = arith.cmpi slt, %5, %187 : vector<1x256xi32>
    %189 = arith.andi %186, %188 : vector<1x256xi1>
    %cst_40 = arith.constant 0.000000e+00 : f32
    %190 = vector.shape_cast %189 : vector<1x256xi1> to vector<1x256xi1>
    %191 = vector.broadcast %190 : vector<1x256xi1> to vector<8x256xi1>
    %192 = vector.broadcast %cst_40 : f32 to vector<8x256xf32>
    %193 = arith.select %191, %184, %192 : vector<8x256xi1>, vector<8x256xf32>
    %194 = vector.extract_strided_slice %6 {offsets = [0, 13], sizes = [8, 1], strides = [1, 1]} : vector<8x49xf32> to vector<8x1xf32>
    %195 = vector.broadcast %194 : vector<8x1xf32> to vector<8x256xf32>
    %196 = arith.mulf %193, %195 : vector<8x256xf32>
    %197 = arith.addf %183, %196 : vector<8x256xf32>
    %c19_i32 = arith.constant 19 : i32
    %198 = tpu.dynamic_rotate %1 by %c19_i32 dim 1 : vector<8x256xf32>, i32 -> vector<8x256xf32>
    %c16_i32 = arith.constant 16 : i32
    %199 = vector.broadcast %c16_i32 : i32 to vector<1x256xi32>
    %200 = arith.cmpi sge, %3, %199 : vector<1x256xi32>
    %c3_i32_41 = arith.constant 3 : i32
    %201 = vector.broadcast %c3_i32_41 : i32 to vector<1x256xi32>
    %202 = arith.cmpi sge, %5, %201 : vector<1x256xi32>
    %203 = arith.andi %200, %202 : vector<1x256xi1>
    %cst_42 = arith.constant 0.000000e+00 : f32
    %204 = vector.shape_cast %203 : vector<1x256xi1> to vector<1x256xi1>
    %205 = vector.broadcast %204 : vector<1x256xi1> to vector<8x256xi1>
    %206 = vector.broadcast %cst_42 : f32 to vector<8x256xf32>
    %207 = arith.select %205, %198, %206 : vector<8x256xi1>, vector<8x256xf32>
    %208 = vector.extract_strided_slice %6 {offsets = [0, 14], sizes = [8, 1], strides = [1, 1]} : vector<8x49xf32> to vector<8x1xf32>
    %209 = vector.broadcast %208 : vector<8x1xf32> to vector<8x256xf32>
    %210 = arith.mulf %207, %209 : vector<8x256xf32>
    %211 = arith.addf %197, %210 : vector<8x256xf32>
    %c18_i32 = arith.constant 18 : i32
    %212 = tpu.dynamic_rotate %1 by %c18_i32 dim 1 : vector<8x256xf32>, i32 -> vector<8x256xf32>
    %c16_i32_43 = arith.constant 16 : i32
    %213 = vector.broadcast %c16_i32_43 : i32 to vector<1x256xi32>
    %214 = arith.cmpi sge, %3, %213 : vector<1x256xi32>
    %c2_i32_44 = arith.constant 2 : i32
    %215 = vector.broadcast %c2_i32_44 : i32 to vector<1x256xi32>
    %216 = arith.cmpi sge, %5, %215 : vector<1x256xi32>
    %217 = arith.andi %214, %216 : vector<1x256xi1>
    %cst_45 = arith.constant 0.000000e+00 : f32
    %218 = vector.shape_cast %217 : vector<1x256xi1> to vector<1x256xi1>
    %219 = vector.broadcast %218 : vector<1x256xi1> to vector<8x256xi1>
    %220 = vector.broadcast %cst_45 : f32 to vector<8x256xf32>
    %221 = arith.select %219, %212, %220 : vector<8x256xi1>, vector<8x256xf32>
    %222 = vector.extract_strided_slice %6 {offsets = [0, 15], sizes = [8, 1], strides = [1, 1]} : vector<8x49xf32> to vector<8x1xf32>
    %223 = vector.broadcast %222 : vector<8x1xf32> to vector<8x256xf32>
    %224 = arith.mulf %221, %223 : vector<8x256xf32>
    %225 = arith.addf %211, %224 : vector<8x256xf32>
    %c17_i32 = arith.constant 17 : i32
    %226 = tpu.dynamic_rotate %1 by %c17_i32 dim 1 : vector<8x256xf32>, i32 -> vector<8x256xf32>
    %c16_i32_46 = arith.constant 16 : i32
    %227 = vector.broadcast %c16_i32_46 : i32 to vector<1x256xi32>
    %228 = arith.cmpi sge, %3, %227 : vector<1x256xi32>
    %c1_i32_47 = arith.constant 1 : i32
    %229 = vector.broadcast %c1_i32_47 : i32 to vector<1x256xi32>
    %230 = arith.cmpi sge, %5, %229 : vector<1x256xi32>
    %231 = arith.andi %228, %230 : vector<1x256xi1>
    %cst_48 = arith.constant 0.000000e+00 : f32
    %232 = vector.shape_cast %231 : vector<1x256xi1> to vector<1x256xi1>
    %233 = vector.broadcast %232 : vector<1x256xi1> to vector<8x256xi1>
    %234 = vector.broadcast %cst_48 : f32 to vector<8x256xf32>
    %235 = arith.select %233, %226, %234 : vector<8x256xi1>, vector<8x256xf32>
    %236 = vector.extract_strided_slice %6 {offsets = [0, 16], sizes = [8, 1], strides = [1, 1]} : vector<8x49xf32> to vector<8x1xf32>
    %237 = vector.broadcast %236 : vector<8x1xf32> to vector<8x256xf32>
    %238 = arith.mulf %235, %237 : vector<8x256xf32>
    %239 = arith.addf %225, %238 : vector<8x256xf32>
    %c16_i32_49 = arith.constant 16 : i32
    %240 = tpu.dynamic_rotate %1 by %c16_i32_49 dim 1 : vector<8x256xf32>, i32 -> vector<8x256xf32>
    %c16_i32_50 = arith.constant 16 : i32
    %241 = vector.broadcast %c16_i32_50 : i32 to vector<1x256xi32>
    %242 = arith.cmpi sge, %3, %241 : vector<1x256xi32>
    %cst_51 = arith.constant 0.000000e+00 : f32
    %243 = vector.shape_cast %242 : vector<1x256xi1> to vector<1x256xi1>
    %244 = vector.broadcast %243 : vector<1x256xi1> to vector<8x256xi1>
    %245 = vector.broadcast %cst_51 : f32 to vector<8x256xf32>
    %246 = arith.select %244, %240, %245 : vector<8x256xi1>, vector<8x256xf32>
    %247 = vector.extract_strided_slice %6 {offsets = [0, 17], sizes = [8, 1], strides = [1, 1]} : vector<8x49xf32> to vector<8x1xf32>
    %248 = vector.broadcast %247 : vector<8x1xf32> to vector<8x256xf32>
    %249 = arith.mulf %246, %248 : vector<8x256xf32>
    %250 = arith.addf %239, %249 : vector<8x256xf32>
    %c15_i32_52 = arith.constant 15 : i32
    %251 = tpu.dynamic_rotate %1 by %c15_i32_52 dim 1 : vector<8x256xf32>, i32 -> vector<8x256xf32>
    %c16_i32_53 = arith.constant 16 : i32
    %252 = vector.broadcast %c16_i32_53 : i32 to vector<1x256xi32>
    %253 = arith.cmpi sge, %3, %252 : vector<1x256xi32>
    %c15_i32_54 = arith.constant 15 : i32
    %254 = vector.broadcast %c15_i32_54 : i32 to vector<1x256xi32>
    %255 = arith.cmpi slt, %5, %254 : vector<1x256xi32>
    %256 = arith.andi %253, %255 : vector<1x256xi1>
    %cst_55 = arith.constant 0.000000e+00 : f32
    %257 = vector.shape_cast %256 : vector<1x256xi1> to vector<1x256xi1>
    %258 = vector.broadcast %257 : vector<1x256xi1> to vector<8x256xi1>
    %259 = vector.broadcast %cst_55 : f32 to vector<8x256xf32>
    %260 = arith.select %258, %251, %259 : vector<8x256xi1>, vector<8x256xf32>
    %261 = vector.extract_strided_slice %6 {offsets = [0, 18], sizes = [8, 1], strides = [1, 1]} : vector<8x49xf32> to vector<8x1xf32>
    %262 = vector.broadcast %261 : vector<8x1xf32> to vector<8x256xf32>
    %263 = arith.mulf %260, %262 : vector<8x256xf32>
    %264 = arith.addf %250, %263 : vector<8x256xf32>
    %c14_i32_56 = arith.constant 14 : i32
    %265 = tpu.dynamic_rotate %1 by %c14_i32_56 dim 1 : vector<8x256xf32>, i32 -> vector<8x256xf32>
    %c16_i32_57 = arith.constant 16 : i32
    %266 = vector.broadcast %c16_i32_57 : i32 to vector<1x256xi32>
    %267 = arith.cmpi sge, %3, %266 : vector<1x256xi32>
    %c14_i32_58 = arith.constant 14 : i32
    %268 = vector.broadcast %c14_i32_58 : i32 to vector<1x256xi32>
    %269 = arith.cmpi slt, %5, %268 : vector<1x256xi32>
    %270 = arith.andi %267, %269 : vector<1x256xi1>
    %cst_59 = arith.constant 0.000000e+00 : f32
    %271 = vector.shape_cast %270 : vector<1x256xi1> to vector<1x256xi1>
    %272 = vector.broadcast %271 : vector<1x256xi1> to vector<8x256xi1>
    %273 = vector.broadcast %cst_59 : f32 to vector<8x256xf32>
    %274 = arith.select %272, %265, %273 : vector<8x256xi1>, vector<8x256xf32>
    %275 = vector.extract_strided_slice %6 {offsets = [0, 19], sizes = [8, 1], strides = [1, 1]} : vector<8x49xf32> to vector<8x1xf32>
    %276 = vector.broadcast %275 : vector<8x1xf32> to vector<8x256xf32>
    %277 = arith.mulf %274, %276 : vector<8x256xf32>
    %278 = arith.addf %264, %277 : vector<8x256xf32>
    %c13_i32_60 = arith.constant 13 : i32
    %279 = tpu.dynamic_rotate %1 by %c13_i32_60 dim 1 : vector<8x256xf32>, i32 -> vector<8x256xf32>
    %c16_i32_61 = arith.constant 16 : i32
    %280 = vector.broadcast %c16_i32_61 : i32 to vector<1x256xi32>
    %281 = arith.cmpi sge, %3, %280 : vector<1x256xi32>
    %c13_i32_62 = arith.constant 13 : i32
    %282 = vector.broadcast %c13_i32_62 : i32 to vector<1x256xi32>
    %283 = arith.cmpi slt, %5, %282 : vector<1x256xi32>
    %284 = arith.andi %281, %283 : vector<1x256xi1>
    %cst_63 = arith.constant 0.000000e+00 : f32
    %285 = vector.shape_cast %284 : vector<1x256xi1> to vector<1x256xi1>
    %286 = vector.broadcast %285 : vector<1x256xi1> to vector<8x256xi1>
    %287 = vector.broadcast %cst_63 : f32 to vector<8x256xf32>
    %288 = arith.select %286, %279, %287 : vector<8x256xi1>, vector<8x256xf32>
    %289 = vector.extract_strided_slice %6 {offsets = [0, 20], sizes = [8, 1], strides = [1, 1]} : vector<8x49xf32> to vector<8x1xf32>
    %290 = vector.broadcast %289 : vector<8x1xf32> to vector<8x256xf32>
    %291 = arith.mulf %288, %290 : vector<8x256xf32>
    %292 = arith.addf %278, %291 : vector<8x256xf32>
    %c3_i32_64 = arith.constant 3 : i32
    %293 = tpu.dynamic_rotate %1 by %c3_i32_64 dim 1 : vector<8x256xf32>, i32 -> vector<8x256xf32>
    %c3_i32_65 = arith.constant 3 : i32
    %294 = vector.broadcast %c3_i32_65 : i32 to vector<1x256xi32>
    %295 = arith.cmpi sge, %5, %294 : vector<1x256xi32>
    %cst_66 = arith.constant 0.000000e+00 : f32
    %296 = vector.shape_cast %295 : vector<1x256xi1> to vector<1x256xi1>
    %297 = vector.broadcast %296 : vector<1x256xi1> to vector<8x256xi1>
    %298 = vector.broadcast %cst_66 : f32 to vector<8x256xf32>
    %299 = arith.select %297, %293, %298 : vector<8x256xi1>, vector<8x256xf32>
    %300 = vector.extract_strided_slice %6 {offsets = [0, 21], sizes = [8, 1], strides = [1, 1]} : vector<8x49xf32> to vector<8x1xf32>
    %301 = vector.broadcast %300 : vector<8x1xf32> to vector<8x256xf32>
    %302 = arith.mulf %299, %301 : vector<8x256xf32>
    %303 = arith.addf %292, %302 : vector<8x256xf32>
    %c2_i32_67 = arith.constant 2 : i32
    %304 = tpu.dynamic_rotate %1 by %c2_i32_67 dim 1 : vector<8x256xf32>, i32 -> vector<8x256xf32>
    %c2_i32_68 = arith.constant 2 : i32
    %305 = vector.broadcast %c2_i32_68 : i32 to vector<1x256xi32>
    %306 = arith.cmpi sge, %5, %305 : vector<1x256xi32>
    %cst_69 = arith.constant 0.000000e+00 : f32
    %307 = vector.shape_cast %306 : vector<1x256xi1> to vector<1x256xi1>
    %308 = vector.broadcast %307 : vector<1x256xi1> to vector<8x256xi1>
    %309 = vector.broadcast %cst_69 : f32 to vector<8x256xf32>
    %310 = arith.select %308, %304, %309 : vector<8x256xi1>, vector<8x256xf32>
    %311 = vector.extract_strided_slice %6 {offsets = [0, 22], sizes = [8, 1], strides = [1, 1]} : vector<8x49xf32> to vector<8x1xf32>
    %312 = vector.broadcast %311 : vector<8x1xf32> to vector<8x256xf32>
    %313 = arith.mulf %310, %312 : vector<8x256xf32>
    %314 = arith.addf %303, %313 : vector<8x256xf32>
    %c1_i32_70 = arith.constant 1 : i32
    %315 = tpu.dynamic_rotate %1 by %c1_i32_70 dim 1 : vector<8x256xf32>, i32 -> vector<8x256xf32>
    %c1_i32_71 = arith.constant 1 : i32
    %316 = vector.broadcast %c1_i32_71 : i32 to vector<1x256xi32>
    %317 = arith.cmpi sge, %5, %316 : vector<1x256xi32>
    %cst_72 = arith.constant 0.000000e+00 : f32
    %318 = vector.shape_cast %317 : vector<1x256xi1> to vector<1x256xi1>
    %319 = vector.broadcast %318 : vector<1x256xi1> to vector<8x256xi1>
    %320 = vector.broadcast %cst_72 : f32 to vector<8x256xf32>
    %321 = arith.select %319, %315, %320 : vector<8x256xi1>, vector<8x256xf32>
    %322 = vector.extract_strided_slice %6 {offsets = [0, 23], sizes = [8, 1], strides = [1, 1]} : vector<8x49xf32> to vector<8x1xf32>
    %323 = vector.broadcast %322 : vector<8x1xf32> to vector<8x256xf32>
    %324 = arith.mulf %321, %323 : vector<8x256xf32>
    %325 = arith.addf %314, %324 : vector<8x256xf32>
    %326 = vector.extract_strided_slice %6 {offsets = [0, 24], sizes = [8, 1], strides = [1, 1]} : vector<8x49xf32> to vector<8x1xf32>
    %327 = vector.broadcast %326 : vector<8x1xf32> to vector<8x256xf32>
    %328 = arith.mulf %1, %327 : vector<8x256xf32>
    %329 = arith.addf %325, %328 : vector<8x256xf32>
    %c255_i32 = arith.constant 255 : i32
    %330 = tpu.dynamic_rotate %1 by %c255_i32 dim 1 : vector<8x256xf32>, i32 -> vector<8x256xf32>
    %c15_i32_73 = arith.constant 15 : i32
    %331 = vector.broadcast %c15_i32_73 : i32 to vector<1x256xi32>
    %332 = arith.cmpi slt, %5, %331 : vector<1x256xi32>
    %cst_74 = arith.constant 0.000000e+00 : f32
    %333 = vector.shape_cast %332 : vector<1x256xi1> to vector<1x256xi1>
    %334 = vector.broadcast %333 : vector<1x256xi1> to vector<8x256xi1>
    %335 = vector.broadcast %cst_74 : f32 to vector<8x256xf32>
    %336 = arith.select %334, %330, %335 : vector<8x256xi1>, vector<8x256xf32>
    %337 = vector.extract_strided_slice %6 {offsets = [0, 25], sizes = [8, 1], strides = [1, 1]} : vector<8x49xf32> to vector<8x1xf32>
    %338 = vector.broadcast %337 : vector<8x1xf32> to vector<8x256xf32>
    %339 = arith.mulf %336, %338 : vector<8x256xf32>
    %340 = arith.addf %329, %339 : vector<8x256xf32>
    %c254_i32 = arith.constant 254 : i32
    %341 = tpu.dynamic_rotate %1 by %c254_i32 dim 1 : vector<8x256xf32>, i32 -> vector<8x256xf32>
    %c14_i32_75 = arith.constant 14 : i32
    %342 = vector.broadcast %c14_i32_75 : i32 to vector<1x256xi32>
    %343 = arith.cmpi slt, %5, %342 : vector<1x256xi32>
    %cst_76 = arith.constant 0.000000e+00 : f32
    %344 = vector.shape_cast %343 : vector<1x256xi1> to vector<1x256xi1>
    %345 = vector.broadcast %344 : vector<1x256xi1> to vector<8x256xi1>
    %346 = vector.broadcast %cst_76 : f32 to vector<8x256xf32>
    %347 = arith.select %345, %341, %346 : vector<8x256xi1>, vector<8x256xf32>
    %348 = vector.extract_strided_slice %6 {offsets = [0, 26], sizes = [8, 1], strides = [1, 1]} : vector<8x49xf32> to vector<8x1xf32>
    %349 = vector.broadcast %348 : vector<8x1xf32> to vector<8x256xf32>
    %350 = arith.mulf %347, %349 : vector<8x256xf32>
    %351 = arith.addf %340, %350 : vector<8x256xf32>
    %c253_i32 = arith.constant 253 : i32
    %352 = tpu.dynamic_rotate %1 by %c253_i32 dim 1 : vector<8x256xf32>, i32 -> vector<8x256xf32>
    %c13_i32_77 = arith.constant 13 : i32
    %353 = vector.broadcast %c13_i32_77 : i32 to vector<1x256xi32>
    %354 = arith.cmpi slt, %5, %353 : vector<1x256xi32>
    %cst_78 = arith.constant 0.000000e+00 : f32
    %355 = vector.shape_cast %354 : vector<1x256xi1> to vector<1x256xi1>
    %356 = vector.broadcast %355 : vector<1x256xi1> to vector<8x256xi1>
    %357 = vector.broadcast %cst_78 : f32 to vector<8x256xf32>
    %358 = arith.select %356, %352, %357 : vector<8x256xi1>, vector<8x256xf32>
    %359 = vector.extract_strided_slice %6 {offsets = [0, 27], sizes = [8, 1], strides = [1, 1]} : vector<8x49xf32> to vector<8x1xf32>
    %360 = vector.broadcast %359 : vector<8x1xf32> to vector<8x256xf32>
    %361 = arith.mulf %358, %360 : vector<8x256xf32>
    %362 = arith.addf %351, %361 : vector<8x256xf32>
    %c243_i32 = arith.constant 243 : i32
    %363 = tpu.dynamic_rotate %1 by %c243_i32 dim 1 : vector<8x256xf32>, i32 -> vector<8x256xf32>
    %c240_i32 = arith.constant 240 : i32
    %364 = vector.broadcast %c240_i32 : i32 to vector<1x256xi32>
    %365 = arith.cmpi slt, %3, %364 : vector<1x256xi32>
    %c3_i32_79 = arith.constant 3 : i32
    %366 = vector.broadcast %c3_i32_79 : i32 to vector<1x256xi32>
    %367 = arith.cmpi sge, %5, %366 : vector<1x256xi32>
    %368 = arith.andi %365, %367 : vector<1x256xi1>
    %cst_80 = arith.constant 0.000000e+00 : f32
    %369 = vector.shape_cast %368 : vector<1x256xi1> to vector<1x256xi1>
    %370 = vector.broadcast %369 : vector<1x256xi1> to vector<8x256xi1>
    %371 = vector.broadcast %cst_80 : f32 to vector<8x256xf32>
    %372 = arith.select %370, %363, %371 : vector<8x256xi1>, vector<8x256xf32>
    %373 = vector.extract_strided_slice %6 {offsets = [0, 28], sizes = [8, 1], strides = [1, 1]} : vector<8x49xf32> to vector<8x1xf32>
    %374 = vector.broadcast %373 : vector<8x1xf32> to vector<8x256xf32>
    %375 = arith.mulf %372, %374 : vector<8x256xf32>
    %376 = arith.addf %362, %375 : vector<8x256xf32>
    %c242_i32 = arith.constant 242 : i32
    %377 = tpu.dynamic_rotate %1 by %c242_i32 dim 1 : vector<8x256xf32>, i32 -> vector<8x256xf32>
    %c240_i32_81 = arith.constant 240 : i32
    %378 = vector.broadcast %c240_i32_81 : i32 to vector<1x256xi32>
    %379 = arith.cmpi slt, %3, %378 : vector<1x256xi32>
    %c2_i32_82 = arith.constant 2 : i32
    %380 = vector.broadcast %c2_i32_82 : i32 to vector<1x256xi32>
    %381 = arith.cmpi sge, %5, %380 : vector<1x256xi32>
    %382 = arith.andi %379, %381 : vector<1x256xi1>
    %cst_83 = arith.constant 0.000000e+00 : f32
    %383 = vector.shape_cast %382 : vector<1x256xi1> to vector<1x256xi1>
    %384 = vector.broadcast %383 : vector<1x256xi1> to vector<8x256xi1>
    %385 = vector.broadcast %cst_83 : f32 to vector<8x256xf32>
    %386 = arith.select %384, %377, %385 : vector<8x256xi1>, vector<8x256xf32>
    %387 = vector.extract_strided_slice %6 {offsets = [0, 29], sizes = [8, 1], strides = [1, 1]} : vector<8x49xf32> to vector<8x1xf32>
    %388 = vector.broadcast %387 : vector<8x1xf32> to vector<8x256xf32>
    %389 = arith.mulf %386, %388 : vector<8x256xf32>
    %390 = arith.addf %376, %389 : vector<8x256xf32>
    %c241_i32 = arith.constant 241 : i32
    %391 = tpu.dynamic_rotate %1 by %c241_i32 dim 1 : vector<8x256xf32>, i32 -> vector<8x256xf32>
    %c240_i32_84 = arith.constant 240 : i32
    %392 = vector.broadcast %c240_i32_84 : i32 to vector<1x256xi32>
    %393 = arith.cmpi slt, %3, %392 : vector<1x256xi32>
    %c1_i32_85 = arith.constant 1 : i32
    %394 = vector.broadcast %c1_i32_85 : i32 to vector<1x256xi32>
    %395 = arith.cmpi sge, %5, %394 : vector<1x256xi32>
    %396 = arith.andi %393, %395 : vector<1x256xi1>
    %cst_86 = arith.constant 0.000000e+00 : f32
    %397 = vector.shape_cast %396 : vector<1x256xi1> to vector<1x256xi1>
    %398 = vector.broadcast %397 : vector<1x256xi1> to vector<8x256xi1>
    %399 = vector.broadcast %cst_86 : f32 to vector<8x256xf32>
    %400 = arith.select %398, %391, %399 : vector<8x256xi1>, vector<8x256xf32>
    %401 = vector.extract_strided_slice %6 {offsets = [0, 30], sizes = [8, 1], strides = [1, 1]} : vector<8x49xf32> to vector<8x1xf32>
    %402 = vector.broadcast %401 : vector<8x1xf32> to vector<8x256xf32>
    %403 = arith.mulf %400, %402 : vector<8x256xf32>
    %404 = arith.addf %390, %403 : vector<8x256xf32>
    %c240_i32_87 = arith.constant 240 : i32
    %405 = tpu.dynamic_rotate %1 by %c240_i32_87 dim 1 : vector<8x256xf32>, i32 -> vector<8x256xf32>
    %c240_i32_88 = arith.constant 240 : i32
    %406 = vector.broadcast %c240_i32_88 : i32 to vector<1x256xi32>
    %407 = arith.cmpi slt, %3, %406 : vector<1x256xi32>
    %cst_89 = arith.constant 0.000000e+00 : f32
    %408 = vector.shape_cast %407 : vector<1x256xi1> to vector<1x256xi1>
    %409 = vector.broadcast %408 : vector<1x256xi1> to vector<8x256xi1>
    %410 = vector.broadcast %cst_89 : f32 to vector<8x256xf32>
    %411 = arith.select %409, %405, %410 : vector<8x256xi1>, vector<8x256xf32>
    %412 = vector.extract_strided_slice %6 {offsets = [0, 31], sizes = [8, 1], strides = [1, 1]} : vector<8x49xf32> to vector<8x1xf32>
    %413 = vector.broadcast %412 : vector<8x1xf32> to vector<8x256xf32>
    %414 = arith.mulf %411, %413 : vector<8x256xf32>
    %415 = arith.addf %404, %414 : vector<8x256xf32>
    %c239_i32 = arith.constant 239 : i32
    %416 = tpu.dynamic_rotate %1 by %c239_i32 dim 1 : vector<8x256xf32>, i32 -> vector<8x256xf32>
    %c240_i32_90 = arith.constant 240 : i32
    %417 = vector.broadcast %c240_i32_90 : i32 to vector<1x256xi32>
    %418 = arith.cmpi slt, %3, %417 : vector<1x256xi32>
    %c15_i32_91 = arith.constant 15 : i32
    %419 = vector.broadcast %c15_i32_91 : i32 to vector<1x256xi32>
    %420 = arith.cmpi slt, %5, %419 : vector<1x256xi32>
    %421 = arith.andi %418, %420 : vector<1x256xi1>
    %cst_92 = arith.constant 0.000000e+00 : f32
    %422 = vector.shape_cast %421 : vector<1x256xi1> to vector<1x256xi1>
    %423 = vector.broadcast %422 : vector<1x256xi1> to vector<8x256xi1>
    %424 = vector.broadcast %cst_92 : f32 to vector<8x256xf32>
    %425 = arith.select %423, %416, %424 : vector<8x256xi1>, vector<8x256xf32>
    %426 = vector.extract_strided_slice %6 {offsets = [0, 32], sizes = [8, 1], strides = [1, 1]} : vector<8x49xf32> to vector<8x1xf32>
    %427 = vector.broadcast %426 : vector<8x1xf32> to vector<8x256xf32>
    %428 = arith.mulf %425, %427 : vector<8x256xf32>
    %429 = arith.addf %415, %428 : vector<8x256xf32>
    %c238_i32 = arith.constant 238 : i32
    %430 = tpu.dynamic_rotate %1 by %c238_i32 dim 1 : vector<8x256xf32>, i32 -> vector<8x256xf32>
    %c240_i32_93 = arith.constant 240 : i32
    %431 = vector.broadcast %c240_i32_93 : i32 to vector<1x256xi32>
    %432 = arith.cmpi slt, %3, %431 : vector<1x256xi32>
    %c14_i32_94 = arith.constant 14 : i32
    %433 = vector.broadcast %c14_i32_94 : i32 to vector<1x256xi32>
    %434 = arith.cmpi slt, %5, %433 : vector<1x256xi32>
    %435 = arith.andi %432, %434 : vector<1x256xi1>
    %cst_95 = arith.constant 0.000000e+00 : f32
    %436 = vector.shape_cast %435 : vector<1x256xi1> to vector<1x256xi1>
    %437 = vector.broadcast %436 : vector<1x256xi1> to vector<8x256xi1>
    %438 = vector.broadcast %cst_95 : f32 to vector<8x256xf32>
    %439 = arith.select %437, %430, %438 : vector<8x256xi1>, vector<8x256xf32>
    %440 = vector.extract_strided_slice %6 {offsets = [0, 33], sizes = [8, 1], strides = [1, 1]} : vector<8x49xf32> to vector<8x1xf32>
    %441 = vector.broadcast %440 : vector<8x1xf32> to vector<8x256xf32>
    %442 = arith.mulf %439, %441 : vector<8x256xf32>
    %443 = arith.addf %429, %442 : vector<8x256xf32>
    %c237_i32 = arith.constant 237 : i32
    %444 = tpu.dynamic_rotate %1 by %c237_i32 dim 1 : vector<8x256xf32>, i32 -> vector<8x256xf32>
    %c240_i32_96 = arith.constant 240 : i32
    %445 = vector.broadcast %c240_i32_96 : i32 to vector<1x256xi32>
    %446 = arith.cmpi slt, %3, %445 : vector<1x256xi32>
    %c13_i32_97 = arith.constant 13 : i32
    %447 = vector.broadcast %c13_i32_97 : i32 to vector<1x256xi32>
    %448 = arith.cmpi slt, %5, %447 : vector<1x256xi32>
    %449 = arith.andi %446, %448 : vector<1x256xi1>
    %cst_98 = arith.constant 0.000000e+00 : f32
    %450 = vector.shape_cast %449 : vector<1x256xi1> to vector<1x256xi1>
    %451 = vector.broadcast %450 : vector<1x256xi1> to vector<8x256xi1>
    %452 = vector.broadcast %cst_98 : f32 to vector<8x256xf32>
    %453 = arith.select %451, %444, %452 : vector<8x256xi1>, vector<8x256xf32>
    %454 = vector.extract_strided_slice %6 {offsets = [0, 34], sizes = [8, 1], strides = [1, 1]} : vector<8x49xf32> to vector<8x1xf32>
    %455 = vector.broadcast %454 : vector<8x1xf32> to vector<8x256xf32>
    %456 = arith.mulf %453, %455 : vector<8x256xf32>
    %457 = arith.addf %443, %456 : vector<8x256xf32>
    %c227_i32 = arith.constant 227 : i32
    %458 = tpu.dynamic_rotate %1 by %c227_i32 dim 1 : vector<8x256xf32>, i32 -> vector<8x256xf32>
    %c224_i32 = arith.constant 224 : i32
    %459 = vector.broadcast %c224_i32 : i32 to vector<1x256xi32>
    %460 = arith.cmpi slt, %3, %459 : vector<1x256xi32>
    %c3_i32_99 = arith.constant 3 : i32
    %461 = vector.broadcast %c3_i32_99 : i32 to vector<1x256xi32>
    %462 = arith.cmpi sge, %5, %461 : vector<1x256xi32>
    %463 = arith.andi %460, %462 : vector<1x256xi1>
    %cst_100 = arith.constant 0.000000e+00 : f32
    %464 = vector.shape_cast %463 : vector<1x256xi1> to vector<1x256xi1>
    %465 = vector.broadcast %464 : vector<1x256xi1> to vector<8x256xi1>
    %466 = vector.broadcast %cst_100 : f32 to vector<8x256xf32>
    %467 = arith.select %465, %458, %466 : vector<8x256xi1>, vector<8x256xf32>
    %468 = vector.extract_strided_slice %6 {offsets = [0, 35], sizes = [8, 1], strides = [1, 1]} : vector<8x49xf32> to vector<8x1xf32>
    %469 = vector.broadcast %468 : vector<8x1xf32> to vector<8x256xf32>
    %470 = arith.mulf %467, %469 : vector<8x256xf32>
    %471 = arith.addf %457, %470 : vector<8x256xf32>
    %c226_i32 = arith.constant 226 : i32
    %472 = tpu.dynamic_rotate %1 by %c226_i32 dim 1 : vector<8x256xf32>, i32 -> vector<8x256xf32>
    %c224_i32_101 = arith.constant 224 : i32
    %473 = vector.broadcast %c224_i32_101 : i32 to vector<1x256xi32>
    %474 = arith.cmpi slt, %3, %473 : vector<1x256xi32>
    %c2_i32_102 = arith.constant 2 : i32
    %475 = vector.broadcast %c2_i32_102 : i32 to vector<1x256xi32>
    %476 = arith.cmpi sge, %5, %475 : vector<1x256xi32>
    %477 = arith.andi %474, %476 : vector<1x256xi1>
    %cst_103 = arith.constant 0.000000e+00 : f32
    %478 = vector.shape_cast %477 : vector<1x256xi1> to vector<1x256xi1>
    %479 = vector.broadcast %478 : vector<1x256xi1> to vector<8x256xi1>
    %480 = vector.broadcast %cst_103 : f32 to vector<8x256xf32>
    %481 = arith.select %479, %472, %480 : vector<8x256xi1>, vector<8x256xf32>
    %482 = vector.extract_strided_slice %6 {offsets = [0, 36], sizes = [8, 1], strides = [1, 1]} : vector<8x49xf32> to vector<8x1xf32>
    %483 = vector.broadcast %482 : vector<8x1xf32> to vector<8x256xf32>
    %484 = arith.mulf %481, %483 : vector<8x256xf32>
    %485 = arith.addf %471, %484 : vector<8x256xf32>
    %c225_i32 = arith.constant 225 : i32
    %486 = tpu.dynamic_rotate %1 by %c225_i32 dim 1 : vector<8x256xf32>, i32 -> vector<8x256xf32>
    %c224_i32_104 = arith.constant 224 : i32
    %487 = vector.broadcast %c224_i32_104 : i32 to vector<1x256xi32>
    %488 = arith.cmpi slt, %3, %487 : vector<1x256xi32>
    %c1_i32_105 = arith.constant 1 : i32
    %489 = vector.broadcast %c1_i32_105 : i32 to vector<1x256xi32>
    %490 = arith.cmpi sge, %5, %489 : vector<1x256xi32>
    %491 = arith.andi %488, %490 : vector<1x256xi1>
    %cst_106 = arith.constant 0.000000e+00 : f32
    %492 = vector.shape_cast %491 : vector<1x256xi1> to vector<1x256xi1>
    %493 = vector.broadcast %492 : vector<1x256xi1> to vector<8x256xi1>
    %494 = vector.broadcast %cst_106 : f32 to vector<8x256xf32>
    %495 = arith.select %493, %486, %494 : vector<8x256xi1>, vector<8x256xf32>
    %496 = vector.extract_strided_slice %6 {offsets = [0, 37], sizes = [8, 1], strides = [1, 1]} : vector<8x49xf32> to vector<8x1xf32>
    %497 = vector.broadcast %496 : vector<8x1xf32> to vector<8x256xf32>
    %498 = arith.mulf %495, %497 : vector<8x256xf32>
    %499 = arith.addf %485, %498 : vector<8x256xf32>
    %c224_i32_107 = arith.constant 224 : i32
    %500 = tpu.dynamic_rotate %1 by %c224_i32_107 dim 1 : vector<8x256xf32>, i32 -> vector<8x256xf32>
    %c224_i32_108 = arith.constant 224 : i32
    %501 = vector.broadcast %c224_i32_108 : i32 to vector<1x256xi32>
    %502 = arith.cmpi slt, %3, %501 : vector<1x256xi32>
    %cst_109 = arith.constant 0.000000e+00 : f32
    %503 = vector.shape_cast %502 : vector<1x256xi1> to vector<1x256xi1>
    %504 = vector.broadcast %503 : vector<1x256xi1> to vector<8x256xi1>
    %505 = vector.broadcast %cst_109 : f32 to vector<8x256xf32>
    %506 = arith.select %504, %500, %505 : vector<8x256xi1>, vector<8x256xf32>
    %507 = vector.extract_strided_slice %6 {offsets = [0, 38], sizes = [8, 1], strides = [1, 1]} : vector<8x49xf32> to vector<8x1xf32>
    %508 = vector.broadcast %507 : vector<8x1xf32> to vector<8x256xf32>
    %509 = arith.mulf %506, %508 : vector<8x256xf32>
    %510 = arith.addf %499, %509 : vector<8x256xf32>
    %c223_i32 = arith.constant 223 : i32
    %511 = tpu.dynamic_rotate %1 by %c223_i32 dim 1 : vector<8x256xf32>, i32 -> vector<8x256xf32>
    %c224_i32_110 = arith.constant 224 : i32
    %512 = vector.broadcast %c224_i32_110 : i32 to vector<1x256xi32>
    %513 = arith.cmpi slt, %3, %512 : vector<1x256xi32>
    %c15_i32_111 = arith.constant 15 : i32
    %514 = vector.broadcast %c15_i32_111 : i32 to vector<1x256xi32>
    %515 = arith.cmpi slt, %5, %514 : vector<1x256xi32>
    %516 = arith.andi %513, %515 : vector<1x256xi1>
    %cst_112 = arith.constant 0.000000e+00 : f32
    %517 = vector.shape_cast %516 : vector<1x256xi1> to vector<1x256xi1>
    %518 = vector.broadcast %517 : vector<1x256xi1> to vector<8x256xi1>
    %519 = vector.broadcast %cst_112 : f32 to vector<8x256xf32>
    %520 = arith.select %518, %511, %519 : vector<8x256xi1>, vector<8x256xf32>
    %521 = vector.extract_strided_slice %6 {offsets = [0, 39], sizes = [8, 1], strides = [1, 1]} : vector<8x49xf32> to vector<8x1xf32>
    %522 = vector.broadcast %521 : vector<8x1xf32> to vector<8x256xf32>
    %523 = arith.mulf %520, %522 : vector<8x256xf32>
    %524 = arith.addf %510, %523 : vector<8x256xf32>
    %c222_i32 = arith.constant 222 : i32
    %525 = tpu.dynamic_rotate %1 by %c222_i32 dim 1 : vector<8x256xf32>, i32 -> vector<8x256xf32>
    %c224_i32_113 = arith.constant 224 : i32
    %526 = vector.broadcast %c224_i32_113 : i32 to vector<1x256xi32>
    %527 = arith.cmpi slt, %3, %526 : vector<1x256xi32>
    %c14_i32_114 = arith.constant 14 : i32
    %528 = vector.broadcast %c14_i32_114 : i32 to vector<1x256xi32>
    %529 = arith.cmpi slt, %5, %528 : vector<1x256xi32>
    %530 = arith.andi %527, %529 : vector<1x256xi1>
    %cst_115 = arith.constant 0.000000e+00 : f32
    %531 = vector.shape_cast %530 : vector<1x256xi1> to vector<1x256xi1>
    %532 = vector.broadcast %531 : vector<1x256xi1> to vector<8x256xi1>
    %533 = vector.broadcast %cst_115 : f32 to vector<8x256xf32>
    %534 = arith.select %532, %525, %533 : vector<8x256xi1>, vector<8x256xf32>
    %535 = vector.extract_strided_slice %6 {offsets = [0, 40], sizes = [8, 1], strides = [1, 1]} : vector<8x49xf32> to vector<8x1xf32>
    %536 = vector.broadcast %535 : vector<8x1xf32> to vector<8x256xf32>
    %537 = arith.mulf %534, %536 : vector<8x256xf32>
    %538 = arith.addf %524, %537 : vector<8x256xf32>
    %c221_i32 = arith.constant 221 : i32
    %539 = tpu.dynamic_rotate %1 by %c221_i32 dim 1 : vector<8x256xf32>, i32 -> vector<8x256xf32>
    %c224_i32_116 = arith.constant 224 : i32
    %540 = vector.broadcast %c224_i32_116 : i32 to vector<1x256xi32>
    %541 = arith.cmpi slt, %3, %540 : vector<1x256xi32>
    %c13_i32_117 = arith.constant 13 : i32
    %542 = vector.broadcast %c13_i32_117 : i32 to vector<1x256xi32>
    %543 = arith.cmpi slt, %5, %542 : vector<1x256xi32>
    %544 = arith.andi %541, %543 : vector<1x256xi1>
    %cst_118 = arith.constant 0.000000e+00 : f32
    %545 = vector.shape_cast %544 : vector<1x256xi1> to vector<1x256xi1>
    %546 = vector.broadcast %545 : vector<1x256xi1> to vector<8x256xi1>
    %547 = vector.broadcast %cst_118 : f32 to vector<8x256xf32>
    %548 = arith.select %546, %539, %547 : vector<8x256xi1>, vector<8x256xf32>
    %549 = vector.extract_strided_slice %6 {offsets = [0, 41], sizes = [8, 1], strides = [1, 1]} : vector<8x49xf32> to vector<8x1xf32>
    %550 = vector.broadcast %549 : vector<8x1xf32> to vector<8x256xf32>
    %551 = arith.mulf %548, %550 : vector<8x256xf32>
    %552 = arith.addf %538, %551 : vector<8x256xf32>
    %c211_i32 = arith.constant 211 : i32
    %553 = tpu.dynamic_rotate %1 by %c211_i32 dim 1 : vector<8x256xf32>, i32 -> vector<8x256xf32>
    %c208_i32 = arith.constant 208 : i32
    %554 = vector.broadcast %c208_i32 : i32 to vector<1x256xi32>
    %555 = arith.cmpi slt, %3, %554 : vector<1x256xi32>
    %c3_i32_119 = arith.constant 3 : i32
    %556 = vector.broadcast %c3_i32_119 : i32 to vector<1x256xi32>
    %557 = arith.cmpi sge, %5, %556 : vector<1x256xi32>
    %558 = arith.andi %555, %557 : vector<1x256xi1>
    %cst_120 = arith.constant 0.000000e+00 : f32
    %559 = vector.shape_cast %558 : vector<1x256xi1> to vector<1x256xi1>
    %560 = vector.broadcast %559 : vector<1x256xi1> to vector<8x256xi1>
    %561 = vector.broadcast %cst_120 : f32 to vector<8x256xf32>
    %562 = arith.select %560, %553, %561 : vector<8x256xi1>, vector<8x256xf32>
    %563 = vector.extract_strided_slice %6 {offsets = [0, 42], sizes = [8, 1], strides = [1, 1]} : vector<8x49xf32> to vector<8x1xf32>
    %564 = vector.broadcast %563 : vector<8x1xf32> to vector<8x256xf32>
    %565 = arith.mulf %562, %564 : vector<8x256xf32>
    %566 = arith.addf %552, %565 : vector<8x256xf32>
    %c210_i32 = arith.constant 210 : i32
    %567 = tpu.dynamic_rotate %1 by %c210_i32 dim 1 : vector<8x256xf32>, i32 -> vector<8x256xf32>
    %c208_i32_121 = arith.constant 208 : i32
    %568 = vector.broadcast %c208_i32_121 : i32 to vector<1x256xi32>
    %569 = arith.cmpi slt, %3, %568 : vector<1x256xi32>
    %c2_i32_122 = arith.constant 2 : i32
    %570 = vector.broadcast %c2_i32_122 : i32 to vector<1x256xi32>
    %571 = arith.cmpi sge, %5, %570 : vector<1x256xi32>
    %572 = arith.andi %569, %571 : vector<1x256xi1>
    %cst_123 = arith.constant 0.000000e+00 : f32
    %573 = vector.shape_cast %572 : vector<1x256xi1> to vector<1x256xi1>
    %574 = vector.broadcast %573 : vector<1x256xi1> to vector<8x256xi1>
    %575 = vector.broadcast %cst_123 : f32 to vector<8x256xf32>
    %576 = arith.select %574, %567, %575 : vector<8x256xi1>, vector<8x256xf32>
    %577 = vector.extract_strided_slice %6 {offsets = [0, 43], sizes = [8, 1], strides = [1, 1]} : vector<8x49xf32> to vector<8x1xf32>
    %578 = vector.broadcast %577 : vector<8x1xf32> to vector<8x256xf32>
    %579 = arith.mulf %576, %578 : vector<8x256xf32>
    %580 = arith.addf %566, %579 : vector<8x256xf32>
    %c209_i32 = arith.constant 209 : i32
    %581 = tpu.dynamic_rotate %1 by %c209_i32 dim 1 : vector<8x256xf32>, i32 -> vector<8x256xf32>
    %c208_i32_124 = arith.constant 208 : i32
    %582 = vector.broadcast %c208_i32_124 : i32 to vector<1x256xi32>
    %583 = arith.cmpi slt, %3, %582 : vector<1x256xi32>
    %c1_i32_125 = arith.constant 1 : i32
    %584 = vector.broadcast %c1_i32_125 : i32 to vector<1x256xi32>
    %585 = arith.cmpi sge, %5, %584 : vector<1x256xi32>
    %586 = arith.andi %583, %585 : vector<1x256xi1>
    %cst_126 = arith.constant 0.000000e+00 : f32
    %587 = vector.shape_cast %586 : vector<1x256xi1> to vector<1x256xi1>
    %588 = vector.broadcast %587 : vector<1x256xi1> to vector<8x256xi1>
    %589 = vector.broadcast %cst_126 : f32 to vector<8x256xf32>
    %590 = arith.select %588, %581, %589 : vector<8x256xi1>, vector<8x256xf32>
    %591 = vector.extract_strided_slice %6 {offsets = [0, 44], sizes = [8, 1], strides = [1, 1]} : vector<8x49xf32> to vector<8x1xf32>
    %592 = vector.broadcast %591 : vector<8x1xf32> to vector<8x256xf32>
    %593 = arith.mulf %590, %592 : vector<8x256xf32>
    %594 = arith.addf %580, %593 : vector<8x256xf32>
    %c208_i32_127 = arith.constant 208 : i32
    %595 = tpu.dynamic_rotate %1 by %c208_i32_127 dim 1 : vector<8x256xf32>, i32 -> vector<8x256xf32>
    %c208_i32_128 = arith.constant 208 : i32
    %596 = vector.broadcast %c208_i32_128 : i32 to vector<1x256xi32>
    %597 = arith.cmpi slt, %3, %596 : vector<1x256xi32>
    %cst_129 = arith.constant 0.000000e+00 : f32
    %598 = vector.shape_cast %597 : vector<1x256xi1> to vector<1x256xi1>
    %599 = vector.broadcast %598 : vector<1x256xi1> to vector<8x256xi1>
    %600 = vector.broadcast %cst_129 : f32 to vector<8x256xf32>
    %601 = arith.select %599, %595, %600 : vector<8x256xi1>, vector<8x256xf32>
    %602 = vector.extract_strided_slice %6 {offsets = [0, 45], sizes = [8, 1], strides = [1, 1]} : vector<8x49xf32> to vector<8x1xf32>
    %603 = vector.broadcast %602 : vector<8x1xf32> to vector<8x256xf32>
    %604 = arith.mulf %601, %603 : vector<8x256xf32>
    %605 = arith.addf %594, %604 : vector<8x256xf32>
    %c207_i32 = arith.constant 207 : i32
    %606 = tpu.dynamic_rotate %1 by %c207_i32 dim 1 : vector<8x256xf32>, i32 -> vector<8x256xf32>
    %c208_i32_130 = arith.constant 208 : i32
    %607 = vector.broadcast %c208_i32_130 : i32 to vector<1x256xi32>
    %608 = arith.cmpi slt, %3, %607 : vector<1x256xi32>
    %c15_i32_131 = arith.constant 15 : i32
    %609 = vector.broadcast %c15_i32_131 : i32 to vector<1x256xi32>
    %610 = arith.cmpi slt, %5, %609 : vector<1x256xi32>
    %611 = arith.andi %608, %610 : vector<1x256xi1>
    %cst_132 = arith.constant 0.000000e+00 : f32
    %612 = vector.shape_cast %611 : vector<1x256xi1> to vector<1x256xi1>
    %613 = vector.broadcast %612 : vector<1x256xi1> to vector<8x256xi1>
    %614 = vector.broadcast %cst_132 : f32 to vector<8x256xf32>
    %615 = arith.select %613, %606, %614 : vector<8x256xi1>, vector<8x256xf32>
    %616 = vector.extract_strided_slice %6 {offsets = [0, 46], sizes = [8, 1], strides = [1, 1]} : vector<8x49xf32> to vector<8x1xf32>
    %617 = vector.broadcast %616 : vector<8x1xf32> to vector<8x256xf32>
    %618 = arith.mulf %615, %617 : vector<8x256xf32>
    %619 = arith.addf %605, %618 : vector<8x256xf32>
    %c206_i32 = arith.constant 206 : i32
    %620 = tpu.dynamic_rotate %1 by %c206_i32 dim 1 : vector<8x256xf32>, i32 -> vector<8x256xf32>
    %c208_i32_133 = arith.constant 208 : i32
    %621 = vector.broadcast %c208_i32_133 : i32 to vector<1x256xi32>
    %622 = arith.cmpi slt, %3, %621 : vector<1x256xi32>
    %c14_i32_134 = arith.constant 14 : i32
    %623 = vector.broadcast %c14_i32_134 : i32 to vector<1x256xi32>
    %624 = arith.cmpi slt, %5, %623 : vector<1x256xi32>
    %625 = arith.andi %622, %624 : vector<1x256xi1>
    %cst_135 = arith.constant 0.000000e+00 : f32
    %626 = vector.shape_cast %625 : vector<1x256xi1> to vector<1x256xi1>
    %627 = vector.broadcast %626 : vector<1x256xi1> to vector<8x256xi1>
    %628 = vector.broadcast %cst_135 : f32 to vector<8x256xf32>
    %629 = arith.select %627, %620, %628 : vector<8x256xi1>, vector<8x256xf32>
    %630 = vector.extract_strided_slice %6 {offsets = [0, 47], sizes = [8, 1], strides = [1, 1]} : vector<8x49xf32> to vector<8x1xf32>
    %631 = vector.broadcast %630 : vector<8x1xf32> to vector<8x256xf32>
    %632 = arith.mulf %629, %631 : vector<8x256xf32>
    %633 = arith.addf %619, %632 : vector<8x256xf32>
    %c205_i32 = arith.constant 205 : i32
    %634 = tpu.dynamic_rotate %1 by %c205_i32 dim 1 : vector<8x256xf32>, i32 -> vector<8x256xf32>
    %c208_i32_136 = arith.constant 208 : i32
    %635 = vector.broadcast %c208_i32_136 : i32 to vector<1x256xi32>
    %636 = arith.cmpi slt, %3, %635 : vector<1x256xi32>
    %c13_i32_137 = arith.constant 13 : i32
    %637 = vector.broadcast %c13_i32_137 : i32 to vector<1x256xi32>
    %638 = arith.cmpi slt, %5, %637 : vector<1x256xi32>
    %639 = arith.andi %636, %638 : vector<1x256xi1>
    %cst_138 = arith.constant 0.000000e+00 : f32
    %640 = vector.shape_cast %639 : vector<1x256xi1> to vector<1x256xi1>
    %641 = vector.broadcast %640 : vector<1x256xi1> to vector<8x256xi1>
    %642 = vector.broadcast %cst_138 : f32 to vector<8x256xf32>
    %643 = arith.select %641, %634, %642 : vector<8x256xi1>, vector<8x256xf32>
    %644 = vector.extract_strided_slice %6 {offsets = [0, 48], sizes = [8, 1], strides = [1, 1]} : vector<8x49xf32> to vector<8x1xf32>
    %645 = vector.broadcast %644 : vector<8x1xf32> to vector<8x256xf32>
    %646 = arith.mulf %643, %645 : vector<8x256xf32>
    %647 = arith.addf %633, %646 : vector<8x256xf32>
    %c0_139 = arith.constant 0 : index
    %c0_140 = arith.constant 0 : index
    %c0_141 = arith.constant 0 : index
    %648 = vector.load %arg2[%c0_139, %c0_140, %c0_141] : memref<1x8x1xf32, #tpu.memory_space<vmem>>, vector<1x8x1xf32>
    %649 = vector.shape_cast %648 : vector<1x8x1xf32> to vector<8x1xf32>
    %650 = vector.broadcast %649 : vector<8x1xf32> to vector<8x256xf32>
    %651 = arith.addf %647, %650 : vector<8x256xf32>
    %c0_142 = arith.constant 0 : index
    %c0_143 = arith.constant 0 : index
    %652 = vector.load %arg7[%c0_142, %c0_143] : memref<8x8xf32, #tpu.memory_space<vmem>>, vector<8x8xf32>
    %cst_144 = arith.constant dense<0.000000e+00> : vector<8x256xf32>
    %653 = tpu.matmul %652, %1, %cst_144 {dimension_numbers = #tpu.dot_dimension_numbers<[1], [0], [0], [1], [0, 0, 1, 1], [], []>} : vector<8x8xf32>, vector<8x256xf32>, vector<8x256xf32> -> vector<8x256xf32>
    %654 = vector.extract_strided_slice %2 {offsets = [72, 0], sizes = [8, 1], strides = [1, 1]} : vector<80x1xf32> to vector<8x1xf32>
    %655 = vector.broadcast %654 : vector<8x1xf32> to vector<8x256xf32>
    %656 = arith.addf %653, %655 : vector<8x256xf32>
    %657 = vector.shape_cast %651 : vector<8x256xf32> to vector<1x8x256xf32>
    %cst_145 = arith.constant dense<0.000000e+00> : vector<1xf32>
    %658 = vector.multi_reduction <add>, %657, %cst_145 [1, 2] : vector<1x8x256xf32> to vector<1xf32>
    %659 = vector.shape_cast %658 : vector<1xf32> to vector<1x1x1xf32>
    %660 = vector.extract %659[0, 0, 0] : f32 from vector<1x1x1xf32>
    %661 = vector.broadcast %660 : f32 to vector<1x1xf32>
    %cst_146 = arith.constant 9.765625E-4 : f32
    %662 = vector.broadcast %cst_146 : f32 to vector<1x1xf32>
    %663 = arith.mulf %661, %662 : vector<1x1xf32>
    %664 = arith.mulf %651, %651 : vector<8x256xf32>
    %665 = vector.shape_cast %664 : vector<8x256xf32> to vector<1x8x256xf32>
    %cst_147 = arith.constant dense<0.000000e+00> : vector<1xf32>
    %666 = vector.multi_reduction <add>, %665, %cst_147 [1, 2] : vector<1x8x256xf32> to vector<1xf32>
    %667 = vector.shape_cast %666 : vector<1xf32> to vector<1x1x1xf32>
    %668 = vector.extract %667[0, 0, 0] : f32 from vector<1x1x1xf32>
    %669 = vector.broadcast %668 : f32 to vector<1x1xf32>
    %cst_148 = arith.constant 9.765625E-4 : f32
    %670 = vector.broadcast %cst_148 : f32 to vector<1x1xf32>
    %671 = arith.mulf %669, %670 : vector<1x1xf32>
    %672 = arith.mulf %663, %663 : vector<1x1xf32>
    %673 = arith.subf %671, %672 : vector<1x1xf32>
    %674 = vector.broadcast %663 : vector<1x1xf32> to vector<8x256xf32>
    %675 = arith.subf %651, %674 : vector<8x256xf32>
    %cst_149 = arith.constant 9.99999974E-6 : f32
    %676 = vector.broadcast %cst_149 : f32 to vector<1x1xf32>
    %677 = arith.addf %673, %676 : vector<1x1xf32>
    %678 = math.rsqrt %677 : vector<1x1xf32>
    %679 = vector.broadcast %678 : vector<1x1xf32> to vector<8x256xf32>
    %680 = arith.mulf %675, %679 : vector<8x256xf32>
    %681 = vector.extract_strided_slice %2 {offsets = [0, 0], sizes = [8, 1], strides = [1, 1]} : vector<80x1xf32> to vector<8x1xf32>
    %682 = vector.broadcast %681 : vector<8x1xf32> to vector<8x256xf32>
    %683 = arith.mulf %680, %682 : vector<8x256xf32>
    %684 = vector.extract_strided_slice %2 {offsets = [8, 0], sizes = [8, 1], strides = [1, 1]} : vector<80x1xf32> to vector<8x1xf32>
    %685 = vector.broadcast %684 : vector<8x1xf32> to vector<8x256xf32>
    %686 = arith.addf %683, %685 : vector<8x256xf32>
    %c17_i32_150 = arith.constant 17 : i32
    %687 = tpu.dynamic_rotate %686 by %c17_i32_150 dim 1 : vector<8x256xf32>, i32 -> vector<8x256xf32>
    %c16_i32_151 = arith.constant 16 : i32
    %688 = vector.broadcast %c16_i32_151 : i32 to vector<1x256xi32>
    %689 = arith.cmpi sge, %3, %688 : vector<1x256xi32>
    %c1_i32_152 = arith.constant 1 : i32
    %690 = vector.broadcast %c1_i32_152 : i32 to vector<1x256xi32>
    %691 = arith.cmpi sge, %5, %690 : vector<1x256xi32>
    %692 = arith.andi %689, %691 : vector<1x256xi1>
    %cst_153 = arith.constant 0.000000e+00 : f32
    %693 = vector.shape_cast %692 : vector<1x256xi1> to vector<1x256xi1>
    %694 = vector.broadcast %693 : vector<1x256xi1> to vector<8x256xi1>
    %695 = vector.broadcast %cst_153 : f32 to vector<8x256xf32>
    %696 = arith.select %694, %687, %695 : vector<8x256xi1>, vector<8x256xf32>
    %c16_i32_154 = arith.constant 16 : i32
    %697 = tpu.dynamic_rotate %686 by %c16_i32_154 dim 1 : vector<8x256xf32>, i32 -> vector<8x256xf32>
    %c16_i32_155 = arith.constant 16 : i32
    %698 = vector.broadcast %c16_i32_155 : i32 to vector<1x256xi32>
    %699 = arith.cmpi sge, %3, %698 : vector<1x256xi32>
    %cst_156 = arith.constant 0.000000e+00 : f32
    %700 = vector.shape_cast %699 : vector<1x256xi1> to vector<1x256xi1>
    %701 = vector.broadcast %700 : vector<1x256xi1> to vector<8x256xi1>
    %702 = vector.broadcast %cst_156 : f32 to vector<8x256xf32>
    %703 = arith.select %701, %697, %702 : vector<8x256xi1>, vector<8x256xf32>
    %c15_i32_157 = arith.constant 15 : i32
    %704 = tpu.dynamic_rotate %686 by %c15_i32_157 dim 1 : vector<8x256xf32>, i32 -> vector<8x256xf32>
    %c16_i32_158 = arith.constant 16 : i32
    %705 = vector.broadcast %c16_i32_158 : i32 to vector<1x256xi32>
    %706 = arith.cmpi sge, %3, %705 : vector<1x256xi32>
    %c15_i32_159 = arith.constant 15 : i32
    %707 = vector.broadcast %c15_i32_159 : i32 to vector<1x256xi32>
    %708 = arith.cmpi slt, %5, %707 : vector<1x256xi32>
    %709 = arith.andi %706, %708 : vector<1x256xi1>
    %cst_160 = arith.constant 0.000000e+00 : f32
    %710 = vector.shape_cast %709 : vector<1x256xi1> to vector<1x256xi1>
    %711 = vector.broadcast %710 : vector<1x256xi1> to vector<8x256xi1>
    %712 = vector.broadcast %cst_160 : f32 to vector<8x256xf32>
    %713 = arith.select %711, %704, %712 : vector<8x256xi1>, vector<8x256xf32>
    %c1_i32_161 = arith.constant 1 : i32
    %714 = tpu.dynamic_rotate %686 by %c1_i32_161 dim 1 : vector<8x256xf32>, i32 -> vector<8x256xf32>
    %c1_i32_162 = arith.constant 1 : i32
    %715 = vector.broadcast %c1_i32_162 : i32 to vector<1x256xi32>
    %716 = arith.cmpi sge, %5, %715 : vector<1x256xi32>
    %cst_163 = arith.constant 0.000000e+00 : f32
    %717 = vector.shape_cast %716 : vector<1x256xi1> to vector<1x256xi1>
    %718 = vector.broadcast %717 : vector<1x256xi1> to vector<8x256xi1>
    %719 = vector.broadcast %cst_163 : f32 to vector<8x256xf32>
    %720 = arith.select %718, %714, %719 : vector<8x256xi1>, vector<8x256xf32>
    %c255_i32_164 = arith.constant 255 : i32
    %721 = tpu.dynamic_rotate %686 by %c255_i32_164 dim 1 : vector<8x256xf32>, i32 -> vector<8x256xf32>
    %c15_i32_165 = arith.constant 15 : i32
    %722 = vector.broadcast %c15_i32_165 : i32 to vector<1x256xi32>
    %723 = arith.cmpi slt, %5, %722 : vector<1x256xi32>
    %cst_166 = arith.constant 0.000000e+00 : f32
    %724 = vector.shape_cast %723 : vector<1x256xi1> to vector<1x256xi1>
    %725 = vector.broadcast %724 : vector<1x256xi1> to vector<8x256xi1>
    %726 = vector.broadcast %cst_166 : f32 to vector<8x256xf32>
    %727 = arith.select %725, %721, %726 : vector<8x256xi1>, vector<8x256xf32>
    %c241_i32_167 = arith.constant 241 : i32
    %728 = tpu.dynamic_rotate %686 by %c241_i32_167 dim 1 : vector<8x256xf32>, i32 -> vector<8x256xf32>
    %c240_i32_168 = arith.constant 240 : i32
    %729 = vector.broadcast %c240_i32_168 : i32 to vector<1x256xi32>
    %730 = arith.cmpi slt, %3, %729 : vector<1x256xi32>
    %c1_i32_169 = arith.constant 1 : i32
    %731 = vector.broadcast %c1_i32_169 : i32 to vector<1x256xi32>
    %732 = arith.cmpi sge, %5, %731 : vector<1x256xi32>
    %733 = arith.andi %730, %732 : vector<1x256xi1>
    %cst_170 = arith.constant 0.000000e+00 : f32
    %734 = vector.shape_cast %733 : vector<1x256xi1> to vector<1x256xi1>
    %735 = vector.broadcast %734 : vector<1x256xi1> to vector<8x256xi1>
    %736 = vector.broadcast %cst_170 : f32 to vector<8x256xf32>
    %737 = arith.select %735, %728, %736 : vector<8x256xi1>, vector<8x256xf32>
    %c240_i32_171 = arith.constant 240 : i32
    %738 = tpu.dynamic_rotate %686 by %c240_i32_171 dim 1 : vector<8x256xf32>, i32 -> vector<8x256xf32>
    %c240_i32_172 = arith.constant 240 : i32
    %739 = vector.broadcast %c240_i32_172 : i32 to vector<1x256xi32>
    %740 = arith.cmpi slt, %3, %739 : vector<1x256xi32>
    %cst_173 = arith.constant 0.000000e+00 : f32
    %741 = vector.shape_cast %740 : vector<1x256xi1> to vector<1x256xi1>
    %742 = vector.broadcast %741 : vector<1x256xi1> to vector<8x256xi1>
    %743 = vector.broadcast %cst_173 : f32 to vector<8x256xf32>
    %744 = arith.select %742, %738, %743 : vector<8x256xi1>, vector<8x256xf32>
    %c239_i32_174 = arith.constant 239 : i32
    %745 = tpu.dynamic_rotate %686 by %c239_i32_174 dim 1 : vector<8x256xf32>, i32 -> vector<8x256xf32>
    %c240_i32_175 = arith.constant 240 : i32
    %746 = vector.broadcast %c240_i32_175 : i32 to vector<1x256xi32>
    %747 = arith.cmpi slt, %3, %746 : vector<1x256xi32>
    %c15_i32_176 = arith.constant 15 : i32
    %748 = vector.broadcast %c15_i32_176 : i32 to vector<1x256xi32>
    %749 = arith.cmpi slt, %5, %748 : vector<1x256xi32>
    %750 = arith.andi %747, %749 : vector<1x256xi1>
    %cst_177 = arith.constant 0.000000e+00 : f32
    %751 = vector.shape_cast %750 : vector<1x256xi1> to vector<1x256xi1>
    %752 = vector.broadcast %751 : vector<1x256xi1> to vector<8x256xi1>
    %753 = vector.broadcast %cst_177 : f32 to vector<8x256xf32>
    %754 = arith.select %752, %745, %753 : vector<8x256xi1>, vector<8x256xf32>
    %755 = tpu.concatenate %696, %703, %713, %720, %686, %727, %737, %744, %754 in 0 : vector<8x256xf32>, vector<8x256xf32>, vector<8x256xf32>, vector<8x256xf32>, vector<8x256xf32>, vector<8x256xf32>, vector<8x256xf32>, vector<8x256xf32>, vector<8x256xf32> -> vector<72x256xf32>
    %c0_178 = arith.constant 0 : index
    %c0_179 = arith.constant 0 : index
    %756 = vector.load %arg5[%c0_178, %c0_179] : memref<16x72xf32, #tpu.memory_space<vmem>>, vector<16x72xf32>
    %cst_180 = arith.constant dense<0.000000e+00> : vector<16x256xf32>
    %757 = tpu.matmul %756, %755, %cst_180 {dimension_numbers = #tpu.dot_dimension_numbers<[1], [0], [0], [1], [0, 0, 1, 1], [], []>} : vector<16x72xf32>, vector<72x256xf32>, vector<16x256xf32> -> vector<16x256xf32>
    %758 = vector.extract_strided_slice %2 {offsets = [16, 0], sizes = [16, 1], strides = [1, 1]} : vector<80x1xf32> to vector<16x1xf32>
    %759 = vector.broadcast %758 : vector<16x1xf32> to vector<16x256xf32>
    %760 = arith.addf %757, %759 : vector<16x256xf32>
    %cst_181 = arith.constant 5.000000e-01 : f32
    %761 = vector.broadcast %cst_181 : f32 to vector<16x256xf32>
    %762 = arith.mulf %761, %760 : vector<16x256xf32>
    %cst_182 = arith.constant 0.707106769 : f32
    %763 = vector.broadcast %cst_182 : f32 to vector<16x256xf32>
    %764 = arith.mulf %760, %763 : vector<16x256xf32>
    %cst_183 = arith.constant 0.000000e+00 : f32
    %765 = vector.broadcast %cst_183 : f32 to vector<16x256xf32>
    %766 = arith.cmpf oge, %764, %765 : vector<16x256xf32>
    %cst_184 = arith.constant 1.000000e+00 : f32
    %cst_185 = arith.constant -1.000000e+00 : f32
    %767 = vector.broadcast %cst_184 : f32 to vector<16x256xf32>
    %768 = vector.broadcast %cst_185 : f32 to vector<16x256xf32>
    %769 = arith.select %766, %767, %768 : vector<16x256xi1>, vector<16x256xf32>
    %770 = math.absf %764 : vector<16x256xf32>
    %cst_186 = arith.constant 0.327591091 : f32
    %771 = vector.broadcast %cst_186 : f32 to vector<16x256xf32>
    %772 = arith.mulf %771, %770 : vector<16x256xf32>
    %cst_187 = arith.constant 1.000000e+00 : f32
    %773 = vector.broadcast %cst_187 : f32 to vector<16x256xf32>
    %774 = arith.addf %773, %772 : vector<16x256xf32>
    %cst_188 = arith.constant 1.000000e+00 : f32
    %775 = vector.broadcast %cst_188 : f32 to vector<16x256xf32>
    %776 = arith.divf %775, %774 : vector<16x256xf32>
    %cst_189 = arith.constant 1.06140542 : f32
    %777 = vector.broadcast %cst_189 : f32 to vector<16x256xf32>
    %778 = arith.mulf %777, %776 : vector<16x256xf32>
    %cst_190 = arith.constant -1.45315206 : f32
    %779 = vector.broadcast %cst_190 : f32 to vector<16x256xf32>
    %780 = arith.addf %778, %779 : vector<16x256xf32>
    %781 = arith.mulf %780, %776 : vector<16x256xf32>
    %cst_191 = arith.constant 1.42141378 : f32
    %782 = vector.broadcast %cst_191 : f32 to vector<16x256xf32>
    %783 = arith.addf %781, %782 : vector<16x256xf32>
    %784 = arith.mulf %783, %776 : vector<16x256xf32>
    %cst_192 = arith.constant -0.284496725 : f32
    %785 = vector.broadcast %cst_192 : f32 to vector<16x256xf32>
    %786 = arith.addf %784, %785 : vector<16x256xf32>
    %787 = arith.mulf %786, %776 : vector<16x256xf32>
    %cst_193 = arith.constant 0.254829586 : f32
    %788 = vector.broadcast %cst_193 : f32 to vector<16x256xf32>
    %789 = arith.addf %787, %788 : vector<16x256xf32>
    %790 = arith.mulf %789, %776 : vector<16x256xf32>
    %cst_194 = arith.constant 0.000000e+00 : f32
    %791 = vector.broadcast %cst_194 : f32 to vector<16x256xf32>
    %792 = arith.subf %791, %770 : vector<16x256xf32>
    %793 = arith.mulf %792, %770 : vector<16x256xf32>
    %794 = math.exp %793 : vector<16x256xf32>
    %795 = arith.mulf %790, %794 : vector<16x256xf32>
    %cst_195 = arith.constant 1.000000e+00 : f32
    %796 = vector.broadcast %cst_195 : f32 to vector<16x256xf32>
    %797 = arith.subf %796, %795 : vector<16x256xf32>
    %798 = arith.mulf %769, %797 : vector<16x256xf32>
    %cst_196 = arith.constant 1.000000e+00 : f32
    %799 = vector.broadcast %cst_196 : f32 to vector<16x256xf32>
    %800 = arith.addf %799, %798 : vector<16x256xf32>
    %801 = arith.mulf %762, %800 : vector<16x256xf32>
    %802 = vector.shape_cast %801 : vector<16x256xf32> to vector<1x16x256xf32>
    %cst_197 = arith.constant dense<0.000000e+00> : vector<1xf32>
    %803 = vector.multi_reduction <add>, %802, %cst_197 [1, 2] : vector<1x16x256xf32> to vector<1xf32>
    %804 = vector.shape_cast %803 : vector<1xf32> to vector<1x1x1xf32>
    %805 = vector.extract %804[0, 0, 0] : f32 from vector<1x1x1xf32>
    %806 = vector.broadcast %805 : f32 to vector<1x1xf32>
    %cst_198 = arith.constant 2.44140625E-4 : f32
    %807 = vector.broadcast %cst_198 : f32 to vector<1x1xf32>
    %808 = arith.mulf %806, %807 : vector<1x1xf32>
    %809 = arith.mulf %801, %801 : vector<16x256xf32>
    %810 = vector.shape_cast %809 : vector<16x256xf32> to vector<1x16x256xf32>
    %cst_199 = arith.constant dense<0.000000e+00> : vector<1xf32>
    %811 = vector.multi_reduction <add>, %810, %cst_199 [1, 2] : vector<1x16x256xf32> to vector<1xf32>
    %812 = vector.shape_cast %811 : vector<1xf32> to vector<1x1x1xf32>
    %813 = vector.extract %812[0, 0, 0] : f32 from vector<1x1x1xf32>
    %814 = vector.broadcast %813 : f32 to vector<1x1xf32>
    %cst_200 = arith.constant 2.44140625E-4 : f32
    %815 = vector.broadcast %cst_200 : f32 to vector<1x1xf32>
    %816 = arith.mulf %814, %815 : vector<1x1xf32>
    %817 = arith.mulf %808, %808 : vector<1x1xf32>
    %818 = arith.subf %816, %817 : vector<1x1xf32>
    %819 = vector.broadcast %808 : vector<1x1xf32> to vector<16x256xf32>
    %820 = arith.subf %801, %819 : vector<16x256xf32>
    %cst_201 = arith.constant 9.99999974E-6 : f32
    %821 = vector.broadcast %cst_201 : f32 to vector<1x1xf32>
    %822 = arith.addf %818, %821 : vector<1x1xf32>
    %823 = math.rsqrt %822 : vector<1x1xf32>
    %824 = vector.broadcast %823 : vector<1x1xf32> to vector<16x256xf32>
    %825 = arith.mulf %820, %824 : vector<16x256xf32>
    %826 = vector.extract_strided_slice %2 {offsets = [32, 0], sizes = [16, 1], strides = [1, 1]} : vector<80x1xf32> to vector<16x1xf32>
    %827 = vector.broadcast %826 : vector<16x1xf32> to vector<16x256xf32>
    %828 = arith.mulf %825, %827 : vector<16x256xf32>
    %829 = vector.extract_strided_slice %2 {offsets = [48, 0], sizes = [16, 1], strides = [1, 1]} : vector<80x1xf32> to vector<16x1xf32>
    %830 = vector.broadcast %829 : vector<16x1xf32> to vector<16x256xf32>
    %831 = arith.addf %828, %830 : vector<16x256xf32>
    %c17_i32_202 = arith.constant 17 : i32
    %832 = tpu.dynamic_rotate %831 by %c17_i32_202 dim 1 : vector<16x256xf32>, i32 -> vector<16x256xf32>
    %c16_i32_203 = arith.constant 16 : i32
    %833 = vector.broadcast %c16_i32_203 : i32 to vector<1x256xi32>
    %834 = arith.cmpi sge, %3, %833 : vector<1x256xi32>
    %c1_i32_204 = arith.constant 1 : i32
    %835 = vector.broadcast %c1_i32_204 : i32 to vector<1x256xi32>
    %836 = arith.cmpi sge, %5, %835 : vector<1x256xi32>
    %837 = arith.andi %834, %836 : vector<1x256xi1>
    %cst_205 = arith.constant 0.000000e+00 : f32
    %838 = vector.shape_cast %837 : vector<1x256xi1> to vector<1x256xi1>
    %839 = vector.broadcast %838 : vector<1x256xi1> to vector<16x256xi1>
    %840 = vector.broadcast %cst_205 : f32 to vector<16x256xf32>
    %841 = arith.select %839, %832, %840 : vector<16x256xi1>, vector<16x256xf32>
    %c16_i32_206 = arith.constant 16 : i32
    %842 = tpu.dynamic_rotate %831 by %c16_i32_206 dim 1 : vector<16x256xf32>, i32 -> vector<16x256xf32>
    %c16_i32_207 = arith.constant 16 : i32
    %843 = vector.broadcast %c16_i32_207 : i32 to vector<1x256xi32>
    %844 = arith.cmpi sge, %3, %843 : vector<1x256xi32>
    %cst_208 = arith.constant 0.000000e+00 : f32
    %845 = vector.shape_cast %844 : vector<1x256xi1> to vector<1x256xi1>
    %846 = vector.broadcast %845 : vector<1x256xi1> to vector<16x256xi1>
    %847 = vector.broadcast %cst_208 : f32 to vector<16x256xf32>
    %848 = arith.select %846, %842, %847 : vector<16x256xi1>, vector<16x256xf32>
    %c15_i32_209 = arith.constant 15 : i32
    %849 = tpu.dynamic_rotate %831 by %c15_i32_209 dim 1 : vector<16x256xf32>, i32 -> vector<16x256xf32>
    %c16_i32_210 = arith.constant 16 : i32
    %850 = vector.broadcast %c16_i32_210 : i32 to vector<1x256xi32>
    %851 = arith.cmpi sge, %3, %850 : vector<1x256xi32>
    %c15_i32_211 = arith.constant 15 : i32
    %852 = vector.broadcast %c15_i32_211 : i32 to vector<1x256xi32>
    %853 = arith.cmpi slt, %5, %852 : vector<1x256xi32>
    %854 = arith.andi %851, %853 : vector<1x256xi1>
    %cst_212 = arith.constant 0.000000e+00 : f32
    %855 = vector.shape_cast %854 : vector<1x256xi1> to vector<1x256xi1>
    %856 = vector.broadcast %855 : vector<1x256xi1> to vector<16x256xi1>
    %857 = vector.broadcast %cst_212 : f32 to vector<16x256xf32>
    %858 = arith.select %856, %849, %857 : vector<16x256xi1>, vector<16x256xf32>
    %c1_i32_213 = arith.constant 1 : i32
    %859 = tpu.dynamic_rotate %831 by %c1_i32_213 dim 1 : vector<16x256xf32>, i32 -> vector<16x256xf32>
    %c1_i32_214 = arith.constant 1 : i32
    %860 = vector.broadcast %c1_i32_214 : i32 to vector<1x256xi32>
    %861 = arith.cmpi sge, %5, %860 : vector<1x256xi32>
    %cst_215 = arith.constant 0.000000e+00 : f32
    %862 = vector.shape_cast %861 : vector<1x256xi1> to vector<1x256xi1>
    %863 = vector.broadcast %862 : vector<1x256xi1> to vector<16x256xi1>
    %864 = vector.broadcast %cst_215 : f32 to vector<16x256xf32>
    %865 = arith.select %863, %859, %864 : vector<16x256xi1>, vector<16x256xf32>
    %c255_i32_216 = arith.constant 255 : i32
    %866 = tpu.dynamic_rotate %831 by %c255_i32_216 dim 1 : vector<16x256xf32>, i32 -> vector<16x256xf32>
    %c15_i32_217 = arith.constant 15 : i32
    %867 = vector.broadcast %c15_i32_217 : i32 to vector<1x256xi32>
    %868 = arith.cmpi slt, %5, %867 : vector<1x256xi32>
    %cst_218 = arith.constant 0.000000e+00 : f32
    %869 = vector.shape_cast %868 : vector<1x256xi1> to vector<1x256xi1>
    %870 = vector.broadcast %869 : vector<1x256xi1> to vector<16x256xi1>
    %871 = vector.broadcast %cst_218 : f32 to vector<16x256xf32>
    %872 = arith.select %870, %866, %871 : vector<16x256xi1>, vector<16x256xf32>
    %c241_i32_219 = arith.constant 241 : i32
    %873 = tpu.dynamic_rotate %831 by %c241_i32_219 dim 1 : vector<16x256xf32>, i32 -> vector<16x256xf32>
    %c240_i32_220 = arith.constant 240 : i32
    %874 = vector.broadcast %c240_i32_220 : i32 to vector<1x256xi32>
    %875 = arith.cmpi slt, %3, %874 : vector<1x256xi32>
    %c1_i32_221 = arith.constant 1 : i32
    %876 = vector.broadcast %c1_i32_221 : i32 to vector<1x256xi32>
    %877 = arith.cmpi sge, %5, %876 : vector<1x256xi32>
    %878 = arith.andi %875, %877 : vector<1x256xi1>
    %cst_222 = arith.constant 0.000000e+00 : f32
    %879 = vector.shape_cast %878 : vector<1x256xi1> to vector<1x256xi1>
    %880 = vector.broadcast %879 : vector<1x256xi1> to vector<16x256xi1>
    %881 = vector.broadcast %cst_222 : f32 to vector<16x256xf32>
    %882 = arith.select %880, %873, %881 : vector<16x256xi1>, vector<16x256xf32>
    %c240_i32_223 = arith.constant 240 : i32
    %883 = tpu.dynamic_rotate %831 by %c240_i32_223 dim 1 : vector<16x256xf32>, i32 -> vector<16x256xf32>
    %c240_i32_224 = arith.constant 240 : i32
    %884 = vector.broadcast %c240_i32_224 : i32 to vector<1x256xi32>
    %885 = arith.cmpi slt, %3, %884 : vector<1x256xi32>
    %cst_225 = arith.constant 0.000000e+00 : f32
    %886 = vector.shape_cast %885 : vector<1x256xi1> to vector<1x256xi1>
    %887 = vector.broadcast %886 : vector<1x256xi1> to vector<16x256xi1>
    %888 = vector.broadcast %cst_225 : f32 to vector<16x256xf32>
    %889 = arith.select %887, %883, %888 : vector<16x256xi1>, vector<16x256xf32>
    %c239_i32_226 = arith.constant 239 : i32
    %890 = tpu.dynamic_rotate %831 by %c239_i32_226 dim 1 : vector<16x256xf32>, i32 -> vector<16x256xf32>
    %c240_i32_227 = arith.constant 240 : i32
    %891 = vector.broadcast %c240_i32_227 : i32 to vector<1x256xi32>
    %892 = arith.cmpi slt, %3, %891 : vector<1x256xi32>
    %c15_i32_228 = arith.constant 15 : i32
    %893 = vector.broadcast %c15_i32_228 : i32 to vector<1x256xi32>
    %894 = arith.cmpi slt, %5, %893 : vector<1x256xi32>
    %895 = arith.andi %892, %894 : vector<1x256xi1>
    %cst_229 = arith.constant 0.000000e+00 : f32
    %896 = vector.shape_cast %895 : vector<1x256xi1> to vector<1x256xi1>
    %897 = vector.broadcast %896 : vector<1x256xi1> to vector<16x256xi1>
    %898 = vector.broadcast %cst_229 : f32 to vector<16x256xf32>
    %899 = arith.select %897, %890, %898 : vector<16x256xi1>, vector<16x256xf32>
    %900 = tpu.concatenate %841, %848, %858, %865, %831, %872, %882, %889, %899 in 0 : vector<16x256xf32>, vector<16x256xf32>, vector<16x256xf32>, vector<16x256xf32>, vector<16x256xf32>, vector<16x256xf32>, vector<16x256xf32>, vector<16x256xf32>, vector<16x256xf32> -> vector<144x256xf32>
    %c0_230 = arith.constant 0 : index
    %c0_231 = arith.constant 0 : index
    %901 = vector.load %arg6[%c0_230, %c0_231] : memref<8x144xf32, #tpu.memory_space<vmem>>, vector<8x144xf32>
    %cst_232 = arith.constant dense<0.000000e+00> : vector<8x256xf32>
    %902 = tpu.matmul %901, %900, %cst_232 {dimension_numbers = #tpu.dot_dimension_numbers<[1], [0], [0], [1], [0, 0, 1, 1], [], []>} : vector<8x144xf32>, vector<144x256xf32>, vector<8x256xf32> -> vector<8x256xf32>
    %903 = vector.extract_strided_slice %2 {offsets = [64, 0], sizes = [8, 1], strides = [1, 1]} : vector<80x1xf32> to vector<8x1xf32>
    %904 = vector.broadcast %903 : vector<8x1xf32> to vector<8x256xf32>
    %905 = arith.addf %902, %904 : vector<8x256xf32>
    %906 = arith.addf %905, %656 : vector<8x256xf32>
    %c0_233 = arith.constant 0 : index
    %c0_234 = arith.constant 0 : index
    %c0_235 = arith.constant 0 : index
    %907 = vector.load %arg8[%c0_233, %c0_234, %c0_235] : memref<1x8x256xf32, #tpu.memory_space<vmem>>, vector<1x8x256xf32>
    %908 = vector.shape_cast %907 : vector<1x8x256xf32> to vector<8x256xf32>
    %909 = vector.shape_cast %906 : vector<8x256xf32> to vector<1x8x256xf32>
    tpu.vector_store %arg8[%c0_233, %c0_234, %c0_235], %909 {strides = array<i32>} : memref<1x8x256xf32, #tpu.memory_space<vmem>>, vector<1x8x256xf32>,
    return
  }
  func.func @transform_0(%arg0: i32) -> (i32, i32, i32) {
    %c0_i32 = arith.constant 0 : i32
    %c0_i32_0 = arith.constant 0 : i32
    %c0_i32_1 = arith.constant 0 : i32
    return %arg0, %c0_i32, %c0_i32_0 : i32, i32, i32
  }
  func.func @transform_1(%arg0: i32) -> (i32, i32, i32) {
    %c0_i32 = arith.constant 0 : i32
    %c0_i32_0 = arith.constant 0 : i32
    %c0_i32_1 = arith.constant 0 : i32
    return %arg0, %c0_i32, %c0_i32_0 : i32, i32, i32
  }
  func.func @transform_2(%arg0: i32) -> (i32, i32) {
    %c0_i32 = arith.constant 0 : i32
    %c0_i32_0 = arith.constant 0 : i32
    %c0_i32_1 = arith.constant 0 : i32
    return %c0_i32, %c0_i32_0 : i32, i32
  }
  func.func @transform_3(%arg0: i32) -> (i32, i32) {
    %c0_i32 = arith.constant 0 : i32
    %c0_i32_0 = arith.constant 0 : i32
    %c0_i32_1 = arith.constant 0 : i32
    return %c0_i32, %c0_i32_0 : i32, i32
  }
  func.func @transform_4(%arg0: i32) -> (i32, i32) {
    %c0_i32 = arith.constant 0 : i32
    %c0_i32_0 = arith.constant 0 : i32
    %c0_i32_1 = arith.constant 0 : i32
    return %c0_i32, %c0_i32_0 : i32, i32
  }
  func.func @transform_5(%arg0: i32) -> (i32, i32) {
    %c0_i32 = arith.constant 0 : i32
    %c0_i32_0 = arith.constant 0 : i32
    %c0_i32_1 = arith.constant 0 : i32
    return %c0_i32, %c0_i32_0 : i32, i32
  }
  func.func @transform_6(%arg0: i32) -> (i32, i32) {
    %c0_i32 = arith.constant 0 : i32
    %c0_i32_0 = arith.constant 0 : i32
    %c0_i32_1 = arith.constant 0 : i32
    return %c0_i32, %c0_i32_0 : i32, i32
  }
  func.func @transform_7(%arg0: i32) -> (i32, i32, i32) {
    %c0_i32 = arith.constant 0 : i32
    %c0_i32_0 = arith.constant 0 : i32
    %c0_i32_1 = arith.constant 0 : i32
    return %arg0, %c0_i32, %c0_i32_0 : i32, i32, i32
  }
}

</mosaic_0001>

<llo_original>
// kernel: convnext_block.1
$region0: #{convnext_block.1}
  #allocation0 [shape = 'u32[]', space=smem, size = 0x4, offset = 0x4, fixed_abs, tag = 'smem constant byte address 0x4 - core index']
  #allocation1 [shape = 'u32[144,128]{1,0:T(1,128)}', space=vmem, size = 0x12000, scoped, tag = 'internal scratch']
  %s0 = inlined_call_operand.vmem [shape: f32[2,8,256], index: 0, kind: input, shape index: {}]
  %s1 = inlined_call_operand.vmem [shape: f32[2,8,1], index: 1, kind: input, shape index: {}]
  %s2 = inlined_call_operand.vmem [shape: f32[8,49], index: 2, kind: input, shape index: {}]
  %s3 = inlined_call_operand.vmem [shape: f32[80,1], index: 3, kind: input, shape index: {}]
  %s4 = inlined_call_operand.vmem [shape: f32[16,72], index: 4, kind: input, shape index: {}]
  %s5 = inlined_call_operand.vmem [shape: f32[8,144], index: 5, kind: input, shape index: {}]
  %s6 = inlined_call_operand.vmem [shape: f32[8,8], index: 6, kind: input, shape index: {}]
  %s7 = inlined_call_operand.vmem [shape: f32[2,8,256], index: 7, kind: output, shape index: {}]
  %s8 = sld [smem:[#allocation0]]
  $region61: #{convnext_block.1} parent=0
    _
  %s10 = ssub.s32 1, %s8
  %s11 = scalar_select 0, %s10, %s8
  loop: start=0, step=1, limit=4
  $region2: #{convnext_block.1} parent=0 // loop_pre_header
    _
  $region3: #{convnext_block.1} parent=0 // loop_header
    %s13 = sphi 0, %s17
    %p14 = scmp.ge.s32.totalorder %s13, 4
    %s23 = sphi 0, %s25
    %s26 = sphi 0, %s23
    %s27 = sphi 0, %s26
    %s43 = sphi 0, %s27
    %s49 = sphi 0, %s51
    %s52 = sphi 0, %s49
    %s53 = sphi 0, %s52
    %s69 = sphi 0, %s53
    %s73 = sphi 0, %s73
    %s75 = sphi 0, %s73
    %s76 = sphi 0, %s75
    %s90 = sphi 0, %s76
    %s94 = sphi 0, %s94
    %s96 = sphi 0, %s94
    %s97 = sphi 0, %s96
    %s111 = sphi 0, %s97
    %s115 = sphi 0, %s115
    %s117 = sphi 0, %s115
    %s118 = sphi 0, %s117
    %s132 = sphi 0, %s118
    %s136 = sphi 0, %s136
    %s138 = sphi 0, %s136
    %s139 = sphi 0, %s138
    %s153 = sphi 0, %s139
    %s157 = sphi 0, %s157
    %s159 = sphi 0, %s157
    %s160 = sphi 0, %s159
    %s174 = sphi 0, %s160
    %s180 = sphi 0, %s182
    %s183 = sphi 0, %s180
    %s184 = sphi 0, %s183
    %s200 = sphi 0, %s184
  $region4: #{convnext_block.1} parent=0 // loop_header_branch
    %16 = sbr.rel (%p14) target = $region8
  $region5: #{convnext_block.1} parent=0 // loop_body
    %s18 = ssub.s32 %s13, 1
    %s19 = ssub.s32 %s13, 2
    %s20 = sadd.s32 %s13, 1
    %s21 = ssub.s32 %s13, %s20
    %p22 = scmp.eq.s32.totalorder %s21, 0
    %s24 = sadd.s32 %s23, 1
    %s25 = scalar_select %p22, %s23, %s24
    %p28 = pneg %p22
    %p29 = scmp.eq.s32.totalorder %s13, 1
    %p30 = por %p28, %p29
    %p31 = scmp.ne.s32.totalorder %s23, %s26
    %p32 = scmp.eq.s32.totalorder %s13, 0
    %p33 = por %p31, %p32
    %p34 = scmp.ne.s32.totalorder %s23, %s26
    %p35 = scmp.eq.s32.totalorder %s18, 1
    %p36 = por %p34, %p35
    %p37 = scmp.ne.s32.totalorder %s26, %s27
    %p38 = scmp.eq.s32.totalorder %s18, 0
    %p39 = por %p37, %p38
    %p40 = scmp.ne.s32.totalorder %s26, %s27
    %p41 = scmp.eq.s32.totalorder %s19, 1
    %p42 = por %p40, %p41
    %p44 = scmp.ne.s32.totalorder %s27, %s43
    %p45 = scmp.eq.s32.totalorder %s19, 0
    %p46 = por %p44, %p45
    %s47 = ssub.s32 %s13, %s20
    %p48 = scmp.eq.s32.totalorder %s47, 0
    %s50 = sadd.s32 %s49, 1
    %s51 = scalar_select %p48, %s49, %s50
    %p54 = pneg %p48
    %p55 = scmp.eq.s32.totalorder %s13, 1
    %p56 = por %p54, %p55
    %p57 = scmp.ne.s32.totalorder %s49, %s52
    %p58 = scmp.eq.s32.totalorder %s13, 0
    %p59 = por %p57, %p58
    %p60 = scmp.ne.s32.totalorder %s49, %s52
    %p61 = scmp.eq.s32.totalorder %s18, 1
    %p62 = por %p60, %p61
    %p63 = scmp.ne.s32.totalorder %s52, %s53
    %p64 = scmp.eq.s32.totalorder %s18, 0
    %p65 = por %p63, %p64
    %p66 = scmp.ne.s32.totalorder %s52, %s53
    %p67 = scmp.eq.s32.totalorder %s19, 1
    %p68 = por %p66, %p67
    %p70 = scmp.ne.s32.totalorder %s53, %s69
    %p71 = scmp.eq.s32.totalorder %s19, 0
    %p72 = por %p70, %p71
    %s74 = sadd.s32 %s73, 1
    %p77 = scmp.eq.s32.totalorder %s13, 1
    %p78 = scmp.ne.s32.totalorder %s73, %s75
    %p79 = scmp.eq.s32.totalorder %s13, 0
    %p80 = por %p78, %p79
    %p81 = scmp.ne.s32.totalorder %s73, %s75
    %p82 = scmp.eq.s32.totalorder %s18, 1
    %p83 = por %p81, %p82
    %p84 = scmp.ne.s32.totalorder %s75, %s76
    %p85 = scmp.eq.s32.totalorder %s18, 0
    %p86 = por %p84, %p85
    %p87 = scmp.ne.s32.totalorder %s75, %s76
    %p88 = scmp.eq.s32.totalorder %s19, 1
    %p89 = por %p87, %p88
    %p91 = scmp.ne.s32.totalorder %s76, %s90
    %p92 = scmp.eq.s32.totalorder %s19, 0
    %p93 = por %p91, %p92
    %s95 = sadd.s32 %s94, 1
    %p98 = scmp.eq.s32.totalorder %s13, 1
    %p99 = scmp.ne.s32.totalorder %s94, %s96
    %p100 = scmp.eq.s32.totalorder %s13, 0
    %p101 = por %p99, %p100
    %p102 = scmp.ne.s32.totalorder %s94, %s96
    %p103 = scmp.eq.s32.totalorder %s18, 1
    %p104 = por %p102, %p103
    %p105 = scmp.ne.s32.totalorder %s96, %s97
    %p106 = scmp.eq.s32.totalorder %s18, 0
    %p107 = por %p105, %p106
    %p108 = scmp.ne.s32.totalorder %s96, %s97
    %p109 = scmp.eq.s32.totalorder %s19, 1
    %p110 = por %p108, %p109
    %p112 = scmp.ne.s32.totalorder %s97, %s111
    %p113 = scmp.eq.s32.totalorder %s19, 0
    %p114 = por %p112, %p113
    %s116 = sadd.s32 %s115, 1
    %p119 = scmp.eq.s32.totalorder %s13, 1
    %p120 = scmp.ne.s32.totalorder %s115, %s117
    %p121 = scmp.eq.s32.totalorder %s13, 0
    %p122 = por %p120, %p121
    %p123 = scmp.ne.s32.totalorder %s115, %s117
    %p124 = scmp.eq.s32.totalorder %s18, 1
    %p125 = por %p123, %p124
    %p126 = scmp.ne.s32.totalorder %s117, %s118
    %p127 = scmp.eq.s32.totalorder %s18, 0
    %p128 = por %p126, %p127
    %p129 = scmp.ne.s32.totalorder %s117, %s118
    %p130 = scmp.eq.s32.totalorder %s19, 1
    %p131 = por %p129, %p130
    %p133 = scmp.ne.s32.totalorder %s118, %s132
    %p134 = scmp.eq.s32.totalorder %s19, 0
    %p135 = por %p133, %p134
    %s137 = sadd.s32 %s136, 1
    %p140 = scmp.eq.s32.totalorder %s13, 1
    %p141 = scmp.ne.s32.totalorder %s136, %s138
    %p142 = scmp.eq.s32.totalorder %s13, 0
    %p143 = por %p141, %p142
    %p144 = scmp.ne.s32.totalorder %s136, %s138
    %p145 = scmp.eq.s32.totalorder %s18, 1
    %p146 = por %p144, %p145
    %p147 = scmp.ne.s32.totalorder %s138, %s139
    %p148 = scmp.eq.s32.totalorder %s18, 0
    %p149 = por %p147, %p148
    %p150 = scmp.ne.s32.totalorder %s138, %s139
    %p151 = scmp.eq.s32.totalorder %s19, 1
    %p152 = por %p150, %p151
    %p154 = scmp.ne.s32.totalorder %s139, %s153
    %p155 = scmp.eq.s32.totalorder %s19, 0
    %p156 = por %p154, %p155
    %s158 = sadd.s32 %s157, 1
    %p161 = scmp.eq.s32.totalorder %s13, 1
    %p162 = scmp.ne.s32.totalorder %s157, %s159
    %p163 = scmp.eq.s32.totalorder %s13, 0
    %p164 = por %p162, %p163
    %p165 = scmp.ne.s32.totalorder %s157, %s159
    %p166 = scmp.eq.s32.totalorder %s18, 1
    %p167 = por %p165, %p166
    %p168 = scmp.ne.s32.totalorder %s159, %s160
    %p169 = scmp.eq.s32.totalorder %s18, 0
    %p170 = por %p168, %p169
    %p171 = scmp.ne.s32.totalorder %s159, %s160
    %p172 = scmp.eq.s32.totalorder %s19, 1
    %p173 = por %p171, %p172
    %p175 = scmp.ne.s32.totalorder %s160, %s174
    %p176 = scmp.eq.s32.totalorder %s19, 0
    %p177 = por %p175, %p176
    %s178 = ssub.s32 %s13, %s20
    %p179 = scmp.eq.s32.totalorder %s178, 0
    %s181 = sadd.s32 %s180, 1
    %s182 = scalar_select %p179, %s180, %s181
    %p185 = pneg %p179
    %p186 = scmp.eq.s32.totalorder %s13, 1
    %p187 = por %p185, %p186
    %p188 = scmp.ne.s32.totalorder %s180, %s183
    %p189 = scmp.eq.s32.totalorder %s13, 0
    %p190 = por %p188, %p189
    %p191 = scmp.ne.s32.totalorder %s180, %s183
    %p192 = scmp.eq.s32.totalorder %s18, 1
    %p193 = por %p191, %p192
    %p194 = scmp.ne.s32.totalorder %s183, %s184
    %p195 = scmp.eq.s32.totalorder %s18, 0
    %p196 = por %p194, %p195
    %p197 = scmp.ne.s32.totalorder %s183, %s184
    %p198 = scmp.eq.s32.totalorder %s19, 1
    %p199 = por %p197, %p198
    %p201 = scmp.ne.s32.totalorder %s184, %s200
    %p202 = scmp.eq.s32.totalorder %s19, 0
    %p203 = por %p201, %p202
    %p204 = scmp.le.s32.totalorder 1, %s13
    %p205 = scmp.lt.s32.totalorder %s13, 3
    %p206 = pnand %p204, %p205
    %p207 = pneg %p206
    // Predicated region
    $region9: #{convnext_block.1} parent=5 // pred_check
      _
    $region10: #{convnext_block.1} parent=5 // pred_check_branch
      %209 = sbr.rel (%p206) target = $region12
    $region11: #{convnext_block.1} parent=5 // pred_region
      %s210 = ssub.s32 %s13, 1
      // Predicated region
      $region13: #{convnext_block.1} parent=11 // pred_check
        %p211 = pneg %p86
      $region14: #{convnext_block.1} parent=11 // pred_check_branch
        %213 = sbr.rel (%p211) target = $region16
      $region15: #{convnext_block.1} parent=11 // pred_region
        _
      $region16: #{convnext_block.1} parent=11 // pred_fallthru
        _
      // Predicated region
      $region17: #{convnext_block.1} parent=11 // pred_check
        %p214 = pneg %p107
      $region18: #{convnext_block.1} parent=11 // pred_check_branch
        %216 = sbr.rel (%p214) target = $region20
      $region19: #{convnext_block.1} parent=11 // pred_region
        _
      $region20: #{convnext_block.1} parent=11 // pred_fallthru
        _
      // Predicated region
      $region21: #{convnext_block.1} parent=11 // pred_check
        %p217 = pneg %p128
      $region22: #{convnext_block.1} parent=11 // pred_check_branch
        %219 = sbr.rel (%p217) target = $region24
      $region23: #{convnext_block.1} parent=11 // pred_region
        _
      $region24: #{convnext_block.1} parent=11 // pred_fallthru
        _
      // Predicated region
      $region25: #{convnext_block.1} parent=11 // pred_check
        %p220 = pneg %p149
      $region26: #{convnext_block.1} parent=11 // pred_check_branch
        %222 = sbr.rel (%p220) target = $region28
      $region27: #{convnext_block.1} parent=11 // pred_region
        _
      $region28: #{convnext_block.1} parent=11 // pred_fallthru
        _
      // Predicated region
      $region29: #{convnext_block.1} parent=11 // pred_check
        %p223 = pneg %p170
      $region30: #{convnext_block.1} parent=11 // pred_check_branch
        %225 = sbr.rel (%p223) target = $region32
      $region31: #{convnext_block.1} parent=11 // pred_region
        _
      $region32: #{convnext_block.1} parent=11 // pred_fallthru
        _
    $region12: #{convnext_block.1} parent=5 // pred_fallthru
      _
    %p226 = scmp.lt.s32.totalorder %s13, 2
    // Predicated region
    $region33: #{convnext_block.1} parent=5 // pred_check
      %p227 = pneg %p226
    $region34: #{convnext_block.1} parent=5 // pred_check_branch
      %229 = sbr.rel (%p227) target = $region36
    $region35: #{convnext_block.1} parent=5 // pred_region
      // Predicated region
      $region37: #{convnext_block.1} parent=35 // pred_check
        %p230 = pneg %p33
      $region38: #{convnext_block.1} parent=35 // pred_check_branch
        %232 = sbr.rel (%p230) target = $region40
      $region39: #{convnext_block.1} parent=35 // pred_region
        %p233 = scmp.lt.s32.totalorder %s13, 1
        %s234 = scalar_select %p233, %s13, 1
        %s235 = smul.addr %s234, 2
        %s236 = smul.addr %s235, 8
        %s237 = scalar_lea.vmem %s0, %s236
      $region40: #{convnext_block.1} parent=35 // pred_fallthru
        _
      // Predicated region
      $region41: #{convnext_block.1} parent=35 // pred_check
        %p238 = pneg %p59
      $region42: #{convnext_block.1} parent=35 // pred_check_branch
        %240 = sbr.rel (%p238) target = $region44
      $region43: #{convnext_block.1} parent=35 // pred_region
        %p241 = scmp.lt.s32.totalorder %s13, 1
        %s242 = scalar_select %p241, %s13, 1
        %s243 = smul.addr %s242, 8
        %s244 = scalar_lea.vmem %s1, %s243
      $region44: #{convnext_block.1} parent=35 // pred_fallthru
        _
    $region36: #{convnext_block.1} parent=5 // pred_fallthru
      _
    %p245 = scmp.le.s32.totalorder 1, %s13
    %p246 = scmp.lt.s32.totalorder %s13, 3
    %p247 = pnand %p245, %p246
    %p248 = pneg %p247
    // Predicated region
    $region45: #{convnext_block.1} parent=5 // pred_check
      _
    $region46: #{convnext_block.1} parent=5 // pred_check_branch
      %250 = sbr.rel (%p247) target = $region48
    $region47: #{convnext_block.1} parent=5 // pred_region
      %s251 = ssub.s32 %s13, 1
      %p252 = scmp.lt.s32.totalorder %s18, 1
      %s253 = scalar_select %p252, %s18, 1
      %s254 = smul.addr %s253, 2
      %s255 = smul.addr %s254, 8
      %s256 = scalar_lea.vmem %s0, %s255
      %p257 = pneg %p39
      %p258 = pneg %p36
      %p259 = scmp.lt.s32.totalorder %s18, 1
      %s260 = scalar_select %p259, %s18, 1
      %s261 = smul.addr %s260, 8
      %s262 = scalar_lea.vmem %s1, %s261
      %p263 = pneg %p65
      %p264 = pneg %p62
      %p265 = pneg %p86
      %p266 = pneg %p83
      %p267 = pneg %p107
      %p268 = pneg %p104
      %p269 = pneg %p128
      %p270 = pneg %p125
      %p271 = pneg %p149
      %p272 = pneg %p146
      %p273 = pneg %p170
      %p274 = pneg %p167
      %p275 = pneg %p196
      %p276 = pneg %p193
      %p277 = scmp.lt.s32.totalorder %s18, 1
      %s278 = scalar_select %p277, %s18, 1
      %s279 = smul.addr %s278, 2
      %s280 = smul.addr %s279, 8
      %s281 = scalar_lea.vmem %s7, %s280
      %p282 = scmp.lt.s32.totalorder %s18, 1
      %s283 = scalar_select %p282, %s18, 1
      %s284 = smul.addr %s283, 2
      %s285 = smul.addr %s284, 8
      %s286 = scalar_lea.vmem %s0, %s285
      %p287 = scmp.lt.s32.totalorder %s18, 1
      %s288 = scalar_select %p287, %s18, 1
      %s289 = smul.addr %s288, 8
      %s290 = scalar_lea.vmem %s1, %s289
      %p291 = scmp.lt.s32.totalorder %s18, 1
      %s292 = scalar_select %p291, %s18, 1
      %s293 = smul.addr %s292, 2
      %s294 = smul.addr %s293, 8
      %s295 = scalar_lea.vmem %s7, %s294
      %v296 = vld [vmem:[%s286] sm:$0xff]
      %v297 = vld [vmem:[%s286 + $0x8] sm:$0xff]
      %v298 = vld [vmem:[%s3] sm:$0xff]
      %v299 = vld [vmem:[%s3 + $0x8] sm:$0xff]
      %v300 = vld [vmem:[%s3 + $0x10] sm:$0xff]
      %v301 = vld [vmem:[%s3 + $0x18] sm:$0xff]
      %v302 = vld [vmem:[%s3 + $0x20] sm:$0xff]
      %v303 = vld [vmem:[%s3 + $0x28] sm:$0xff]
      %v304 = vld [vmem:[%s3 + $0x30] sm:$0xff]
      %v305 = vld [vmem:[%s3 + $0x38] sm:$0xff]
      %v306 = vld [vmem:[%s3 + $0x40] sm:$0xff]
      %v307 = vld [vmem:[%s3 + $0x48] sm:$0xff]
      %v308 = vlaneseq
      %v309 = vand.u32 %v308, 127
      %v310 = vadd.s32 %v309, 128
      %v311 = vand.u32 %v309, 15
      %v312 = vand.u32 %v310, 15
      %v313 = vld [vmem:[%s2] sm:$0xff]
      %314 = vrot.lane.b32.xlu0 %v296, 51
      %v315 = vpop.permute.xlu0 %314
      %316 = vrot.lane.b32.xlu0 %v297, 51
      %v317 = vpop.permute.xlu0 %316
      %vm318 = vcmp.lt.s32.totalorder %v309, 51
      %v319 = vsel %vm318, %v315, %v317
      %v320 = vsel %vm318, %v317, %v315
      %vm321 = vcmp.ge.s32.totalorder %v309, 48
      %vm322 = vcmp.ge.s32.totalorder %v310, 48
      %vm323 = vcmp.ge.s32.totalorder %v311, 3
      %vm324 = vcmp.ge.s32.totalorder %v312, 3
      %vm325 = vmand %vm321, %vm323
      %vm326 = vmand %vm322, %vm324
      %v327 = vsel %vm325, 1, 0
      %v328 = vsel %vm326, 1, 0
      %vm329 = vcmp.eq.s32.totalorder %v327, 1
      %vm330 = vcmp.eq.s32.totalorder %v328, 1
      %v331 = vsel %vm329, %v320, 0.0
      %v332 = vsel %vm330, %v319, 0.0
      %334 = vset.pattern.permute.xlu0 0
      %335 = vperm.xlu0 %334, %v313
      %v336 = vpop.permute.xlu0 %335
      %v338 = vmul.f32 %v331, %v336
      %v339 = vmul.f32 %v332, %v336
      %v340 = vadd.f32 %v338, 0.0
      %v341 = vadd.f32 %v339, 0.0
      %342 = vrot.lane.b32.xlu0 %v296, 50
      %v343 = vpop.permute.xlu0 %342
      %344 = vrot.lane.b32.xlu0 %v297, 50
      %v345 = vpop.permute.xlu0 %344
      %vm346 = vcmp.lt.s32.totalorder %v309, 50
      %v347 = vsel %vm346, %v343, %v345
      %v348 = vsel %vm346, %v345, %v343
      %vm349 = vcmp.ge.s32.totalorder %v311, 2
      %vm350 = vcmp.ge.s32.totalorder %v312, 2
      %vm351 = vmand %vm321, %vm349
      %vm352 = vmand %vm322, %vm350
      %v353 = vsel %vm351, 1, 0
      %v354 = vsel %vm352, 1, 0
      %vm355 = vcmp.eq.s32.totalorder %v353, 1
      %vm356 = vcmp.eq.s32.totalorder %v354, 1
      %v357 = vsel %vm355, %v348, 0.0
      %v358 = vsel %vm356, %v347, 0.0
      %359 = vset.pattern.permute.xlu0 1
      %360 = vperm.xlu0 %359, %v313
      %v361 = vpop.permute.xlu0 %360
      %v363 = vmul.f32 %v357, %v361
      %v364 = vmul.f32 %v358, %v361
      %v365 = vadd.f32 %v340, %v363
      %v366 = vadd.f32 %v341, %v364
      %367 = vrot.lane.b32.xlu0 %v296, 49
      %v368 = vpop.permute.xlu0 %367
      %369 = vrot.lane.b32.xlu0 %v297, 49
      %v370 = vpop.permute.xlu0 %369
      %vm371 = vcmp.lt.s32.totalorder %v309, 49
      %v372 = vsel %vm371, %v368, %v370
      %v373 = vsel %vm371, %v370, %v368
      %vm374 = vcmp.ge.s32.totalorder %v311, 1
      %vm375 = vcmp.ge.s32.totalorder %v312, 1
      %vm376 = vmand %vm321, %vm374
      %vm377 = vmand %vm322, %vm375
      %v378 = vsel %vm376, 1, 0
      %v379 = vsel %vm377, 1, 0
      %vm380 = vcmp.eq.s32.totalorder %v378, 1
      %vm381 = vcmp.eq.s32.totalorder %v379, 1
      %v382 = vsel %vm380, %v373, 0.0
      %v383 = vsel %vm381, %v372, 0.0
      %384 = vset.pattern.permute.xlu0 2
      %385 = vperm.xlu0 %384, %v313
      %v386 = vpop.permute.xlu0 %385
      %v388 = vmul.f32 %v382, %v386
      %v389 = vmul.f32 %v383, %v386
      %v390 = vadd.f32 %v365, %v388
      %v391 = vadd.f32 %v366, %v389
      %392 = vrot.lane.b32.xlu0 %v296, 48
      %v393 = vpop.permute.xlu0 %392
      %394 = vrot.lane.b32.xlu0 %v297, 48
      %v395 = vpop.permute.xlu0 %394
      %vm396 = vcmp.lt.s32.totalorder %v309, 48
      %v397 = vsel %vm396, %v393, %v395
      %v398 = vsel %vm396, %v395, %v393
      %v399 = vsel %vm321, 1, 0
      %v400 = vsel %vm322, 1, 0
      %vm401 = vcmp.eq.s32.totalorder %v399, 1
      %vm402 = vcmp.eq.s32.totalorder %v400, 1
      %v403 = vsel %vm401, %v398, 0.0
      %v404 = vsel %vm402, %v397, 0.0
      %405 = vset.pattern.permute.xlu0 3
      %406 = vperm.xlu0 %405, %v313
      %v407 = vpop.permute.xlu0 %406
      %v409 = vmul.f32 %v403, %v407
      %v410 = vmul.f32 %v404, %v407
      %v411 = vadd.f32 %v390, %v409
      %v412 = vadd.f32 %v391, %v410
      %413 = vrot.lane.b32.xlu0 %v296, 47
      %v414 = vpop.permute.xlu0 %413
      %415 = vrot.lane.b32.xlu0 %v297, 47
      %v416 = vpop.permute.xlu0 %415
      %vm417 = vcmp.lt.s32.totalorder %v309, 47
      %v418 = vsel %vm417, %v414, %v416
      %v419 = vsel %vm417, %v416, %v414
      %vm420 = vcmp.lt.s32.totalorder %v311, 15
      %vm421 = vcmp.lt.s32.totalorder %v312, 15
      %vm422 = vmand %vm321, %vm420
      %vm423 = vmand %vm322, %vm421
      %v424 = vsel %vm422, 1, 0
      %v425 = vsel %vm423, 1, 0
      %vm426 = vcmp.eq.s32.totalorder %v424, 1
      %vm427 = vcmp.eq.s32.totalorder %v425, 1
      %v428 = vsel %vm426, %v419, 0.0
      %v429 = vsel %vm427, %v418, 0.0
      %430 = vset.pattern.permute.xlu0 4
      %431 = vperm.xlu0 %430, %v313
      %v432 = vpop.permute.xlu0 %431
      %v434 = vmul.f32 %v428, %v432
      %v435 = vmul.f32 %v429, %v432
      %v436 = vadd.f32 %v411, %v434
      %v437 = vadd.f32 %v412, %v435
      %438 = vrot.lane.b32.xlu0 %v296, 46
      %v439 = vpop.permute.xlu0 %438
      %440 = vrot.lane.b32.xlu0 %v297, 46
      %v441 = vpop.permute.xlu0 %440
      %vm442 = vcmp.lt.s32.totalorder %v309, 46
      %v443 = vsel %vm442, %v439, %v441
      %v444 = vsel %vm442, %v441, %v439
      %vm445 = vcmp.lt.s32.totalorder %v311, 14
      %vm446 = vcmp.lt.s32.totalorder %v312, 14
      %vm447 = vmand %vm321, %vm445
      %vm448 = vmand %vm322, %vm446
      %v449 = vsel %vm447, 1, 0
      %v450 = vsel %vm448, 1, 0
      %vm451 = vcmp.eq.s32.totalorder %v449, 1
      %vm452 = vcmp.eq.s32.totalorder %v450, 1
      %v453 = vsel %vm451, %v444, 0.0
      %v454 = vsel %vm452, %v443, 0.0
      %455 = vset.pattern.permute.xlu0 5
      %456 = vperm.xlu0 %455, %v313
      %v457 = vpop.permute.xlu0 %456
      %v459 = vmul.f32 %v453, %v457
      %v460 = vmul.f32 %v454, %v457
      %v461 = vadd.f32 %v436, %v459
      %v462 = vadd.f32 %v437, %v460
      %463 = vrot.lane.b32.xlu0 %v296, 45
      %v464 = vpop.permute.xlu0 %463
      %465 = vrot.lane.b32.xlu0 %v297, 45
      %v466 = vpop.permute.xlu0 %465
      %vm467 = vcmp.lt.s32.totalorder %v309, 45
      %v468 = vsel %vm467, %v464, %v466
      %v469 = vsel %vm467, %v466, %v464
      %vm470 = vcmp.lt.s32.totalorder %v311, 13
      %vm471 = vcmp.lt.s32.totalorder %v312, 13
      %vm472 = vmand %vm321, %vm470
      %vm473 = vmand %vm322, %vm471
      %v474 = vsel %vm472, 1, 0
      %v475 = vsel %vm473, 1, 0
      %vm476 = vcmp.eq.s32.totalorder %v474, 1
      %vm477 = vcmp.eq.s32.totalorder %v475, 1
      %v478 = vsel %vm476, %v469, 0.0
      %v479 = vsel %vm477, %v468, 0.0
      %480 = vset.pattern.permute.xlu0 6
      %481 = vperm.xlu0 %480, %v313
      %v482 = vpop.permute.xlu0 %481
      %v484 = vmul.f32 %v478, %v482
      %v485 = vmul.f32 %v479, %v482
      %v486 = vadd.f32 %v461, %v484
      %v487 = vadd.f32 %v462, %v485
      %488 = vrot.lane.b32.xlu0 %v296, 35
      %v489 = vpop.permute.xlu0 %488
      %490 = vrot.lane.b32.xlu0 %v297, 35
      %v491 = vpop.permute.xlu0 %490
      %vm492 = vcmp.lt.s32.totalorder %v309, 35
      %v493 = vsel %vm492, %v489, %v491
      %v494 = vsel %vm492, %v491, %v489
      %vm495 = vcmp.ge.s32.totalorder %v309, 32
      %vm496 = vcmp.ge.s32.totalorder %v310, 32
      %vm497 = vmand %vm495, %vm323
      %vm498 = vmand %vm496, %vm324
      %v499 = vsel %vm497, 1, 0
      %v500 = vsel %vm498, 1, 0
      %vm501 = vcmp.eq.s32.totalorder %v499, 1
      %vm502 = vcmp.eq.s32.totalorder %v500, 1
      %v503 = vsel %vm501, %v494, 0.0
      %v504 = vsel %vm502, %v493, 0.0
      %505 = vset.pattern.permute.xlu0 7
      %506 = vperm.xlu0 %505, %v313
      %v507 = vpop.permute.xlu0 %506
      %v509 = vmul.f32 %v503, %v507
      %v510 = vmul.f32 %v504, %v507
      %v511 = vadd.f32 %v486, %v509
      %v512 = vadd.f32 %v487, %v510
      %513 = vrot.lane.b32.xlu0 %v296, 34
      %v514 = vpop.permute.xlu0 %513
      %515 = vrot.lane.b32.xlu0 %v297, 34
      %v516 = vpop.permute.xlu0 %515
      %vm517 = vcmp.lt.s32.totalorder %v309, 34
      %v518 = vsel %vm517, %v514, %v516
      %v519 = vsel %vm517, %v516, %v514
      %vm520 = vmand %vm495, %vm349
      %vm521 = vmand %vm496, %vm350
      %v522 = vsel %vm520, 1, 0
      %v523 = vsel %vm521, 1, 0
      %vm524 = vcmp.eq.s32.totalorder %v522, 1
      %vm525 = vcmp.eq.s32.totalorder %v523, 1
      %v526 = vsel %vm524, %v519, 0.0
      %v527 = vsel %vm525, %v518, 0.0
      %528 = vset.pattern.permute.xlu0 8
      %529 = vperm.xlu0 %528, %v313
      %v530 = vpop.permute.xlu0 %529
      %v532 = vmul.f32 %v526, %v530
      %v533 = vmul.f32 %v527, %v530
      %v534 = vadd.f32 %v511, %v532
      %v535 = vadd.f32 %v512, %v533
      %536 = vrot.lane.b32.xlu0 %v296, 33
      %v537 = vpop.permute.xlu0 %536
      %538 = vrot.lane.b32.xlu0 %v297, 33
      %v539 = vpop.permute.xlu0 %538
      %vm540 = vcmp.lt.s32.totalorder %v309, 33
      %v541 = vsel %vm540, %v537, %v539
      %v542 = vsel %vm540, %v539, %v537
      %vm543 = vmand %vm495, %vm374
      %vm544 = vmand %vm496, %vm375
      %v545 = vsel %vm543, 1, 0
      %v546 = vsel %vm544, 1, 0
      %vm547 = vcmp.eq.s32.totalorder %v545, 1
      %vm548 = vcmp.eq.s32.totalorder %v546, 1
      %v549 = vsel %vm547, %v542, 0.0
      %v550 = vsel %vm548, %v541, 0.0
      %551 = vset.pattern.permute.xlu0 9
      %552 = vperm.xlu0 %551, %v313
      %v553 = vpop.permute.xlu0 %552
      %v555 = vmul.f32 %v549, %v553
      %v556 = vmul.f32 %v550, %v553
      %v557 = vadd.f32 %v534, %v555
      %v558 = vadd.f32 %v535, %v556
      %559 = vrot.lane.b32.xlu0 %v296, 32
      %v560 = vpop.permute.xlu0 %559
      %561 = vrot.lane.b32.xlu0 %v297, 32
      %v562 = vpop.permute.xlu0 %561
      %vm563 = vcmp.lt.s32.totalorder %v309, 32
      %v564 = vsel %vm563, %v560, %v562
      %v565 = vsel %vm563, %v562, %v560
      %v566 = vsel %vm495, 1, 0
      %v567 = vsel %vm496, 1, 0
      %vm568 = vcmp.eq.s32.totalorder %v566, 1
      %vm569 = vcmp.eq.s32.totalorder %v567, 1
      %v570 = vsel %vm568, %v565, 0.0
      %v571 = vsel %vm569, %v564, 0.0
      %572 = vset.pattern.permute.xlu0 10
      %573 = vperm.xlu0 %572, %v313
      %v574 = vpop.permute.xlu0 %573
      %v576 = vmul.f32 %v570, %v574
      %v577 = vmul.f32 %v571, %v574
      %v578 = vadd.f32 %v557, %v576
      %v579 = vadd.f32 %v558, %v577
      %580 = vrot.lane.b32.xlu0 %v296, 31
      %v581 = vpop.permute.xlu0 %580
      %582 = vrot.lane.b32.xlu0 %v297, 31
      %v583 = vpop.permute.xlu0 %582
      %vm584 = vcmp.lt.s32.totalorder %v309, 31
      %v585 = vsel %vm584, %v581, %v583
      %v586 = vsel %vm584, %v583, %v581
      %vm587 = vmand %vm495, %vm420
      %vm588 = vmand %vm496, %vm421
      %v589 = vsel %vm587, 1, 0
      %v590 = vsel %vm588, 1, 0
      %vm591 = vcmp.eq.s32.totalorder %v589, 1
      %vm592 = vcmp.eq.s32.totalorder %v590, 1
      %v593 = vsel %vm591, %v586, 0.0
      %v594 = vsel %vm592, %v585, 0.0
      %595 = vset.pattern.permute.xlu0 11
      %596 = vperm.xlu0 %595, %v313
      %v597 = vpop.permute.xlu0 %596
      %v599 = vmul.f32 %v593, %v597
      %v600 = vmul.f32 %v594, %v597
      %v601 = vadd.f32 %v578, %v599
      %v602 = vadd.f32 %v579, %v600
      %603 = vrot.lane.b32.xlu0 %v296, 30
      %v604 = vpop.permute.xlu0 %603
      %605 = vrot.lane.b32.xlu0 %v297, 30
      %v606 = vpop.permute.xlu0 %605
      %vm607 = vcmp.lt.s32.totalorder %v309, 30
      %v608 = vsel %vm607, %v604, %v606
      %v609 = vsel %vm607, %v606, %v604
      %vm610 = vmand %vm495, %vm445
      %vm611 = vmand %vm496, %vm446
      %v612 = vsel %vm610, 1, 0
      %v613 = vsel %vm611, 1, 0
      %vm614 = vcmp.eq.s32.totalorder %v612, 1
      %vm615 = vcmp.eq.s32.totalorder %v613, 1
      %v616 = vsel %vm614, %v609, 0.0
      %v617 = vsel %vm615, %v608, 0.0
      %618 = vset.pattern.permute.xlu0 12
      %619 = vperm.xlu0 %618, %v313
      %v620 = vpop.permute.xlu0 %619
      %v622 = vmul.f32 %v616, %v620
      %v623 = vmul.f32 %v617, %v620
      %v624 = vadd.f32 %v601, %v622
      %v625 = vadd.f32 %v602, %v623
      %626 = vrot.lane.b32.xlu0 %v296, 29
      %v627 = vpop.permute.xlu0 %626
      %628 = vrot.lane.b32.xlu0 %v297, 29
      %v629 = vpop.permute.xlu0 %628
      %vm630 = vcmp.lt.s32.totalorder %v309, 29
      %v631 = vsel %vm630, %v627, %v629
      %v632 = vsel %vm630, %v629, %v627
      %vm633 = vmand %vm495, %vm470
      %vm634 = vmand %vm496, %vm471
      %v635 = vsel %vm633, 1, 0
      %v636 = vsel %vm634, 1, 0
      %vm637 = vcmp.eq.s32.totalorder %v635, 1
      %vm638 = vcmp.eq.s32.totalorder %v636, 1
      %v639 = vsel %vm637, %v632, 0.0
      %v640 = vsel %vm638, %v631, 0.0
      %641 = vset.pattern.permute.xlu0 13
      %642 = vperm.xlu0 %641, %v313
      %v643 = vpop.permute.xlu0 %642
      %v645 = vmul.f32 %v639, %v643
      %v646 = vmul.f32 %v640, %v643
      %v647 = vadd.f32 %v624, %v645
      %v648 = vadd.f32 %v625, %v646
      %649 = vrot.lane.b32.xlu0 %v296, 19
      %v650 = vpop.permute.xlu0 %649
      %651 = vrot.lane.b32.xlu0 %v297, 19
      %v652 = vpop.permute.xlu0 %651
      %vm653 = vcmp.lt.s32.totalorder %v309, 19
      %v654 = vsel %vm653, %v650, %v652
      %v655 = vsel %vm653, %v652, %v650
      %vm656 = vcmp.ge.s32.totalorder %v309, 16
      %vm657 = vcmp.ge.s32.totalorder %v310, 16
      %vm658 = vmand %vm656, %vm323
      %vm659 = vmand %vm657, %vm324
      %v660 = vsel %vm658, 1, 0
      %v661 = vsel %vm659, 1, 0
      %vm662 = vcmp.eq.s32.totalorder %v660, 1
      %vm663 = vcmp.eq.s32.totalorder %v661, 1
      %v664 = vsel %vm662, %v655, 0.0
      %v665 = vsel %vm663, %v654, 0.0
      %666 = vset.pattern.permute.xlu0 14
      %667 = vperm.xlu0 %666, %v313
      %v668 = vpop.permute.xlu0 %667
      %v670 = vmul.f32 %v664, %v668
      %v671 = vmul.f32 %v665, %v668
      %v672 = vadd.f32 %v647, %v670
      %v673 = vadd.f32 %v648, %v671
      %674 = vrot.lane.b32.xlu0 %v296, 18
      %v675 = vpop.permute.xlu0 %674
      %676 = vrot.lane.b32.xlu0 %v297, 18
      %v677 = vpop.permute.xlu0 %676
      %vm678 = vcmp.lt.s32.totalorder %v309, 18
      %v679 = vsel %vm678, %v675, %v677
      %v680 = vsel %vm678, %v677, %v675
      %vm681 = vmand %vm656, %vm349
      %vm682 = vmand %vm657, %vm350
      %v683 = vsel %vm681, 1, 0
      %v684 = vsel %vm682, 1, 0
      %vm685 = vcmp.eq.s32.totalorder %v683, 1
      %vm686 = vcmp.eq.s32.totalorder %v684, 1
      %v687 = vsel %vm685, %v680, 0.0
      %v688 = vsel %vm686, %v679, 0.0
      %689 = vset.pattern.permute.xlu0 15
      %690 = vperm.xlu0 %689, %v313
      %v691 = vpop.permute.xlu0 %690
      %v693 = vmul.f32 %v687, %v691
      %v694 = vmul.f32 %v688, %v691
      %v695 = vadd.f32 %v672, %v693
      %v696 = vadd.f32 %v673, %v694
      %697 = vrot.lane.b32.xlu0 %v296, 17
      %v698 = vpop.permute.xlu0 %697
      %699 = vrot.lane.b32.xlu0 %v297, 17
      %v700 = vpop.permute.xlu0 %699
      %vm701 = vcmp.lt.s32.totalorder %v309, 17
      %v702 = vsel %vm701, %v698, %v700
      %v703 = vsel %vm701, %v700, %v698
      %vm704 = vmand %vm656, %vm374
      %vm705 = vmand %vm657, %vm375
      %v706 = vsel %vm704, 1, 0
      %v707 = vsel %vm705, 1, 0
      %vm708 = vcmp.eq.s32.totalorder %v706, 1
      %vm709 = vcmp.eq.s32.totalorder %v707, 1
      %v710 = vsel %vm708, %v703, 0.0
      %v711 = vsel %vm709, %v702, 0.0
      %712 = vset.pattern.permute.xlu0 16
      %713 = vperm.xlu0 %712, %v313
      %v714 = vpop.permute.xlu0 %713
      %v716 = vmul.f32 %v710, %v714
      %v717 = vmul.f32 %v711, %v714
      %v718 = vadd.f32 %v695, %v716
      %v719 = vadd.f32 %v696, %v717
      %720 = vrot.lane.b32.xlu0 %v296, 16
      %v721 = vpop.permute.xlu0 %720
      %722 = vrot.lane.b32.xlu0 %v297, 16
      %v723 = vpop.permute.xlu0 %722
      %vm724 = vcmp.lt.s32.totalorder %v309, 16
      %v725 = vsel %vm724, %v721, %v723
      %v726 = vsel %vm724, %v723, %v721
      %v727 = vsel %vm656, 1, 0
      %v728 = vsel %vm657, 1, 0
      %vm729 = vcmp.eq.s32.totalorder %v727, 1
      %vm730 = vcmp.eq.s32.totalorder %v728, 1
      %v731 = vsel %vm729, %v726, 0.0
      %v732 = vsel %vm730, %v725, 0.0
      %733 = vset.pattern.permute.xlu0 17
      %734 = vperm.xlu0 %733, %v313
      %v735 = vpop.permute.xlu0 %734
      %v737 = vmul.f32 %v731, %v735
      %v738 = vmul.f32 %v732, %v735
      %v739 = vadd.f32 %v718, %v737
      %v740 = vadd.f32 %v719, %v738
      %741 = vrot.lane.b32.xlu0 %v296, 15
      %v742 = vpop.permute.xlu0 %741
      %743 = vrot.lane.b32.xlu0 %v297, 15
      %v744 = vpop.permute.xlu0 %743
      %vm745 = vcmp.lt.s32.totalorder %v309, 15
      %v746 = vsel %vm745, %v742, %v744
      %v747 = vsel %vm745, %v744, %v742
      %vm748 = vmand %vm656, %vm420
      %vm749 = vmand %vm657, %vm421
      %v750 = vsel %vm748, 1, 0
      %v751 = vsel %vm749, 1, 0
      %vm752 = vcmp.eq.s32.totalorder %v750, 1
      %vm753 = vcmp.eq.s32.totalorder %v751, 1
      %v754 = vsel %vm752, %v747, 0.0
      %v755 = vsel %vm753, %v746, 0.0
      %756 = vset.pattern.permute.xlu0 18
      %757 = vperm.xlu0 %756, %v313
      %v758 = vpop.permute.xlu0 %757
      %v760 = vmul.f32 %v754, %v758
      %v761 = vmul.f32 %v755, %v758
      %v762 = vadd.f32 %v739, %v760
      %v763 = vadd.f32 %v740, %v761
      %764 = vrot.lane.b32.xlu0 %v296, 14
      %v765 = vpop.permute.xlu0 %764
      %766 = vrot.lane.b32.xlu0 %v297, 14
      %v767 = vpop.permute.xlu0 %766
      %vm768 = vcmp.lt.s32.totalorder %v309, 14
      %v769 = vsel %vm768, %v765, %v767
      %v770 = vsel %vm768, %v767, %v765
      %vm771 = vmand %vm656, %vm445
      %vm772 = vmand %vm657, %vm446
      %v773 = vsel %vm771, 1, 0
      %v774 = vsel %vm772, 1, 0
      %vm775 = vcmp.eq.s32.totalorder %v773, 1
      %vm776 = vcmp.eq.s32.totalorder %v774, 1
      %v777 = vsel %vm775, %v770, 0.0
      %v778 = vsel %vm776, %v769, 0.0
      %779 = vset.pattern.permute.xlu0 19
      %780 = vperm.xlu0 %779, %v313
      %v781 = vpop.permute.xlu0 %780
      %v783 = vmul.f32 %v777, %v781
      %v784 = vmul.f32 %v778, %v781
      %v785 = vadd.f32 %v762, %v783
      %v786 = vadd.f32 %v763, %v784
      %787 = vrot.lane.b32.xlu0 %v296, 13
      %v788 = vpop.permute.xlu0 %787
      %789 = vrot.lane.b32.xlu0 %v297, 13
      %v790 = vpop.permute.xlu0 %789
      %vm791 = vcmp.lt.s32.totalorder %v309, 13
      %v792 = vsel %vm791, %v788, %v790
      %v793 = vsel %vm791, %v790, %v788
      %vm794 = vmand %vm656, %vm470
      %vm795 = vmand %vm657, %vm471
      %v796 = vsel %vm794, 1, 0
      %v797 = vsel %vm795, 1, 0
      %vm798 = vcmp.eq.s32.totalorder %v796, 1
      %vm799 = vcmp.eq.s32.totalorder %v797, 1
      %v800 = vsel %vm798, %v793, 0.0
      %v801 = vsel %vm799, %v792, 0.0
      %802 = vset.pattern.permute.xlu0 20
      %803 = vperm.xlu0 %802, %v313
      %v804 = vpop.permute.xlu0 %803
      %v806 = vmul.f32 %v800, %v804
      %v807 = vmul.f32 %v801, %v804
      %v808 = vadd.f32 %v785, %v806
      %v809 = vadd.f32 %v786, %v807
      %810 = vrot.lane.b32.xlu0 %v296, 3
      %v811 = vpop.permute.xlu0 %810
      %812 = vrot.lane.b32.xlu0 %v297, 3
      %v813 = vpop.permute.xlu0 %812
      %vm814 = vcmp.lt.s32.totalorder %v309, 3
      %v815 = vsel %vm814, %v811, %v813
      %v816 = vsel %vm814, %v813, %v811
      %v817 = vsel %vm323, 1, 0
      %v818 = vsel %vm324, 1, 0
      %vm819 = vcmp.eq.s32.totalorder %v817, 1
      %vm820 = vcmp.eq.s32.totalorder %v818, 1
      %v821 = vsel %vm819, %v816, 0.0
      %v822 = vsel %vm820, %v815, 0.0
      %823 = vset.pattern.permute.xlu0 21
      %824 = vperm.xlu0 %823, %v313
      %v825 = vpop.permute.xlu0 %824
      %v827 = vmul.f32 %v821, %v825
      %v828 = vmul.f32 %v822, %v825
      %v829 = vadd.f32 %v808, %v827
      %v830 = vadd.f32 %v809, %v828
      %831 = vrot.lane.b32.xlu0 %v296, 2
      %v832 = vpop.permute.xlu0 %831
      %833 = vrot.lane.b32.xlu0 %v297, 2
      %v834 = vpop.permute.xlu0 %833
      %vm835 = vcmp.lt.s32.totalorder %v309, 2
      %v836 = vsel %vm835, %v832, %v834
      %v837 = vsel %vm835, %v834, %v832
      %v838 = vsel %vm349, 1, 0
      %v839 = vsel %vm350, 1, 0
      %vm840 = vcmp.eq.s32.totalorder %v838, 1
      %vm841 = vcmp.eq.s32.totalorder %v839, 1
      %v842 = vsel %vm840, %v837, 0.0
      %v843 = vsel %vm841, %v836, 0.0
      %844 = vset.pattern.permute.xlu0 22
      %845 = vperm.xlu0 %844, %v313
      %v846 = vpop.permute.xlu0 %845
      %v848 = vmul.f32 %v842, %v846
      %v849 = vmul.f32 %v843, %v846
      %v850 = vadd.f32 %v829, %v848
      %v851 = vadd.f32 %v830, %v849
      %852 = vrot.lane.b32.xlu0 %v296, 1
      %v853 = vpop.permute.xlu0 %852
      %854 = vrot.lane.b32.xlu0 %v297, 1
      %v855 = vpop.permute.xlu0 %854
      %vm856 = vcmp.lt.s32.totalorder %v309, 1
      %v857 = vsel %vm856, %v853, %v855
      %v858 = vsel %vm856, %v855, %v853
      %v859 = vsel %vm374, 1, 0
      %v860 = vsel %vm375, 1, 0
      %vm861 = vcmp.eq.s32.totalorder %v859, 1
      %vm862 = vcmp.eq.s32.totalorder %v860, 1
      %v863 = vsel %vm861, %v858, 0.0
      %v864 = vsel %vm862, %v857, 0.0
      %865 = vset.pattern.permute.xlu0 23
      %866 = vperm.xlu0 %865, %v313
      %v867 = vpop.permute.xlu0 %866
      %v869 = vmul.f32 %v863, %v867
      %v870 = vmul.f32 %v864, %v867
      %v871 = vadd.f32 %v850, %v869
      %v872 = vadd.f32 %v851, %v870
      %873 = vset.pattern.permute.xlu0 24
      %874 = vperm.xlu0 %873, %v313
      %v875 = vpop.permute.xlu0 %874
      %v877 = vmul.f32 %v296, %v875
      %v878 = vmul.f32 %v297, %v875
      %v879 = vadd.f32 %v871, %v877
      %v880 = vadd.f32 %v872, %v878
      %881 = vrot.lane.b32.xlu0 %v296, 127
      %v882 = vpop.permute.xlu0 %881
      %883 = vrot.lane.b32.xlu0 %v297, 127
      %v884 = vpop.permute.xlu0 %883
      %vm885 = vcmp.lt.s32.totalorder %v309, 127
      %v886 = vsel %vm885, %v882, %v884
      %v887 = vsel %vm885, %v884, %v882
      %v888 = vsel %vm420, 1, 0
      %v889 = vsel %vm421, 1, 0
      %vm890 = vcmp.eq.s32.totalorder %v888, 1
      %vm891 = vcmp.eq.s32.totalorder %v889, 1
      %v892 = vsel %vm890, %v886, 0.0
      %v893 = vsel %vm891, %v887, 0.0
      %894 = vset.pattern.permute.xlu0 25
      %895 = vperm.xlu0 %894, %v313
      %v896 = vpop.permute.xlu0 %895
      %v898 = vmul.f32 %v892, %v896
      %v899 = vmul.f32 %v893, %v896
      %v900 = vadd.f32 %v879, %v898
      %v901 = vadd.f32 %v880, %v899
      %902 = vrot.lane.b32.xlu0 %v296, 126
      %v903 = vpop.permute.xlu0 %902
      %904 = vrot.lane.b32.xlu0 %v297, 126
      %v905 = vpop.permute.xlu0 %904
      %vm906 = vcmp.lt.s32.totalorder %v309, 126
      %v907 = vsel %vm906, %v903, %v905
      %v908 = vsel %vm906, %v905, %v903
      %v909 = vsel %vm445, 1, 0
      %v910 = vsel %vm446, 1, 0
      %vm911 = vcmp.eq.s32.totalorder %v909, 1
      %vm912 = vcmp.eq.s32.totalorder %v910, 1
      %v913 = vsel %vm911, %v907, 0.0
      %v914 = vsel %vm912, %v908, 0.0
      %915 = vset.pattern.permute.xlu0 26
      %916 = vperm.xlu0 %915, %v313
      %v917 = vpop.permute.xlu0 %916
      %v919 = vmul.f32 %v913, %v917
      %v920 = vmul.f32 %v914, %v917
      %v921 = vadd.f32 %v900, %v919
      %v922 = vadd.f32 %v901, %v920
      %923 = vrot.lane.b32.xlu0 %v296, 125
      %v924 = vpop.permute.xlu0 %923
      %925 = vrot.lane.b32.xlu0 %v297, 125
      %v926 = vpop.permute.xlu0 %925
      %vm927 = vcmp.lt.s32.totalorder %v309, 125
      %v928 = vsel %vm927, %v924, %v926
      %v929 = vsel %vm927, %v926, %v924
      %v930 = vsel %vm470, 1, 0
      %v931 = vsel %vm471, 1, 0
      %vm932 = vcmp.eq.s32.totalorder %v930, 1
      %vm933 = vcmp.eq.s32.totalorder %v931, 1
      %v934 = vsel %vm932, %v928, 0.0
      %v935 = vsel %vm933, %v929, 0.0
      %936 = vset.pattern.permute.xlu0 27
      %937 = vperm.xlu0 %936, %v313
      %v938 = vpop.permute.xlu0 %937
      %v940 = vmul.f32 %v934, %v938
      %v941 = vmul.f32 %v935, %v938
      %v942 = vadd.f32 %v921, %v940
      %v943 = vadd.f32 %v922, %v941
      %944 = vrot.lane.b32.xlu0 %v296, 115
      %v945 = vpop.permute.xlu0 %944
      %946 = vrot.lane.b32.xlu0 %v297, 115
      %v947 = vpop.permute.xlu0 %946
      %vm948 = vcmp.lt.s32.totalorder %v309, 115
      %v949 = vsel %vm948, %v945, %v947
      %v950 = vsel %vm948, %v947, %v945
      %vm951 = vcmp.lt.s32.totalorder %v309, 240
      %vm952 = vcmp.lt.s32.totalorder %v310, 240
      %vm953 = vmand %vm951, %vm323
      %vm954 = vmand %vm952, %vm324
      %v955 = vsel %vm953, 1, 0
      %v956 = vsel %vm954, 1, 0
      %vm957 = vcmp.eq.s32.totalorder %v955, 1
      %vm958 = vcmp.eq.s32.totalorder %v956, 1
      %v959 = vsel %vm957, %v949, 0.0
      %v960 = vsel %vm958, %v950, 0.0
      %961 = vset.pattern.permute.xlu0 28
      %962 = vperm.xlu0 %961, %v313
      %v963 = vpop.permute.xlu0 %962
      %v965 = vmul.f32 %v959, %v963
      %v966 = vmul.f32 %v960, %v963
      %v967 = vadd.f32 %v942, %v965
      %v968 = vadd.f32 %v943, %v966
      %969 = vrot.lane.b32.xlu0 %v296, 114
      %v970 = vpop.permute.xlu0 %969
      %971 = vrot.lane.b32.xlu0 %v297, 114
      %v972 = vpop.permute.xlu0 %971
      %vm973 = vcmp.lt.s32.totalorder %v309, 114
      %v974 = vsel %vm973, %v970, %v972
      %v975 = vsel %vm973, %v972, %v970
      %vm976 = vmand %vm951, %vm349
      %vm977 = vmand %vm952, %vm350
      %v978 = vsel %vm976, 1, 0
      %v979 = vsel %vm977, 1, 0
      %vm980 = vcmp.eq.s32.totalorder %v978, 1
      %vm981 = vcmp.eq.s32.totalorder %v979, 1
      %v982 = vsel %vm980, %v974, 0.0
      %v983 = vsel %vm981, %v975, 0.0
      %984 = vset.pattern.permute.xlu0 29
      %985 = vperm.xlu0 %984, %v313
      %v986 = vpop.permute.xlu0 %985
      %v988 = vmul.f32 %v982, %v986
      %v989 = vmul.f32 %v983, %v986
      %v990 = vadd.f32 %v967, %v988
      %v991 = vadd.f32 %v968, %v989
      %992 = vrot.lane.b32.xlu0 %v296, 113
      %v993 = vpop.permute.xlu0 %992
      %994 = vrot.lane.b32.xlu0 %v297, 113
      %v995 = vpop.permute.xlu0 %994
      %vm996 = vcmp.lt.s32.totalorder %v309, 113
      %v997 = vsel %vm996, %v993, %v995
      %v998 = vsel %vm996, %v995, %v993
      %vm999 = vmand %vm951, %vm374
      %vm1000 = vmand %vm952, %vm375
      %v1001 = vsel %vm999, 1, 0
      %v1002 = vsel %vm1000, 1, 0
      %vm1003 = vcmp.eq.s32.totalorder %v1001, 1
      %vm1004 = vcmp.eq.s32.totalorder %v1002, 1
      %v1005 = vsel %vm1003, %v997, 0.0
      %v1006 = vsel %vm1004, %v998, 0.0
      %1007 = vset.pattern.permute.xlu0 30
      %1008 = vperm.xlu0 %1007, %v313
      %v1009 = vpop.permute.xlu0 %1008
      %v1011 = vmul.f32 %v1005, %v1009
      %v1012 = vmul.f32 %v1006, %v1009
      %v1013 = vadd.f32 %v990, %v1011
      %v1014 = vadd.f32 %v991, %v1012
      %1015 = vrot.lane.b32.xlu0 %v296, 112
      %v1016 = vpop.permute.xlu0 %1015
      %1017 = vrot.lane.b32.xlu0 %v297, 112
      %v1018 = vpop.permute.xlu0 %1017
      %vm1019 = vcmp.lt.s32.totalorder %v309, 112
      %v1020 = vsel %vm1019, %v1016, %v1018
      %v1021 = vsel %vm1019, %v1018, %v1016
      %v1022 = vsel %vm951, 1, 0
      %v1023 = vsel %vm952, 1, 0
      %vm1024 = vcmp.eq.s32.totalorder %v1022, 1
      %vm1025 = vcmp.eq.s32.totalorder %v1023, 1
      %v1026 = vsel %vm1024, %v1020, 0.0
      %v1027 = vsel %vm1025, %v1021, 0.0
      %1028 = vset.pattern.permute.xlu0 31
      %1029 = vperm.xlu0 %1028, %v313
      %v1030 = vpop.permute.xlu0 %1029
      %v1032 = vmul.f32 %v1026, %v1030
      %v1033 = vmul.f32 %v1027, %v1030
      %v1034 = vadd.f32 %v1013, %v1032
      %v1035 = vadd.f32 %v1014, %v1033
      %1036 = vrot.lane.b32.xlu0 %v296, 111
      %v1037 = vpop.permute.xlu0 %1036
      %1038 = vrot.lane.b32.xlu0 %v297, 111
      %v1039 = vpop.permute.xlu0 %1038
      %vm1040 = vcmp.lt.s32.totalorder %v309, 111
      %v1041 = vsel %vm1040, %v1037, %v1039
      %v1042 = vsel %vm1040, %v1039, %v1037
      %vm1043 = vmand %vm951, %vm420
      %vm1044 = vmand %vm952, %vm421
      %v1045 = vsel %vm1043, 1, 0
      %v1046 = vsel %vm1044, 1, 0
      %vm1047 = vcmp.eq.s32.totalorder %v1045, 1
      %vm1048 = vcmp.eq.s32.totalorder %v1046, 1
      %v1049 = vsel %vm1047, %v1041, 0.0
      %v1050 = vsel %vm1048, %v1042, 0.0
      %1051 = vset.pattern.permute.xlu0 32
      %1052 = vperm.xlu0 %1051, %v313
      %v1053 = vpop.permute.xlu0 %1052
      %v1055 = vmul.f32 %v1049, %v1053
      %v1056 = vmul.f32 %v1050, %v1053
      %v1057 = vadd.f32 %v1034, %v1055
      %v1058 = vadd.f32 %v1035, %v1056
      %1059 = vrot.lane.b32.xlu0 %v296, 110
      %v1060 = vpop.permute.xlu0 %1059
      %1061 = vrot.lane.b32.xlu0 %v297, 110
      %v1062 = vpop.permute.xlu0 %1061
      %vm1063 = vcmp.lt.s32.totalorder %v309, 110
      %v1064 = vsel %vm1063, %v1060, %v1062
      %v1065 = vsel %vm1063, %v1062, %v1060
      %vm1066 = vmand %vm951, %vm445
      %vm1067 = vmand %vm952, %vm446
      %v1068 = vsel %vm1066, 1, 0
      %v1069 = vsel %vm1067, 1, 0
      %vm1070 = vcmp.eq.s32.totalorder %v1068, 1
      %vm1071 = vcmp.eq.s32.totalorder %v1069, 1
      %v1072 = vsel %vm1070, %v1064, 0.0
      %v1073 = vsel %vm1071, %v1065, 0.0
      %1074 = vset.pattern.permute.xlu0 33
      %1075 = vperm.xlu0 %1074, %v313
      %v1076 = vpop.permute.xlu0 %1075
      %v1078 = vmul.f32 %v1072, %v1076
      %v1079 = vmul.f32 %v1073, %v1076
      %v1080 = vadd.f32 %v1057, %v1078
      %v1081 = vadd.f32 %v1058, %v1079
      %1082 = vrot.lane.b32.xlu0 %v296, 109
      %v1083 = vpop.permute.xlu0 %1082
      %1084 = vrot.lane.b32.xlu0 %v297, 109
      %v1085 = vpop.permute.xlu0 %1084
      %vm1086 = vcmp.lt.s32.totalorder %v309, 109
      %v1087 = vsel %vm1086, %v1083, %v1085
      %v1088 = vsel %vm1086, %v1085, %v1083
      %vm1089 = vmand %vm951, %vm470
      %vm1090 = vmand %vm952, %vm471
      %v1091 = vsel %vm1089, 1, 0
      %v1092 = vsel %vm1090, 1, 0
      %vm1093 = vcmp.eq.s32.totalorder %v1091, 1
      %vm1094 = vcmp.eq.s32.totalorder %v1092, 1
      %v1095 = vsel %vm1093, %v1087, 0.0
      %v1096 = vsel %vm1094, %v1088, 0.0
      %1097 = vset.pattern.permute.xlu0 34
      %1098 = vperm.xlu0 %1097, %v313
      %v1099 = vpop.permute.xlu0 %1098
      %v1101 = vmul.f32 %v1095, %v1099
      %v1102 = vmul.f32 %v1096, %v1099
      %v1103 = vadd.f32 %v1080, %v1101
      %v1104 = vadd.f32 %v1081, %v1102
      %1105 = vrot.lane.b32.xlu0 %v296, 99
      %v1106 = vpop.permute.xlu0 %1105
      %1107 = vrot.lane.b32.xlu0 %v297, 99
      %v1108 = vpop.permute.xlu0 %1107
      %vm1109 = vcmp.lt.s32.totalorder %v309, 99
      %v1110 = vsel %vm1109, %v1106, %v1108
      %v1111 = vsel %vm1109, %v1108, %v1106
      %vm1112 = vcmp.lt.s32.totalorder %v309, 224
      %vm1113 = vcmp.lt.s32.totalorder %v310, 224
      %vm1114 = vmand %vm1112, %vm323
      %vm1115 = vmand %vm1113, %vm324
      %v1116 = vsel %vm1114, 1, 0
      %v1117 = vsel %vm1115, 1, 0
      %vm1118 = vcmp.eq.s32.totalorder %v1116, 1
      %vm1119 = vcmp.eq.s32.totalorder %v1117, 1
      %v1120 = vsel %vm1118, %v1110, 0.0
      %v1121 = vsel %vm1119, %v1111, 0.0
      %1122 = vset.pattern.permute.xlu0 35
      %1123 = vperm.xlu0 %1122, %v313
      %v1124 = vpop.permute.xlu0 %1123
      %v1126 = vmul.f32 %v1120, %v1124
      %v1127 = vmul.f32 %v1121, %v1124
      %v1128 = vadd.f32 %v1103, %v1126
      %v1129 = vadd.f32 %v1104, %v1127
      %1130 = vrot.lane.b32.xlu0 %v296, 98
      %v1131 = vpop.permute.xlu0 %1130
      %1132 = vrot.lane.b32.xlu0 %v297, 98
      %v1133 = vpop.permute.xlu0 %1132
      %vm1134 = vcmp.lt.s32.totalorder %v309, 98
      %v1135 = vsel %vm1134, %v1131, %v1133
      %v1136 = vsel %vm1134, %v1133, %v1131
      %vm1137 = vmand %vm1112, %vm349
      %vm1138 = vmand %vm1113, %vm350
      %v1139 = vsel %vm1137, 1, 0
      %v1140 = vsel %vm1138, 1, 0
      %vm1141 = vcmp.eq.s32.totalorder %v1139, 1
      %vm1142 = vcmp.eq.s32.totalorder %v1140, 1
      %v1143 = vsel %vm1141, %v1135, 0.0
      %v1144 = vsel %vm1142, %v1136, 0.0
      %1145 = vset.pattern.permute.xlu0 36
      %1146 = vperm.xlu0 %1145, %v313
      %v1147 = vpop.permute.xlu0 %1146
      %v1149 = vmul.f32 %v1143, %v1147
      %v1150 = vmul.f32 %v1144, %v1147
      %v1151 = vadd.f32 %v1128, %v1149
      %v1152 = vadd.f32 %v1129, %v1150
      %1153 = vrot.lane.b32.xlu0 %v296, 97
      %v1154 = vpop.permute.xlu0 %1153
      %1155 = vrot.lane.b32.xlu0 %v297, 97
      %v1156 = vpop.permute.xlu0 %1155
      %vm1157 = vcmp.lt.s32.totalorder %v309, 97
      %v1158 = vsel %vm1157, %v1154, %v1156
      %v1159 = vsel %vm1157, %v1156, %v1154
      %vm1160 = vmand %vm1112, %vm374
      %vm1161 = vmand %vm1113, %vm375
      %v1162 = vsel %vm1160, 1, 0
      %v1163 = vsel %vm1161, 1, 0
      %vm1164 = vcmp.eq.s32.totalorder %v1162, 1
      %vm1165 = vcmp.eq.s32.totalorder %v1163, 1
      %v1166 = vsel %vm1164, %v1158, 0.0
      %v1167 = vsel %vm1165, %v1159, 0.0
      %1168 = vset.pattern.permute.xlu0 37
      %1169 = vperm.xlu0 %1168, %v313
      %v1170 = vpop.permute.xlu0 %1169
      %v1172 = vmul.f32 %v1166, %v1170
      %v1173 = vmul.f32 %v1167, %v1170
      %v1174 = vadd.f32 %v1151, %v1172
      %v1175 = vadd.f32 %v1152, %v1173
      %1176 = vrot.lane.b32.xlu0 %v296, 96
      %v1177 = vpop.permute.xlu0 %1176
      %1178 = vrot.lane.b32.xlu0 %v297, 96
      %v1179 = vpop.permute.xlu0 %1178
      %vm1180 = vcmp.lt.s32.totalorder %v309, 96
      %v1181 = vsel %vm1180, %v1177, %v1179
      %v1182 = vsel %vm1180, %v1179, %v1177
      %v1183 = vsel %vm1112, 1, 0
      %v1184 = vsel %vm1113, 1, 0
      %vm1185 = vcmp.eq.s32.totalorder %v1183, 1
      %vm1186 = vcmp.eq.s32.totalorder %v1184, 1
      %v1187 = vsel %vm1185, %v1181, 0.0
      %v1188 = vsel %vm1186, %v1182, 0.0
      %1189 = vset.pattern.permute.xlu0 38
      %1190 = vperm.xlu0 %1189, %v313
      %v1191 = vpop.permute.xlu0 %1190
      %v1193 = vmul.f32 %v1187, %v1191
      %v1194 = vmul.f32 %v1188, %v1191
      %v1195 = vadd.f32 %v1174, %v1193
      %v1196 = vadd.f32 %v1175, %v1194
      %1197 = vrot.lane.b32.xlu0 %v296, 95
      %v1198 = vpop.permute.xlu0 %1197
      %1199 = vrot.lane.b32.xlu0 %v297, 95
      %v1200 = vpop.permute.xlu0 %1199
      %vm1201 = vcmp.lt.s32.totalorder %v309, 95
      %v1202 = vsel %vm1201, %v1198, %v1200
      %v1203 = vsel %vm1201, %v1200, %v1198
      %vm1204 = vmand %vm1112, %vm420
      %vm1205 = vmand %vm1113, %vm421
      %v1206 = vsel %vm1204, 1, 0
      %v1207 = vsel %vm1205, 1, 0
      %vm1208 = vcmp.eq.s32.totalorder %v1206, 1
      %vm1209 = vcmp.eq.s32.totalorder %v1207, 1
      %v1210 = vsel %vm1208, %v1202, 0.0
      %v1211 = vsel %vm1209, %v1203, 0.0
      %1212 = vset.pattern.permute.xlu0 39
      %1213 = vperm.xlu0 %1212, %v313
      %v1214 = vpop.permute.xlu0 %1213
      %v1216 = vmul.f32 %v1210, %v1214
      %v1217 = vmul.f32 %v1211, %v1214
      %v1218 = vadd.f32 %v1195, %v1216
      %v1219 = vadd.f32 %v1196, %v1217
      %1220 = vrot.lane.b32.xlu0 %v296, 94
      %v1221 = vpop.permute.xlu0 %1220
      %1222 = vrot.lane.b32.xlu0 %v297, 94
      %v1223 = vpop.permute.xlu0 %1222
      %vm1224 = vcmp.lt.s32.totalorder %v309, 94
      %v1225 = vsel %vm1224, %v1221, %v1223
      %v1226 = vsel %vm1224, %v1223, %v1221
      %vm1227 = vmand %vm1112, %vm445
      %vm1228 = vmand %vm1113, %vm446
      %v1229 = vsel %vm1227, 1, 0
      %v1230 = vsel %vm1228, 1, 0
      %vm1231 = vcmp.eq.s32.totalorder %v1229, 1
      %vm1232 = vcmp.eq.s32.totalorder %v1230, 1
      %v1233 = vsel %vm1231, %v1225, 0.0
      %v1234 = vsel %vm1232, %v1226, 0.0
      %1235 = vset.pattern.permute.xlu0 40
      %1236 = vperm.xlu0 %1235, %v313
      %v1237 = vpop.permute.xlu0 %1236
      %v1239 = vmul.f32 %v1233, %v1237
      %v1240 = vmul.f32 %v1234, %v1237
      %v1241 = vadd.f32 %v1218, %v1239
      %v1242 = vadd.f32 %v1219, %v1240
      %1243 = vrot.lane.b32.xlu0 %v296, 93
      %v1244 = vpop.permute.xlu0 %1243
      %1245 = vrot.lane.b32.xlu0 %v297, 93
      %v1246 = vpop.permute.xlu0 %1245
      %vm1247 = vcmp.lt.s32.totalorder %v309, 93
      %v1248 = vsel %vm1247, %v1244, %v1246
      %v1249 = vsel %vm1247, %v1246, %v1244
      %vm1250 = vmand %vm1112, %vm470
      %vm1251 = vmand %vm1113, %vm471
      %v1252 = vsel %vm1250, 1, 0
      %v1253 = vsel %vm1251, 1, 0
      %vm1254 = vcmp.eq.s32.totalorder %v1252, 1
      %vm1255 = vcmp.eq.s32.totalorder %v1253, 1
      %v1256 = vsel %vm1254, %v1248, 0.0
      %v1257 = vsel %vm1255, %v1249, 0.0
      %1258 = vset.pattern.permute.xlu0 41
      %1259 = vperm.xlu0 %1258, %v313
      %v1260 = vpop.permute.xlu0 %1259
      %v1262 = vmul.f32 %v1256, %v1260
      %v1263 = vmul.f32 %v1257, %v1260
      %v1264 = vadd.f32 %v1241, %v1262
      %v1265 = vadd.f32 %v1242, %v1263
      %1266 = vrot.lane.b32.xlu0 %v296, 83
      %v1267 = vpop.permute.xlu0 %1266
      %1268 = vrot.lane.b32.xlu0 %v297, 83
      %v1269 = vpop.permute.xlu0 %1268
      %vm1270 = vcmp.lt.s32.totalorder %v309, 83
      %v1271 = vsel %vm1270, %v1267, %v1269
      %v1272 = vsel %vm1270, %v1269, %v1267
      %vm1273 = vcmp.lt.s32.totalorder %v309, 208
      %vm1274 = vcmp.lt.s32.totalorder %v310, 208
      %vm1275 = vmand %vm1273, %vm323
      %vm1276 = vmand %vm1274, %vm324
      %v1277 = vsel %vm1275, 1, 0
      %v1278 = vsel %vm1276, 1, 0
      %vm1279 = vcmp.eq.s32.totalorder %v1277, 1
      %vm1280 = vcmp.eq.s32.totalorder %v1278, 1
      %v1281 = vsel %vm1279, %v1271, 0.0
      %v1282 = vsel %vm1280, %v1272, 0.0
      %1283 = vset.pattern.permute.xlu0 42
      %1284 = vperm.xlu0 %1283, %v313
      %v1285 = vpop.permute.xlu0 %1284
      %v1287 = vmul.f32 %v1281, %v1285
      %v1288 = vmul.f32 %v1282, %v1285
      %v1289 = vadd.f32 %v1264, %v1287
      %v1290 = vadd.f32 %v1265, %v1288
      %1291 = vrot.lane.b32.xlu0 %v296, 82
      %v1292 = vpop.permute.xlu0 %1291
      %1293 = vrot.lane.b32.xlu0 %v297, 82
      %v1294 = vpop.permute.xlu0 %1293
      %vm1295 = vcmp.lt.s32.totalorder %v309, 82
      %v1296 = vsel %vm1295, %v1292, %v1294
      %v1297 = vsel %vm1295, %v1294, %v1292
      %vm1298 = vmand %vm1273, %vm349
      %vm1299 = vmand %vm1274, %vm350
      %v1300 = vsel %vm1298, 1, 0
      %v1301 = vsel %vm1299, 1, 0
      %vm1302 = vcmp.eq.s32.totalorder %v1300, 1
      %vm1303 = vcmp.eq.s32.totalorder %v1301, 1
      %v1304 = vsel %vm1302, %v1296, 0.0
      %v1305 = vsel %vm1303, %v1297, 0.0
      %1306 = vset.pattern.permute.xlu0 43
      %1307 = vperm.xlu0 %1306, %v313
      %v1308 = vpop.permute.xlu0 %1307
      %v1310 = vmul.f32 %v1304, %v1308
      %v1311 = vmul.f32 %v1305, %v1308
      %v1312 = vadd.f32 %v1289, %v1310
      %v1313 = vadd.f32 %v1290, %v1311
      %1314 = vrot.lane.b32.xlu0 %v296, 81
      %v1315 = vpop.permute.xlu0 %1314
      %1316 = vrot.lane.b32.xlu0 %v297, 81
      %v1317 = vpop.permute.xlu0 %1316
      %vm1318 = vcmp.lt.s32.totalorder %v309, 81
      %v1319 = vsel %vm1318, %v1315, %v1317
      %v1320 = vsel %vm1318, %v1317, %v1315
      %vm1321 = vmand %vm1273, %vm374
      %vm1322 = vmand %vm1274, %vm375
      %v1323 = vsel %vm1321, 1, 0
      %v1324 = vsel %vm1322, 1, 0
      %vm1325 = vcmp.eq.s32.totalorder %v1323, 1
      %vm1326 = vcmp.eq.s32.totalorder %v1324, 1
      %v1327 = vsel %vm1325, %v1319, 0.0
      %v1328 = vsel %vm1326, %v1320, 0.0
      %1329 = vset.pattern.permute.xlu0 44
      %1330 = vperm.xlu0 %1329, %v313
      %v1331 = vpop.permute.xlu0 %1330
      %v1333 = vmul.f32 %v1327, %v1331
      %v1334 = vmul.f32 %v1328, %v1331
      %v1335 = vadd.f32 %v1312, %v1333
      %v1336 = vadd.f32 %v1313, %v1334
      %1337 = vrot.lane.b32.xlu0 %v296, 80
      %v1338 = vpop.permute.xlu0 %1337
      %1339 = vrot.lane.b32.xlu0 %v297, 80
      %v1340 = vpop.permute.xlu0 %1339
      %vm1341 = vcmp.lt.s32.totalorder %v309, 80
      %v1342 = vsel %vm1341, %v1338, %v1340
      %v1343 = vsel %vm1341, %v1340, %v1338
      %v1344 = vsel %vm1273, 1, 0
      %v1345 = vsel %vm1274, 1, 0
      %vm1346 = vcmp.eq.s32.totalorder %v1344, 1
      %vm1347 = vcmp.eq.s32.totalorder %v1345, 1
      %v1348 = vsel %vm1346, %v1342, 0.0
      %v1349 = vsel %vm1347, %v1343, 0.0
      %1350 = vset.pattern.permute.xlu0 45
      %1351 = vperm.xlu0 %1350, %v313
      %v1352 = vpop.permute.xlu0 %1351
      %v1354 = vmul.f32 %v1348, %v1352
      %v1355 = vmul.f32 %v1349, %v1352
      %v1356 = vadd.f32 %v1335, %v1354
      %v1357 = vadd.f32 %v1336, %v1355
      %1358 = vrot.lane.b32.xlu0 %v296, 79
      %v1359 = vpop.permute.xlu0 %1358
      %1360 = vrot.lane.b32.xlu0 %v297, 79
      %v1361 = vpop.permute.xlu0 %1360
      %vm1362 = vcmp.lt.s32.totalorder %v309, 79
      %v1363 = vsel %vm1362, %v1359, %v1361
      %v1364 = vsel %vm1362, %v1361, %v1359
      %vm1365 = vmand %vm1273, %vm420
      %vm1366 = vmand %vm1274, %vm421
      %v1367 = vsel %vm1365, 1, 0
      %v1368 = vsel %vm1366, 1, 0
      %vm1369 = vcmp.eq.s32.totalorder %v1367, 1
      %vm1370 = vcmp.eq.s32.totalorder %v1368, 1
      %v1371 = vsel %vm1369, %v1363, 0.0
      %v1372 = vsel %vm1370, %v1364, 0.0
      %1373 = vset.pattern.permute.xlu0 46
      %1374 = vperm.xlu0 %1373, %v313
      %v1375 = vpop.permute.xlu0 %1374
      %v1377 = vmul.f32 %v1371, %v1375
      %v1378 = vmul.f32 %v1372, %v1375
      %v1379 = vadd.f32 %v1356, %v1377
      %v1380 = vadd.f32 %v1357, %v1378
      %1381 = vrot.lane.b32.xlu0 %v296, 78
      %v1382 = vpop.permute.xlu0 %1381
      %1383 = vrot.lane.b32.xlu0 %v297, 78
      %v1384 = vpop.permute.xlu0 %1383
      %vm1385 = vcmp.lt.s32.totalorder %v309, 78
      %v1386 = vsel %vm1385, %v1382, %v1384
      %v1387 = vsel %vm1385, %v1384, %v1382
      %vm1388 = vmand %vm1273, %vm445
      %vm1389 = vmand %vm1274, %vm446
      %v1390 = vsel %vm1388, 1, 0
      %v1391 = vsel %vm1389, 1, 0
      %vm1392 = vcmp.eq.s32.totalorder %v1390, 1
      %vm1393 = vcmp.eq.s32.totalorder %v1391, 1
      %v1394 = vsel %vm1392, %v1386, 0.0
      %v1395 = vsel %vm1393, %v1387, 0.0
      %1396 = vset.pattern.permute.xlu0 47
      %1397 = vperm.xlu0 %1396, %v313
      %v1398 = vpop.permute.xlu0 %1397
      %v1400 = vmul.f32 %v1394, %v1398
      %v1401 = vmul.f32 %v1395, %v1398
      %v1402 = vadd.f32 %v1379, %v1400
      %v1403 = vadd.f32 %v1380, %v1401
      %1404 = vrot.lane.b32.xlu0 %v296, 77
      %v1405 = vpop.permute.xlu0 %1404
      %1406 = vrot.lane.b32.xlu0 %v297, 77
      %v1407 = vpop.permute.xlu0 %1406
      %vm1408 = vcmp.lt.s32.totalorder %v309, 77
      %v1409 = vsel %vm1408, %v1405, %v1407
      %v1410 = vsel %vm1408, %v1407, %v1405
      %vm1411 = vmand %vm1273, %vm470
      %vm1412 = vmand %vm1274, %vm471
      %v1413 = vsel %vm1411, 1, 0
      %v1414 = vsel %vm1412, 1, 0
      %vm1415 = vcmp.eq.s32.totalorder %v1413, 1
      %vm1416 = vcmp.eq.s32.totalorder %v1414, 1
      %v1417 = vsel %vm1415, %v1409, 0.0
      %v1418 = vsel %vm1416, %v1410, 0.0
      %1419 = vset.pattern.permute.xlu0 48
      %1420 = vperm.xlu0 %1419, %v313
      %v1421 = vpop.permute.xlu0 %1420
      %v1423 = vmul.f32 %v1417, %v1421
      %v1424 = vmul.f32 %v1418, %v1421
      %v1425 = vadd.f32 %v1402, %v1423
      %v1426 = vadd.f32 %v1403, %v1424
      %v1427 = vld [vmem:[%s290] sm:$0xff]
      %1429 = vset.pattern.permute.xlu0 0
      %1430 = vperm.xlu0 %1429, %v1427
      %v1431 = vpop.permute.xlu0 %1430
      %v1433 = vadd.f32 %v1425, %v1431
      %v1434 = vadd.f32 %v1426, %v1431
      %v1435 = vld [vmem:[%s6] sm:$0xff]
      %1437 = vset.pattern.permute.xlu0 0
      %1438 = vperm.xlu0 %1437, %v307
      %v1439 = vpop.permute.xlu0 %1438
      %vm1441 = vcmask 64512
      %v1443 = vsel %vm1441, %v1435, 0
      %1445 = vmatprep.subr.mxu0 %v297
      %1446 = vmatpush1.msra.mxu0 %v296
      %1447 = vmatprep.subr.mxu0 0.0
      %1448 = vmatpush1.msra.mxu0 0.0
      %1449 = vmatprep.subr.mxu0 0.0
      %1450 = vmatpush1.msra.mxu0 0.0
      %1451 = vmatprep.subr.mxu0 0.0
      %1452 = vmatpush1.msra.mxu0 0.0
      %1453 = vmatprep.subr.mxu0 0.0
      %1454 = vmatpush1.msra.mxu0 0.0
      %1455 = vmatprep.subr.mxu0 0.0
      %1456 = vmatpush1.msra.mxu0 0.0
      %1457 = vmatprep.subr.mxu0 0.0
      %1458 = vmatpush1.msra.mxu0 0.0
      %1459 = vmatprep.subr.mxu0 0.0
      %1460 = vmatpush1.msra.mxu0 0.0
      %1461 = vmatprep.subr.mxu0 0.0
      %1462 = vmatpush1.msra.mxu0 0.0
      %1463 = vmatprep.subr.mxu0 0.0
      %1464 = vmatpush1.msra.mxu0 0.0
      %1465 = vmatprep.subr.mxu0 0.0
      %1466 = vmatpush1.msra.mxu0 0.0
      %1467 = vmatprep.subr.mxu0 0.0
      %1468 = vmatpush1.msra.mxu0 0.0
      %1469 = vmatprep.subr.mxu0 0.0
      %1470 = vmatpush1.msra.mxu0 0.0
      %1471 = vmatprep.subr.mxu0 0.0
      %1472 = vmatpush1.msra.mxu0 0.0
      %1473 = vmatprep.subr.mxu0 0.0
      %1474 = vmatpush1.msra.mxu0 0.0
      %1475 = vmatprep.subr.mxu0 0.0
      %1476 = vmatpush1.msra.mxu0 0.0
      %1477 = vmatprep.subr.mxu0 0.0
      %1478 = vmatpush1.msra.mxu0 0.0
      %1479 = vmatprep.subr.mxu0 0.0
      %1480 = vmatpush1.msra.mxu0 0.0
      %1481 = vmatprep.subr.mxu0 0.0
      %1482 = vmatpush1.msra.mxu0 0.0
      %1483 = vmatprep.subr.mxu0 0.0
      %1484 = vmatpush1.msra.mxu0 0.0
      %1485 = vmatprep.subr.mxu0 0.0
      %1486 = vmatpush1.msra.mxu0 0.0
      %1487 = vmatprep.subr.mxu0 0.0
      %1488 = vmatpush1.msra.mxu0 0.0
      %1489 = vmatprep.subr.mxu0 0.0
      %1490 = vmatpush1.msra.mxu0 0.0
      %1491 = vmatprep.subr.mxu0 0.0
      %1492 = vmatpush1.msra.mxu0 0.0
      %1493 = vmatprep.subr.mxu0 0.0
      %1494 = vmatpush1.msra.mxu0 0.0
      %1495 = vmatprep.subr.mxu0 0.0
      %1496 = vmatpush1.msra.mxu0 0.0
      %1497 = vmatprep.subr.mxu0 0.0
      %1498 = vmatpush1.msra.mxu0 0.0
      %1499 = vmatprep.subr.mxu0 0.0
      %1500 = vmatpush1.msra.mxu0 0.0
      %1501 = vmatprep.subr.mxu0 0.0
      %1502 = vmatpush1.msra.mxu0 0.0
      %1503 = vmatprep.subr.mxu0 0.0
      %1504 = vmatpush1.msra.mxu0 0.0
      %1505 = vmatprep.subr.mxu0 0.0
      %1506 = vmatpush1.msra.mxu0 0.0
      %1507 = vmatprep.subr.mxu0 0.0
      %1508 = vmatpush1.msra.mxu0 0.0
      %1509 = vmatprep.mubr.f32.mxu0 0.0
      %1510 = vmatmul.mubr.f32.gmra.mrb[0].mxu0 %v1443
      %v1511 = vpop.f32.mrb[0].mxu0
      %v1512 = vadd.f32 %v1439, %v1511
      %v1513 = vpop.f32.mrb[0].mxu0
      %v1514 = vadd.f32 %v1439, %v1513
      %1515 = vdwg.mxu0
      %v1516 = vadd.f32 %v1433, %v1434
      %1517 = vadd.xlane.f32.xlu0 %v1516
      %v1518 = vpop.xlane.xlu0 %1517
      %v1519 = vrot.slane %v1518, 4
      %v1520 = vadd.f32 %v1518, %v1519
      %v1521 = vrot.slane %v1520, 2
      %v1522 = vadd.f32 %v1520, %v1521
      %v1523 = vrot.slane %v1522, 1
      %v1524 = vadd.f32 %v1522, %v1523
      %s1525 = vtos %v1524
      %v1526 = vstv %s1525
      %v1527 = vmul.f32 %v1526, 0.0009765625
      %v1528 = vmul.f32 %v1433, %v1433
      %v1529 = vmul.f32 %v1434, %v1434
      %v1530 = vadd.f32 %v1528, %v1529
      %1531 = vadd.xlane.f32.xlu0 %v1530
      %v1532 = vpop.xlane.xlu0 %1531
      %v1533 = vrot.slane %v1532, 4
      %v1534 = vadd.f32 %v1532, %v1533
      %v1535 = vrot.slane %v1534, 2
      %v1536 = vadd.f32 %v1534, %v1535
      %v1537 = vrot.slane %v1536, 1
      %v1538 = vadd.f32 %v1536, %v1537
      %s1539 = vtos %v1538
      %v1540 = vstv %s1539
      %v1541 = vmul.f32 %v1540, 0.0009765625
      %v1542 = vmul.f32 %v1527, %v1527
      %v1543 = vsub.f32 %v1541, %v1542
      %v1544 = vsub.f32 %v1433, %v1527
      %v1545 = vsub.f32 %v1434, %v1527
      %v1546 = vadd.f32 %v1543, 1e-05
      %v1547 = vrsqrt.pop %v1546
      %v1548 = vmul.f32 %v1544, %v1547
      %v1549 = vmul.f32 %v1545, %v1547
      %1551 = vset.pattern.permute.xlu0 0
      %1552 = vperm.xlu0 %1551, %v298
      %v1553 = vpop.permute.xlu0 %1552
      %v1555 = vmul.f32 %v1548, %v1553
      %v1556 = vmul.f32 %v1549, %v1553
      %1558 = vset.pattern.permute.xlu0 0
      %1559 = vperm.xlu0 %1558, %v299
      %v1560 = vpop.permute.xlu0 %1559
      %v1562 = vadd.f32 %v1555, %v1560
      %v1563 = vadd.f32 %v1556, %v1560
      %1564 = vrot.lane.b32.xlu0 %v1562, 17
      %v1565 = vpop.permute.xlu0 %1564
      %1566 = vrot.lane.b32.xlu0 %v1563, 17
      %v1567 = vpop.permute.xlu0 %1566
      %v1568 = vsel %vm701, %v1565, %v1567
      %v1569 = vsel %vm701, %v1567, %v1565
      %v1570 = vsel %vm708, %v1569, 0.0
      %v1571 = vsel %vm709, %v1568, 0.0
      %1572 = vrot.lane.b32.xlu0 %v1562, 16
      %v1573 = vpop.permute.xlu0 %1572
      %1574 = vrot.lane.b32.xlu0 %v1563, 16
      %v1575 = vpop.permute.xlu0 %1574
      %v1576 = vsel %vm724, %v1573, %v1575
      %v1577 = vsel %vm724, %v1575, %v1573
      %v1578 = vsel %vm729, %v1577, 0.0
      %v1579 = vsel %vm730, %v1576, 0.0
      %1580 = vrot.lane.b32.xlu0 %v1562, 15
      %v1581 = vpop.permute.xlu0 %1580
      %1582 = vrot.lane.b32.xlu0 %v1563, 15
      %v1583 = vpop.permute.xlu0 %1582
      %v1584 = vsel %vm745, %v1581, %v1583
      %v1585 = vsel %vm745, %v1583, %v1581
      %v1586 = vsel %vm752, %v1585, 0.0
      %v1587 = vsel %vm753, %v1584, 0.0
      %1588 = vrot.lane.b32.xlu0 %v1562, 1
      %v1589 = vpop.permute.xlu0 %1588
      %1590 = vrot.lane.b32.xlu0 %v1563, 1
      %v1591 = vpop.permute.xlu0 %1590
      %v1592 = vsel %vm856, %v1589, %v1591
      %v1593 = vsel %vm856, %v1591, %v1589
      %v1594 = vsel %vm861, %v1593, 0.0
      %v1595 = vsel %vm862, %v1592, 0.0
      %1596 = vrot.lane.b32.xlu0 %v1562, 127
      %v1597 = vpop.permute.xlu0 %1596
      %1598 = vrot.lane.b32.xlu0 %v1563, 127
      %v1599 = vpop.permute.xlu0 %1598
      %v1600 = vsel %vm885, %v1597, %v1599
      %v1601 = vsel %vm885, %v1599, %v1597
      %v1602 = vsel %vm890, %v1600, 0.0
      %v1603 = vsel %vm891, %v1601, 0.0
      %1604 = vrot.lane.b32.xlu0 %v1562, 113
      %v1605 = vpop.permute.xlu0 %1604
      %1606 = vrot.lane.b32.xlu0 %v1563, 113
      %v1607 = vpop.permute.xlu0 %1606
      %v1608 = vsel %vm996, %v1605, %v1607
      %v1609 = vsel %vm996, %v1607, %v1605
      %v1610 = vsel %vm1003, %v1608, 0.0
      %v1611 = vsel %vm1004, %v1609, 0.0
      %1612 = vrot.lane.b32.xlu0 %v1562, 112
      %v1613 = vpop.permute.xlu0 %1612
      %1614 = vrot.lane.b32.xlu0 %v1563, 112
      %v1615 = vpop.permute.xlu0 %1614
      %v1616 = vsel %vm1019, %v1613, %v1615
      %v1617 = vsel %vm1019, %v1615, %v1613
      %v1618 = vsel %vm1024, %v1616, 0.0
      %v1619 = vsel %vm1025, %v1617, 0.0
      %1620 = vrot.lane.b32.xlu0 %v1562, 111
      %v1621 = vpop.permute.xlu0 %1620
      %1622 = vrot.lane.b32.xlu0 %v1563, 111
      %v1623 = vpop.permute.xlu0 %1622
      %v1624 = vsel %vm1040, %v1621, %v1623
      %v1625 = vsel %vm1040, %v1623, %v1621
      %v1626 = vsel %vm1047, %v1624, 0.0
      %v1627 = vsel %vm1048, %v1625, 0.0
      %v1628 = vld [vmem:[%s4] sm:$0xff]
      %v1629 = vld [vmem:[%s4 + $0x8] sm:$0xff]
      %1631 = vset.pattern.permute.xlu0 0
      %1632 = vperm.xlu0 %1631, %v300
      %v1633 = vpop.permute.xlu0 %1632
      %1636 = vset.pattern.permute.xlu0 0
      %1637 = vperm.xlu0 %1636, %v301
      %v1638 = vpop.permute.xlu0 %1637
      %vm1640 = vcmask 588800
      %v1642 = vsel %vm1640, %v1628, 0
      %v1645 = vsel %vm1640, %v1629, 0
      %1647 = vmatprep.subr.mxu0 %v1571
      %1648 = vmatpush1.msra.mxu0 %v1570
      %1649 = vmatprep.subr.mxu0 %v1579
      %1650 = vmatpush1.msra.mxu0 %v1578
      %1651 = vmatprep.subr.mxu0 %v1587
      %1652 = vmatpush1.msra.mxu0 %v1586
      %1653 = vmatprep.subr.mxu0 %v1595
      %1654 = vmatpush1.msra.mxu0 %v1594
      %1655 = vmatprep.subr.mxu0 %v1563
      %1656 = vmatpush1.msra.mxu0 %v1562
      %1657 = vmatprep.subr.mxu0 %v1603
      %1658 = vmatpush1.msra.mxu0 %v1602
      %1659 = vmatprep.subr.mxu0 %v1611
      %1660 = vmatpush1.msra.mxu0 %v1610
      %1661 = vmatprep.subr.mxu0 %v1619
      %1662 = vmatpush1.msra.mxu0 %v1618
      %1663 = vmatprep.subr.mxu0 %v1627
      %1664 = vmatpush1.msra.mxu0 %v1626
      %1665 = vmatprep.subr.mxu0 0.0
      %1666 = vmatpush1.msra.mxu0 0.0
      %1667 = vmatprep.subr.mxu0 0.0
      %1668 = vmatpush1.msra.mxu0 0.0
      %1669 = vmatprep.subr.mxu0 0.0
      %1670 = vmatpush1.msra.mxu0 0.0
      %1671 = vmatprep.subr.mxu0 0.0
      %1672 = vmatpush1.msra.mxu0 0.0
      %1673 = vmatprep.subr.mxu0 0.0
      %1674 = vmatpush1.msra.mxu0 0.0
      %1675 = vmatprep.subr.mxu0 0.0
      %1676 = vmatpush1.msra.mxu0 0.0
      %1677 = vmatprep.subr.mxu0 0.0
      %1678 = vmatpush1.msra.mxu0 0.0
      %1679 = vmatprep.subr.mxu0 0.0
      %1680 = vmatpush1.msra.mxu0 0.0
      %1681 = vmatprep.subr.mxu0 0.0
      %1682 = vmatpush1.msra.mxu0 0.0
      %1683 = vmatprep.subr.mxu0 0.0
      %1684 = vmatpush1.msra.mxu0 0.0
      %1685 = vmatprep.subr.mxu0 0.0
      %1686 = vmatpush1.msra.mxu0 0.0
      %1687 = vmatprep.subr.mxu0 0.0
      %1688 = vmatpush1.msra.mxu0 0.0
      %1689 = vmatprep.subr.mxu0 0.0
      %1690 = vmatpush1.msra.mxu0 0.0
      %1691 = vmatprep.subr.mxu0 0.0
      %1692 = vmatpush1.msra.mxu0 0.0
      %1693 = vmatprep.subr.mxu0 0.0
      %1694 = vmatpush1.msra.mxu0 0.0
      %1695 = vmatprep.subr.mxu0 0.0
      %1696 = vmatpush1.msra.mxu0 0.0
      %1697 = vmatprep.subr.mxu0 0.0
      %1698 = vmatpush1.msra.mxu0 0.0
      %1699 = vmatprep.subr.mxu0 0.0
      %1700 = vmatpush1.msra.mxu0 0.0
      %1701 = vmatprep.subr.mxu0 0.0
      %1702 = vmatpush1.msra.mxu0 0.0
      %1703 = vmatprep.subr.mxu0 0.0
      %1704 = vmatpush1.msra.mxu0 0.0
      %1705 = vmatprep.subr.mxu0 0.0
      %1706 = vmatpush1.msra.mxu0 0.0
      %1707 = vmatprep.subr.mxu0 0.0
      %1708 = vmatpush1.msra.mxu0 0.0
      %1709 = vmatprep.subr.mxu0 0.0
      %1710 = vmatpush1.msra.mxu0 0.0
      %1711 = vmatprep.mubr.f32.mxu0 0.0
      %1712 = vmatmul.mubr.f32.gmra.mrb[0].mxu0 %v1642
      %v1713 = vpop.f32.mrb[0].mxu0
      %v1714 = vadd.f32 %v1633, %v1713
      %v1715 = vpop.f32.mrb[0].mxu0
      %v1716 = vadd.f32 %v1633, %v1715
      %1717 = vmatprep.mubr.f32.mxu0 0.0
      %1718 = vmatmul.mubr.f32.gmra.mrb[0].mxu0 %v1645
      %v1719 = vpop.f32.mrb[0].mxu0
      %v1720 = vadd.f32 %v1638, %v1719
      %v1721 = vpop.f32.mrb[0].mxu0
      %v1722 = vadd.f32 %v1638, %v1721
      %1723 = vdwg.mxu0
      %v1724 = vmul.f32 %v1714, 0.5
      %v1725 = vmul.f32 %v1716, 0.5
      %v1726 = vmul.f32 %v1720, 0.5
      %v1727 = vmul.f32 %v1722, 0.5
      %v1728 = vmul.f32 %v1714, 0.70710677
      %v1729 = vmul.f32 %v1716, 0.70710677
      %v1730 = vmul.f32 %v1720, 0.70710677
      %v1731 = vmul.f32 %v1722, 0.70710677
      %vm1732 = vcmp.ge.f32.partialorder %v1728, 0.0
      %vm1733 = vcmp.ge.f32.partialorder %v1729, 0.0
      %vm1734 = vcmp.ge.f32.partialorder %v1730, 0.0
      %vm1735 = vcmp.ge.f32.partialorder %v1731, 0.0
      %v1736 = vsel %vm1732, 1.0, -1.0
      %v1737 = vsel %vm1733, 1.0, -1.0
      %v1738 = vsel %vm1734, 1.0, -1.0
      %v1739 = vsel %vm1735, 1.0, -1.0
      %v1740 = vand.u32 2147483647, %v1728
      %v1741 = vand.u32 2147483647, %v1729
      %v1742 = vand.u32 2147483647, %v1730
      %v1743 = vand.u32 2147483647, %v1731
      %v1744 = vmul.f32 %v1740, 0.3275911
      %v1745 = vmul.f32 %v1741, 0.3275911
      %v1746 = vmul.f32 %v1742, 0.3275911
      %v1747 = vmul.f32 %v1743, 0.3275911
      %v1748 = vadd.f32 %v1744, 1.0
      %v1749 = vadd.f32 %v1745, 1.0
      %v1750 = vadd.f32 %v1746, 1.0
      %v1751 = vadd.f32 %v1747, 1.0
      %v1752 = vrcp.pop %v1748
      %v1753 = vmul.f32 1.0, %v1752
      %v1754 = vrcp.pop %v1749
      %v1755 = vmul.f32 1.0, %v1754
      %v1756 = vrcp.pop %v1750
      %v1757 = vmul.f32 1.0, %v1756
      %v1758 = vrcp.pop %v1751
      %v1759 = vmul.f32 1.0, %v1758
      %v1760 = vmul.f32 %v1753, 1.0614054
      %v1761 = vmul.f32 %v1755, 1.0614054
      %v1762 = vmul.f32 %v1757, 1.0614054
      %v1763 = vmul.f32 %v1759, 1.0614054
      %v1764 = vadd.f32 %v1760, -1.4531521
      %v1765 = vadd.f32 %v1761, -1.4531521
      %v1766 = vadd.f32 %v1762, -1.4531521
      %v1767 = vadd.f32 %v1763, -1.4531521
      %v1768 = vmul.f32 %v1764, %v1753
      %v1769 = vmul.f32 %v1765, %v1755
      %v1770 = vmul.f32 %v1766, %v1757
      %v1771 = vmul.f32 %v1767, %v1759
      %v1772 = vadd.f32 %v1768, 1.4214138
      %v1773 = vadd.f32 %v1769, 1.4214138
      %v1774 = vadd.f32 %v1770, 1.4214138
      %v1775 = vadd.f32 %v1771, 1.4214138
      %v1776 = vmul.f32 %v1772, %v1753
      %v1777 = vmul.f32 %v1773, %v1755
      %v1778 = vmul.f32 %v1774, %v1757
      %v1779 = vmul.f32 %v1775, %v1759
      %v1780 = vadd.f32 %v1776, -0.28449672
      %v1781 = vadd.f32 %v1777, -0.28449672
      %v1782 = vadd.f32 %v1778, -0.28449672
      %v1783 = vadd.f32 %v1779, -0.28449672
      %v1784 = vmul.f32 %v1780, %v1753
      %v1785 = vmul.f32 %v1781, %v1755
      %v1786 = vmul.f32 %v1782, %v1757
      %v1787 = vmul.f32 %v1783, %v1759
      %v1788 = vadd.f32 %v1784, 0.2548296
      %v1789 = vadd.f32 %v1785, 0.2548296
      %v1790 = vadd.f32 %v1786, 0.2548296
      %v1791 = vadd.f32 %v1787, 0.2548296
      %v1792 = vmul.f32 %v1788, %v1753
      %v1793 = vmul.f32 %v1789, %v1755
      %v1794 = vmul.f32 %v1790, %v1757
      %v1795 = vmul.f32 %v1791, %v1759
      %v1796 = vsub.f32 0.0, %v1740
      %v1797 = vsub.f32 0.0, %v1741
      %v1798 = vsub.f32 0.0, %v1742
      %v1799 = vsub.f32 0.0, %v1743
      %v1800 = vmul.f32 %v1796, %v1740
      %v1801 = vmul.f32 %v1797, %v1741
      %v1802 = vmul.f32 %v1798, %v1742
      %v1803 = vmul.f32 %v1799, %v1743
      %v1804 = vmul.f32 %v1800, 1.442695
      %v1805 = vpow.pop %v1804
      %v1806 = vmul.f32 %v1801, 1.442695
      %v1807 = vpow.pop %v1806
      %v1808 = vmul.f32 %v1802, 1.442695
      %v1809 = vpow.pop %v1808
      %v1810 = vmul.f32 %v1803, 1.442695
      %v1811 = vpow.pop %v1810
      %v1812 = vmul.f32 %v1792, %v1805
      %v1813 = vmul.f32 %v1793, %v1807
      %v1814 = vmul.f32 %v1794, %v1809
      %v1815 = vmul.f32 %v1795, %v1811
      %v1816 = vsub.f32 1.0, %v1812
      %v1817 = vsub.f32 1.0, %v1813
      %v1818 = vsub.f32 1.0, %v1814
      %v1819 = vsub.f32 1.0, %v1815
      %v1820 = vmul.f32 %v1736, %v1816
      %v1821 = vmul.f32 %v1737, %v1817
      %v1822 = vmul.f32 %v1738, %v1818
      %v1823 = vmul.f32 %v1739, %v1819
      %v1824 = vadd.f32 %v1820, 1.0
      %v1825 = vadd.f32 %v1821, 1.0
      %v1826 = vadd.f32 %v1822, 1.0
      %v1827 = vadd.f32 %v1823, 1.0
      %v1828 = vmul.f32 %v1724, %v1824
      %v1829 = vmul.f32 %v1725, %v1825
      %v1830 = vmul.f32 %v1726, %v1826
      %v1831 = vmul.f32 %v1727, %v1827
      %v1832 = vadd.f32 %v1828, %v1829
      %v1833 = vadd.f32 %v1832, %v1830
      %v1834 = vadd.f32 %v1833, %v1831
      %1835 = vadd.xlane.f32.xlu0 %v1834
      %v1836 = vpop.xlane.xlu0 %1835
      %v1837 = vrot.slane %v1836, 4
      %v1838 = vadd.f32 %v1836, %v1837
      %v1839 = vrot.slane %v1838, 2
      %v1840 = vadd.f32 %v1838, %v1839
      %v1841 = vrot.slane %v1840, 1
      %v1842 = vadd.f32 %v1840, %v1841
      %s1843 = vtos %v1842
      %v1844 = vstv %s1843
      %v1845 = vmul.f32 %v1844, 0.00024414063
      %v1846 = vmul.f32 %v1828, %v1828
      %v1847 = vmul.f32 %v1829, %v1829
      %v1848 = vmul.f32 %v1830, %v1830
      %v1849 = vmul.f32 %v1831, %v1831
      %v1850 = vadd.f32 %v1846, %v1847
      %v1851 = vadd.f32 %v1850, %v1848
      %v1852 = vadd.f32 %v1851, %v1849
      %1853 = vadd.xlane.f32.xlu0 %v1852
      %v1854 = vpop.xlane.xlu0 %1853
      %v1855 = vrot.slane %v1854, 4
      %v1856 = vadd.f32 %v1854, %v1855
      %v1857 = vrot.slane %v1856, 2
      %v1858 = vadd.f32 %v1856, %v1857
      %v1859 = vrot.slane %v1858, 1
      %v1860 = vadd.f32 %v1858, %v1859
      %s1861 = vtos %v1860
      %v1862 = vstv %s1861
      %v1863 = vmul.f32 %v1862, 0.00024414063
      %v1864 = vmul.f32 %v1845, %v1845
      %v1865 = vsub.f32 %v1863, %v1864
      %v1866 = vsub.f32 %v1828, %v1845
      %v1867 = vsub.f32 %v1829, %v1845
      %v1868 = vsub.f32 %v1830, %v1845
      %v1869 = vsub.f32 %v1831, %v1845
      %v1870 = vadd.f32 %v1865, 1e-05
      %v1871 = vrsqrt.pop %v1870
      %v1872 = vmul.f32 %v1866, %v1871
      %v1873 = vmul.f32 %v1867, %v1871
      %v1874 = vmul.f32 %v1868, %v1871
      %v1875 = vmul.f32 %v1869, %v1871
      %1877 = vset.pattern.permute.xlu0 0
      %1878 = vperm.xlu0 %1877, %v302
      %v1879 = vpop.permute.xlu0 %1878
      %1882 = vset.pattern.permute.xlu0 0
      %1883 = vperm.xlu0 %1882, %v303
      %v1884 = vpop.permute.xlu0 %1883
      %v1886 = vmul.f32 %v1872, %v1879
      %v1887 = vmul.f32 %v1873, %v1879
      %v1888 = vmul.f32 %v1874, %v1884
      %v1889 = vmul.f32 %v1875, %v1884
      %1891 = vset.pattern.permute.xlu0 0
      %1892 = vperm.xlu0 %1891, %v304
      %v1893 = vpop.permute.xlu0 %1892
      %1896 = vset.pattern.permute.xlu0 0
      %1897 = vperm.xlu0 %1896, %v305
      %v1898 = vpop.permute.xlu0 %1897
      %v1900 = vadd.f32 %v1886, %v1893
      %v1901 = vadd.f32 %v1887, %v1893
      %v1902 = vadd.f32 %v1888, %v1898
      %v1903 = vadd.f32 %v1889, %v1898
      %1904 = vrot.lane.b32.xlu0 %v1900, 17
      %v1905 = vpop.permute.xlu0 %1904
      %1906 = vrot.lane.b32.xlu0 %v1902, 17
      %v1907 = vpop.permute.xlu0 %1906
      %1908 = vrot.lane.b32.xlu0 %v1901, 17
      %v1909 = vpop.permute.xlu0 %1908
      %1910 = vrot.lane.b32.xlu0 %v1903, 17
      %v1911 = vpop.permute.xlu0 %1910
      %v1912 = vsel %vm701, %v1905, %v1909
      %v1913 = vsel %vm701, %v1907, %v1911
      %v1914 = vsel %vm701, %v1909, %v1905
      %v1915 = vsel %vm701, %v1911, %v1907
      %v1916 = vsel %vm708, %v1914, 0.0
      %v1917 = vsel %vm709, %v1912, 0.0
      %v1918 = vsel %vm708, %v1915, 0.0
      %v1919 = vsel %vm709, %v1913, 0.0
      %1920 = vrot.lane.b32.xlu0 %v1900, 16
      %v1921 = vpop.permute.xlu0 %1920
      %1922 = vrot.lane.b32.xlu0 %v1902, 16
      %v1923 = vpop.permute.xlu0 %1922
      %1924 = vrot.lane.b32.xlu0 %v1901, 16
      %v1925 = vpop.permute.xlu0 %1924
      %1926 = vrot.lane.b32.xlu0 %v1903, 16
      %v1927 = vpop.permute.xlu0 %1926
      %v1928 = vsel %vm724, %v1921, %v1925
      %v1929 = vsel %vm724, %v1923, %v1927
      %v1930 = vsel %vm724, %v1925, %v1921
      %v1931 = vsel %vm724, %v1927, %v1923
      %v1932 = vsel %vm729, %v1930, 0.0
      %v1933 = vsel %vm730, %v1928, 0.0
      %v1934 = vsel %vm729, %v1931, 0.0
      %v1935 = vsel %vm730, %v1929, 0.0
      %1936 = vrot.lane.b32.xlu0 %v1900, 15
      %v1937 = vpop.permute.xlu0 %1936
      %1938 = vrot.lane.b32.xlu0 %v1902, 15
      %v1939 = vpop.permute.xlu0 %1938
      %1940 = vrot.lane.b32.xlu0 %v1901, 15
      %v1941 = vpop.permute.xlu0 %1940
      %1942 = vrot.lane.b32.xlu0 %v1903, 15
      %v1943 = vpop.permute.xlu0 %1942
      %v1944 = vsel %vm745, %v1937, %v1941
      %v1945 = vsel %vm745, %v1939, %v1943
      %v1946 = vsel %vm745, %v1941, %v1937
      %v1947 = vsel %vm745, %v1943, %v1939
      %v1948 = vsel %vm752, %v1946, 0.0
      %v1949 = vsel %vm753, %v1944, 0.0
      %v1950 = vsel %vm752, %v1947, 0.0
      %v1951 = vsel %vm753, %v1945, 0.0
      %1952 = vrot.lane.b32.xlu0 %v1900, 1
      %v1953 = vpop.permute.xlu0 %1952
      %1954 = vrot.lane.b32.xlu0 %v1902, 1
      %v1955 = vpop.permute.xlu0 %1954
      %1956 = vrot.lane.b32.xlu0 %v1901, 1
      %v1957 = vpop.permute.xlu0 %1956
      %1958 = vrot.lane.b32.xlu0 %v1903, 1
      %v1959 = vpop.permute.xlu0 %1958
      %v1960 = vsel %vm856, %v1953, %v1957
      %v1961 = vsel %vm856, %v1955, %v1959
      %v1962 = vsel %vm856, %v1957, %v1953
      %v1963 = vsel %vm856, %v1959, %v1955
      %v1964 = vsel %vm861, %v1962, 0.0
      %v1965 = vsel %vm862, %v1960, 0.0
      %v1966 = vsel %vm861, %v1963, 0.0
      %v1967 = vsel %vm862, %v1961, 0.0
      %1968 = vrot.lane.b32.xlu0 %v1900, 127
      %v1969 = vpop.permute.xlu0 %1968
      %1970 = vrot.lane.b32.xlu0 %v1902, 127
      %v1971 = vpop.permute.xlu0 %1970
      %1972 = vrot.lane.b32.xlu0 %v1901, 127
      %v1973 = vpop.permute.xlu0 %1972
      %1974 = vrot.lane.b32.xlu0 %v1903, 127
      %v1975 = vpop.permute.xlu0 %1974
      %v1976 = vsel %vm885, %v1969, %v1973
      %v1977 = vsel %vm885, %v1971, %v1975
      %v1978 = vsel %vm885, %v1973, %v1969
      %v1979 = vsel %vm885, %v1975, %v1971
      %v1980 = vsel %vm890, %v1976, 0.0
      %v1981 = vsel %vm891, %v1978, 0.0
      %v1982 = vsel %vm890, %v1977, 0.0
      %v1983 = vsel %vm891, %v1979, 0.0
      %1984 = vrot.lane.b32.xlu0 %v1900, 113
      %v1985 = vpop.permute.xlu0 %1984
      %1986 = vrot.lane.b32.xlu0 %v1902, 113
      %v1987 = vpop.permute.xlu0 %1986
      %1988 = vrot.lane.b32.xlu0 %v1901, 113
      %v1989 = vpop.permute.xlu0 %1988
      %1990 = vrot.lane.b32.xlu0 %v1903, 113
      %v1991 = vpop.permute.xlu0 %1990
      %v1992 = vsel %vm996, %v1985, %v1989
      %v1993 = vsel %vm996, %v1987, %v1991
      %v1994 = vsel %vm996, %v1989, %v1985
      %v1995 = vsel %vm996, %v1991, %v1987
      %v1996 = vsel %vm1003, %v1992, 0.0
      %v1997 = vsel %vm1004, %v1994, 0.0
      %v1998 = vsel %vm1003, %v1993, 0.0
      %v1999 = vsel %vm1004, %v1995, 0.0
      %2000 = vrot.lane.b32.xlu0 %v1900, 112
      %v2001 = vpop.permute.xlu0 %2000
      %2002 = vrot.lane.b32.xlu0 %v1902, 112
      %v2003 = vpop.permute.xlu0 %2002
      %2004 = vrot.lane.b32.xlu0 %v1901, 112
      %v2005 = vpop.permute.xlu0 %2004
      %2006 = vrot.lane.b32.xlu0 %v1903, 112
      %v2007 = vpop.permute.xlu0 %2006
      %v2008 = vsel %vm1019, %v2001, %v2005
      %v2009 = vsel %vm1019, %v2003, %v2007
      %v2010 = vsel %vm1019, %v2005, %v2001
      %v2011 = vsel %vm1019, %v2007, %v2003
      %v2012 = vsel %vm1024, %v2008, 0.0
      %v2013 = vsel %vm1025, %v2010, 0.0
      %v2014 = vsel %vm1024, %v2009, 0.0
      %v2015 = vsel %vm1025, %v2011, 0.0
      %2016 = vrot.lane.b32.xlu0 %v1900, 111
      %v2017 = vpop.permute.xlu0 %2016
      %2018 = vrot.lane.b32.xlu0 %v1902, 111
      %v2019 = vpop.permute.xlu0 %2018
      %2020 = vrot.lane.b32.xlu0 %v1901, 111
      %v2021 = vpop.permute.xlu0 %2020
      %2022 = vrot.lane.b32.xlu0 %v1903, 111
      %v2023 = vpop.permute.xlu0 %2022
      %v2024 = vsel %vm1040, %v2017, %v2021
      %v2025 = vsel %vm1040, %v2019, %v2023
      %v2026 = vsel %vm1040, %v2021, %v2017
      %v2027 = vsel %vm1040, %v2023, %v2019
      %v2028 = vsel %vm1047, %v2024, 0.0
      %v2029 = vsel %vm1048, %v2026, 0.0
      %v2030 = vsel %vm1047, %v2025, 0.0
      %v2031 = vsel %vm1048, %v2027, 0.0
      %v2032 = vld [vmem:[%s5] sm:$0xff]
      %v2033 = vld [vmem:[%s5 + $0x8] sm:$0xff]
      %2035 = vset.pattern.permute.xlu0 0
      %2036 = vperm.xlu0 %2035, %v306
      %v2037 = vpop.permute.xlu0 %2036
      %vm2039 = vcmask 130048
      %v2041 = vsel %vm2039, %v2033, 0
      %2043 = vmatprep.subr.mxu0 %v1917
      %2044 = vmatpush1.msra.mxu0 %v1916
      %2045 = vmatprep.subr.mxu0 %v1919
      %2046 = vmatpush1.msra.mxu0 %v1918
      %2047 = vmatprep.subr.mxu0 %v1933
      %2048 = vmatpush1.msra.mxu0 %v1932
      %2049 = vmatprep.subr.mxu0 %v1935
      %2050 = vmatpush1.msra.mxu0 %v1934
      %2051 = vmatprep.subr.mxu0 %v1949
      %2052 = vmatpush1.msra.mxu0 %v1948
      %2053 = vmatprep.subr.mxu0 %v1951
      %2054 = vmatpush1.msra.mxu0 %v1950
      %2055 = vmatprep.subr.mxu0 %v1965
      %2056 = vmatpush1.msra.mxu0 %v1964
      %2057 = vmatprep.subr.mxu0 %v1967
      %2058 = vmatpush1.msra.mxu0 %v1966
      %2059 = vmatprep.subr.mxu0 %v1901
      %2060 = vmatpush1.msra.mxu0 %v1900
      %2061 = vmatprep.subr.mxu0 %v1903
      %2062 = vmatpush1.msra.mxu0 %v1902
      %2063 = vmatprep.subr.mxu0 %v1981
      %2064 = vmatpush1.msra.mxu0 %v1980
      %2065 = vmatprep.subr.mxu0 %v1983
      %2066 = vmatpush1.msra.mxu0 %v1982
      %2067 = vmatprep.subr.mxu0 %v1997
      %2068 = vmatpush1.msra.mxu0 %v1996
      %2069 = vmatprep.subr.mxu0 %v1999
      %2070 = vmatpush1.msra.mxu0 %v1998
      %2071 = vmatprep.subr.mxu0 %v2013
      %2072 = vmatpush1.msra.mxu0 %v2012
      %2073 = vmatprep.subr.mxu0 %v2015
      %2074 = vmatpush1.msra.mxu0 %v2014
      %2075 = vmatprep.subr.mxu0 %v2029
      %2076 = vmatpush1.msra.mxu0 %v2028
      %2077 = vmatprep.subr.mxu0 %v2031
      %2078 = vmatpush1.msra.mxu0 %v2030
      %2079 = vmatprep.subr.mxu0 0.0
      %2080 = vmatpush1.msra.mxu0 0.0
      %2081 = vmatprep.subr.mxu0 0.0
      %2082 = vmatpush1.msra.mxu0 0.0
      %2083 = vmatprep.subr.mxu0 0.0
      %2084 = vmatpush1.msra.mxu0 0.0
      %2085 = vmatprep.subr.mxu0 0.0
      %2086 = vmatpush1.msra.mxu0 0.0
      %2087 = vmatprep.subr.mxu0 0.0
      %2088 = vmatpush1.msra.mxu0 0.0
      %2089 = vmatprep.subr.mxu0 0.0
      %2090 = vmatpush1.msra.mxu0 0.0
      %2091 = vmatprep.subr.mxu0 0.0
      %2092 = vmatpush1.msra.mxu0 0.0
      %2093 = vmatprep.subr.mxu0 0.0
      %2094 = vmatpush1.msra.mxu0 0.0
      %2095 = vmatprep.subr.mxu0 0.0
      %2096 = vmatpush1.msra.mxu0 0.0
      %2097 = vmatprep.subr.mxu0 0.0
      %2098 = vmatpush1.msra.mxu0 0.0
      %2099 = vmatprep.subr.mxu0 0.0
      %2100 = vmatpush1.msra.mxu0 0.0
      %2101 = vmatprep.subr.mxu0 0.0
      %2102 = vmatpush1.msra.mxu0 0.0
      %2103 = vmatprep.subr.mxu0 0.0
      %2104 = vmatpush1.msra.mxu0 0.0
      %2105 = vmatprep.subr.mxu0 0.0
      %2106 = vmatpush1.msra.mxu0 0.0
      %2107 = vmatprep.mubr.f32.mxu0 %v2041
      %2108 = vmatmul.mubr.f32.gmra.mrb[0].mxu0 %v2032
      %v2109 = vpop.f32.mrb[0].mxu0
      %v2110 = vadd.f32 %v2037, %v2109
      %v2111 = vpop.f32.mrb[0].mxu0
      %v2112 = vadd.f32 %v2037, %v2111
      %2113 = vdwg.mxu0
      %v2114 = vadd.f32 %v2110, %v1512
      %v2115 = vadd.f32 %v2112, %v1514
      %2116 = vst [vmem:[%s295] sm:$0xff] %v2114
      %2117 = vst [vmem:[%s295 + $0x8] sm:$0xff] %v2115
      %p2118 = scmp.lt.s32.totalorder %s18, 1
      %s2119 = scalar_select %p2118, %s18, 1
      %s2120 = smul.addr %s2119, 2
      %s2121 = smul.addr %s2120, 8
      %s2122 = scalar_lea.vmem %s7, %s2121
      // Predicated region
      $region49: #{convnext_block.1} parent=47 // pred_check
        %p2123 = pneg %p193
      $region50: #{convnext_block.1} parent=47 // pred_check_branch
        %2125 = sbr.rel (%p2123) target = $region52
      $region51: #{convnext_block.1} parent=47 // pred_region
        _
      $region52: #{convnext_block.1} parent=47 // pred_fallthru
        _
    $region48: #{convnext_block.1} parent=5 // pred_fallthru
      _
    %p2126 = scmp.le.s32.totalorder 2, %s13
    // Predicated region
    $region53: #{convnext_block.1} parent=5 // pred_check
      %p2127 = pneg %p2126
    $region54: #{convnext_block.1} parent=5 // pred_check_branch
      %2129 = sbr.rel (%p2127) target = $region56
    $region55: #{convnext_block.1} parent=5 // pred_region
      %s2130 = ssub.s32 %s13, 2
      // Predicated region
      $region57: #{convnext_block.1} parent=55 // pred_check
        %p2131 = pneg %p199
      $region58: #{convnext_block.1} parent=55 // pred_check_branch
        %2133 = sbr.rel (%p2131) target = $region60
      $region59: #{convnext_block.1} parent=55 // pred_region
        %p2134 = scmp.lt.s32.totalorder %s19, 1
        %s2135 = scalar_select %p2134, %s19, 1
        %s2136 = smul.addr %s2135, 2
        %s2137 = smul.addr %s2136, 8
        %s2138 = scalar_lea.vmem %s7, %s2137
      $region60: #{convnext_block.1} parent=55 // pred_fallthru
        _
    $region56: #{convnext_block.1} parent=5 // pred_fallthru
      _
  $region6: #{convnext_block.1} parent=0 // loop_footer
    %s17 = sadd.s32 1, %s13
  $region7: #{convnext_block.1} parent=0 // loop_footer_branch
    %12 = sbr.rel target = $region3
  $region8: #{convnext_block.1} parent=0 // loop_exit
    _

</llo_original>
